<compile_context>
chip_gen: v5e
topology: v5e:2x2
jax: 0.10.0
libtpu: 0.0.40
codegen_flags: <defaults>
</compile_context>

<pallas_src>
import functools

import jax
import jax.numpy as jnp
from jax.experimental import pallas as pl
from jax.experimental.pallas import tpu as pltpu

_EPS = 1e-6  # LayerNorm2d (NAFNet-style) eps

_CPARAMS = pltpu.CompilerParams(
    dimension_semantics=("parallel", "parallel"),
    vmem_limit_bytes=64 * 1024 * 1024,
)


# ----------------------------------------------------------------------------
# Pallas kernels (all operate on (features, TILE) tiles: pixels on lanes)
# ----------------------------------------------------------------------------

def _pre_kernel(x_ref, n1g, n1b, w11, b11, w1, b1, w211, b211,
                xn_ref, t11_ref, t1_ref, a211_ref):
    """norm1 + the three 1x1 convs (conv11[0], conv1, conv211)."""
    f32 = jnp.float32
    x = x_ref[0]                                            # (C, T)
    mu = jnp.mean(x, axis=0, keepdims=True)
    xc = x - mu
    var = jnp.mean(xc * xc, axis=0, keepdims=True)
    xn = xc * jax.lax.rsqrt(var + _EPS) * n1g[...] + n1b[...]
    xn_ref[0] = xn
    t11_ref[0] = jnp.dot(w11[...], xn, preferred_element_type=f32) + b11[...]
    t1_ref[0] = jnp.dot(w1[...], xn, preferred_element_type=f32) + b1[...]
    a211_ref[0] = jnp.dot(w211[...], xn, preferred_element_type=f32) + b211[...]


def _mid_kernel(p5_ref, p3x_ref, p3t_ref, a211_ref,
                w5, b5, wd2, bd2, w22, b22, attg, wd21, bd21,
                x1_ref, att_ref, uf_ref):
    """conv11[1] (grouped 5x5), conv2 (dw3x3 -> SimpleGate -> 1x1) fused with
    att = conv2*attgamma + conv211, and conv21 (dw3x3 on conv1 output)."""
    f32 = jnp.float32
    # grouped 5x5 conv on conv11[0] output (bf16 patches/weights, f32 acc)
    x1_ref[0] = jnp.dot(w5[...], p5_ref[0], preferred_element_type=f32) + b5[...]
    # conv2: depthwise 3x3 -> SimpleGate -> 1x1 to nset
    d = jnp.dot(wd2[...], p3x_ref[0], preferred_element_type=f32) + bd2[...]
    half = d.shape[0] // 2
    sg = d[:half] * d[half:]                                # SimpleGate
    att_c2 = jnp.dot(w22[...], sg, preferred_element_type=f32) + b22[...]
    att_ref[0] = a211_ref[0] + att_c2 * attg[...]
    # conv21: depthwise 3x3 on conv1 output
    uf_ref[0] = jnp.dot(wd21[...], p3t_ref[0], preferred_element_type=f32) + bd21[...]


def _kba_kernel(att_ref, ufp_ref, uf_ref, wk, bk, ga1, xk_ref, *, c, cg, kk):
    """Kernel-basis attention fused with `* ga1 + uf`.

    Per pixel: attk = W @ att (per-pixel grouped-conv weights), bias = B @ att,
    out[co]  = sum_j attk[co*cg*kk + j] * uf_patch[group(co)*cg*kk + j] + bias[co].
    Implemented as an unrolled per-output-channel multiply + sublane reduce
    (no 0/1 selector matmuls, small live intermediates)."""
    f32 = jnp.float32
    att = att_ref[0]                                        # (nset, T)
    ufp = ufp_ref[0]                                        # (c*kk, T)
    wk_v = wk[...]                                          # (c*cg*kk, nset)
    cgkk = cg * kk
    bias = jnp.dot(bk[...], att, preferred_element_type=f32)   # (c, T)
    rows = []
    for co in range(c):                                     # unrolled, c small
        gi = co // cg
        attk_c = jnp.dot(wk_v[co * cgkk:(co + 1) * cgkk, :], att,
                         preferred_element_type=f32)        # (cg*kk, T)
        ufg = ufp[gi * cgkk:(gi + 1) * cgkk, :]             # (cg*kk, T)
        rows.append(jnp.sum(attk_c * ufg, axis=0, keepdims=True))
    kba = jnp.concatenate(rows, axis=0) + bias              # (c, T)
    xk_ref[0] = kba * ga1[...] + uf_ref[0]


def _post_kernel(xk_ref, x1_ref, sca_ref, fatt_ref, inp_ref,
                 w3, b3, beta, n2g, n2b, w4, b4, w5c, b5c, gamma,
                 out_ref):
    """x*x1*sca*fatt, conv3, residual, norm2, conv4, SimpleGate, conv5, residual."""
    f32 = jnp.float32
    xg = xk_ref[0] * x1_ref[0] * sca_ref[0] * fatt_ref[0]
    y = inp_ref[0] + (jnp.dot(w3[...], xg, preferred_element_type=f32)
                      + b3[...]) * beta[...]
    mu = jnp.mean(y, axis=0, keepdims=True)
    yc = y - mu
    var = jnp.mean(yc * yc, axis=0, keepdims=True)
    yn = yc * jax.lax.rsqrt(var + _EPS) * n2g[...] + n2b[...]
    h = jnp.dot(w4[...], yn, preferred_element_type=f32) + b4[...]
    half = h.shape[0] // 2
    hg = h[:half] * h[half:]                                # SimpleGate
    x5 = jnp.dot(w5c[...], hg, preferred_element_type=f32) + b5c[...]
    out_ref[0] = y + x5 * gamma[...]


# ----------------------------------------------------------------------------
# BlockSpec helpers / pallas_call wrappers
# ----------------------------------------------------------------------------

def _pix_spec(d, tile):
    # (B, d, HWp) tiled as (1, d, tile); pixels (lanes) tiled, features full.
    return pl.BlockSpec((1, d, tile), lambda b, j: (b, 0, j))


def _bat_spec(d):
    # per-batch column vector (B, d, 1): same block for every pixel tile.
    return pl.BlockSpec((1, d, 1), lambda b, j: (b, 0, 0))


def _rep_spec(shape):
    # replicated 2-D weight / bias.
    return pl.BlockSpec(shape, lambda b, j: (0, 0))


def pre_block(inp_p, p, tile):
    B, C, HWp = inp_p.shape
    nset = p["nset"]
    grid = (B, HWp // tile)
    return pl.pallas_call(
        _pre_kernel,
        out_shape=(
            jax.ShapeDtypeStruct((B, C, HWp), jnp.float32),      # x_norm
            jax.ShapeDtypeStruct((B, C, HWp), jnp.float32),      # conv11[0](x)
            jax.ShapeDtypeStruct((B, C, HWp), jnp.float32),      # conv1(x)
            jax.ShapeDtypeStruct((B, nset, HWp), jnp.float32),   # conv211(x)
        ),
        grid=grid,
        in_specs=[
            _pix_spec(C, tile),
            _rep_spec((C, 1)), _rep_spec((C, 1)),
            _rep_spec((C, C)), _rep_spec((C, 1)),
            _rep_spec((C, C)), _rep_spec((C, 1)),
            _rep_spec((nset, C)), _rep_spec((nset, 1)),
        ],
        out_specs=(_pix_spec(C, tile), _pix_spec(C, tile), _pix_spec(C, tile),
                   _pix_spec(nset, tile)),
        compiler_params=_CPARAMS,
    )(inp_p, p["norm1_w"], p["norm1_b"], p["w11"], p["b11"],
      p["w1"], p["b1"], p["w211"], p["b211"])


def mid_block(p5, p3x, p3t, a211, p, tile):
    B, _, HWp = p5.shape
    C, nset, interc = p["c"], p["nset"], p["interc"]
    grid = (B, HWp // tile)
    return pl.pallas_call(
        _mid_kernel,
        out_shape=(
            jax.ShapeDtypeStruct((B, C, HWp), jnp.float32),      # x1
            jax.ShapeDtypeStruct((B, nset, HWp), jnp.float32),   # att
            jax.ShapeDtypeStruct((B, C, HWp), jnp.float32),      # uf
        ),
        grid=grid,
        in_specs=[
            _pix_spec(C * 25, tile),
            _pix_spec(C * 9, tile),
            _pix_spec(C * 9, tile),
            _pix_spec(nset, tile),
            _rep_spec((C, C * 25)), _rep_spec((C, 1)),
            _rep_spec((interc, C * 9)), _rep_spec((interc, 1)),
            _rep_spec((nset, interc // 2)), _rep_spec((nset, 1)),
            _rep_spec((nset, 1)),
            _rep_spec((C, C * 9)), _rep_spec((C, 1)),
        ],
        out_specs=(_pix_spec(C, tile), _pix_spec(nset, tile),
                   _pix_spec(C, tile)),
        compiler_params=_CPARAMS,
    )(p5, p3x, p3t, a211,
      p["w5_dense"], p["b5"], p["wd2_dense"], p["bd2"],
      p["w22"], p["b22"], p["attgamma"], p["wd21_dense"], p["bd21"])


def kba_block(att, ufp, uf, p, tile):
    B, nset, HWp = att.shape
    C, g, k = p["c"], p["g"], p["k"]
    cg, kk = C // g, k * k
    grid = (B, HWp // tile)
    kernel = functools.partial(_kba_kernel, c=C, cg=cg, kk=kk)
    return pl.pallas_call(
        kernel,
        out_shape=jax.ShapeDtypeStruct((B, C, HWp), jnp.float32),
        grid=grid,
        in_specs=[
            _pix_spec(nset, tile),
            _pix_spec(C * kk, tile),
            _pix_spec(C, tile),
            _rep_spec((C * cg * kk, nset)),
            _rep_spec((C, nset)),
            _rep_spec((C, 1)),
        ],
        out_specs=_pix_spec(C, tile),
        compiler_params=_CPARAMS,
    )(att, ufp, uf, p["kba_w"], p["kba_b"], p["ga1"])


def post_block(xk, x1, sca, fatt, inp_p, p, tile):
    B, C, HWp = xk.shape
    ffn_ch = p["ffn_ch"]
    grid = (B, HWp // tile)
    return pl.pallas_call(
        _post_kernel,
        out_shape=jax.ShapeDtypeStruct((B, C, HWp), jnp.float32),
        grid=grid,
        in_specs=[
            _pix_spec(C, tile), _pix_spec(C, tile),
            _bat_spec(C), _bat_spec(C),
            _pix_spec(C, tile),
            _rep_spec((C, C)), _rep_spec((C, 1)), _rep_spec((C, 1)),
            _rep_spec((C, 1)), _rep_spec((C, 1)),
            _rep_spec((ffn_ch, C)), _rep_spec((ffn_ch, 1)),
            _rep_spec((C, ffn_ch // 2)), _rep_spec((C, 1)),
            _rep_spec((C, 1)),
        ],
        out_specs=_pix_spec(C, tile),
        compiler_params=_CPARAMS,
    )(xk, x1, sca, fatt, inp_p,
      p["w3"], p["b3"], p["beta"], p["norm2_w"], p["norm2_b"],
      p["w4"], p["b4"], p["w5c"], p["b5c"], p["gamma"])


# ----------------------------------------------------------------------------
# JAX glue: tiling, im2col, parameter setup
# ----------------------------------------------------------------------------

def _pick_tile(hw, max_tile=2048):
    if hw >= max_tile:
        return max_tile
    return ((hw + 127) // 128) * 128


def _pad_last(a, target):
    cur = a.shape[-1]
    if cur == target:
        return a
    return jnp.pad(a, ((0, 0), (0, 0), (0, target - cur)))


def unfold_cm(x, k):
    """PyTorch F.unfold(x, k, padding=k//2): (B,C,H,W) -> (B, C*k*k, H*W),
    column layout channel-major then (ki, kj)."""
    b, c, h, w = x.shape
    pad = k // 2
    xp = jnp.pad(x, ((0, 0), (0, 0), (pad, pad), (pad, pad)))
    cols = []
    for ki in range(k):
        for kj in range(k):
            cols.append(xp[:, :, ki:ki + h, kj:kj + w])
    patches = jnp.stack(cols, axis=2)                    # (B, C, KK, H, W)
    return patches.reshape(b, c * k * k, h * w)


def grouped_conv_to_dense_T(w, groups):
    """torch conv weight (Cout, Cin_g, kh, kw) with `groups` groups ->
    dense matrix (Cout, Cin*kh*kw) matching unfold_cm's column layout."""
    cout, cin_g, kh, kw = w.shape
    kk = kh * kw
    cin = cin_g * groups
    cout_g = cout // groups
    dense = jnp.zeros((cout, cin * kk), w.dtype)
    for gi in range(groups):
        blk = w[gi * cout_g:(gi + 1) * cout_g].reshape(cout_g, cin_g * kk)
        dense = dense.at[gi * cout_g:(gi + 1) * cout_g,
                         gi * cin_g * kk:(gi + 1) * cin_g * kk].set(blk)
    return dense


def init_params(key, c=8, nset=32, k=3, gc=4, dw_expand=2, ffn_expand=2):
    g = c // gc
    interc = min(c, 32)
    ffn_ch = ffn_expand * c
    kk = k * k
    keys = jax.random.split(key, 32)
    kit = iter(keys)

    def u(shape, scale=0.1):
        return jax.random.uniform(next(kit), shape, jnp.float32, -scale, scale)

    p = dict(c=c, nset=nset, k=k, g=g, interc=interc, ffn_ch=ffn_ch)

    # LayerNorm2d params (torch default: ones / zeros), stored as columns
    p["norm1_w"] = jnp.ones((c, 1), jnp.float32)
    p["norm1_b"] = jnp.zeros((c, 1), jnp.float32)
    p["norm2_w"] = jnp.ones((c, 1), jnp.float32)
    p["norm2_b"] = jnp.zeros((c, 1), jnp.float32)

    # 1x1 convs as (Cout, Cin) matrices for W @ X with X = (Cin, pixels)
    p["w11"], p["b11"] = u((c, c)), u((c, 1))
    p["w1"], p["b1"] = u((c, c)), u((c, 1))
    p["w211"], p["b211"] = u((nset, c)), u((nset, 1))
    p["sca_w"], p["sca_b"] = u((c, c)), u((c,))
    p["w3"], p["b3"] = u((c, c)), u((c, 1))
    p["w4"], p["b4"] = u((ffn_ch, c)), u((ffn_ch, 1))
    p["w5c"], p["b5c"] = u((c, ffn_ch // 2)), u((c, 1))
    p["fca_w1"], p["fca_w2"] = u((c // 4, c)), u((c, c // 4))  # FCA (no bias)

    # spatial convs -> dense (Cout, Cin*KK) matrices (bf16 for MXU inputs)
    g11 = c // 4
    p["w5_dense"] = grouped_conv_to_dense_T(
        u((c, c // g11, 5, 5)), g11).astype(jnp.bfloat16)       # conv11[1]
    p["b5"] = u((c, 1))
    p["wd2_dense"] = grouped_conv_to_dense_T(
        u((interc, c // interc, 3, 3)), interc).astype(jnp.bfloat16)  # conv2[0]
    p["bd2"] = u((interc, 1))
    p["w22"], p["b22"] = u((nset, interc // 2)), u((nset, 1))   # conv2[2]
    p["wd21_dense"] = grouped_conv_to_dense_T(
        u((c, 1, 3, 3)), c).astype(jnp.bfloat16)                # conv21
    p["bd21"] = u((c, 1))

    # KBA weight bank (torch: (1, nset, c*c//g*k^2) and (1, nset, c)),
    # stored transposed for the (features, pixels) layout.
    p["kba_w"] = u((nset, c * (c // g) * kk)).T                 # (c*cg*kk, nset)
    p["kba_b"] = u((nset, c)).T                                 # (c, nset)

    # learned scales (torch: zeros + 0.01)
    p["ga1"] = jnp.full((c, 1), 0.01, jnp.float32)
    p["attgamma"] = jnp.full((nset, 1), 0.01, jnp.float32)
    p["beta"] = jnp.full((c, 1), 0.01, jnp.float32)
    p["gamma"] = jnp.full((c, 1), 0.01, jnp.float32)
    return p


# ----------------------------------------------------------------------------
# Forward pass
# ----------------------------------------------------------------------------

def kbblock_forward(inp, p):
    B, C, H, W = inp.shape
    HW = H * W
    k = p["k"]
    tile = _pick_tile(HW)
    HWp = ((HW + tile - 1) // tile) * tile

    inp_p = _pad_last(inp.reshape(B, C, HW), HWp)

    # kernel 1: norm1 + conv11[0] + conv1 + conv211 -------------------------
    xn, t11, t1, a211 = pre_block(inp_p, p, tile)

    # sca branch: global avg pool + 1x1 conv (O(B*C) work, plain JAX)
    pooled = jnp.mean(xn[:, :, :HW], axis=-1)                  # (B, C)
    sca = pooled @ p["sca_w"].T + p["sca_b"]                   # (B, C)

    # im2col (glue), bf16 for the MXU.
    # TODO(synk): replace glue im2col with in-kernel halo convolutions.
    p5 = _pad_last(unfold_cm(t11[:, :, :HW].reshape(B, C, H, W), 5),
                   HWp).astype(jnp.bfloat16)
    p3x = _pad_last(unfold_cm(xn[:, :, :HW].reshape(B, C, H, W), 3),
                    HWp).astype(jnp.bfloat16)
    p3t = _pad_last(unfold_cm(t1[:, :, :HW].reshape(B, C, H, W), 3),
                    HWp).astype(jnp.bfloat16)

    # kernel 2: grouped 5x5, conv2 chain (att), conv21 (uf) -----------------
    x1, att, uf = mid_block(p5, p3x, p3t, a211, p, tile)

    # kernel 3: KBA fused with *ga1 + uf ------------------------------------
    ufp = _pad_last(unfold_cm(uf[:, :, :HW].reshape(B, C, H, W), k), HWp)
    xk = kba_block(att, ufp, uf, p, tile)

    # Fourier channel attention on the KBA output (whole-image FFT + tiny MLP)
    # TODO(synk): FFT has no Pallas primitive; this branch is O(B*C) afterwards.
    fmag = jnp.abs(jnp.fft.fft2(xk[:, :, :HW].reshape(B, C, H, W),
                                axes=(-2, -1)))
    fy = jnp.mean(fmag, axis=(2, 3))                           # (B, C)
    hmid = jax.nn.gelu(fy @ p["fca_w1"].T, approximate=False)
    fatt = jax.nn.sigmoid(hmid @ p["fca_w2"].T)                # (B, C)

    # kernel 4: gating, conv3, residual, norm2 + FFN, residual --------------
    out_p = post_block(xk, x1, sca[..., None], fatt[..., None], inp_p, p, tile)
    return out_p[:, :, :HW].reshape(B, C, H, W)


# ----------------------------------------------------------------------------

if __name__ == "__main__":
    key = jax.random.PRNGKey(0)
    pkey, xkey = jax.random.split(key)

    # KBBlock_s(c=8): c divisible by gc=4 (g=2), conv11 groups = c//4 = 2.
    params = init_params(pkey, c=8, nset=32, k=3, gc=4)
    x = jax.random.normal(xkey, (2, 8, 16, 16), jnp.float32)

    fwd = jax.jit(functools.partial(kbblock_forward, p=params))
    out = fwd(x)
    jax.block_until_ready(out)

    assert out.shape == x.shape and out.dtype == jnp.float32
    assert bool(jnp.all(jnp.isfinite(out)))
    print("KERNEL_OK")
</pallas_src>

<mosaic_0001>
module attributes {stable_mosaic.version = 11 : i64} {
  func.func @_pre_kernel(%arg0: i32, %arg1: i32, %arg2: memref<1x8x256xf32, #tpu.memory_space<vmem>>, %arg3: memref<8x1xf32, #tpu.memory_space<vmem>>, %arg4: memref<8x1xf32, #tpu.memory_space<vmem>>, %arg5: memref<8x8xf32, #tpu.memory_space<vmem>>, %arg6: memref<8x1xf32, #tpu.memory_space<vmem>>, %arg7: memref<8x8xf32, #tpu.memory_space<vmem>>, %arg8: memref<8x1xf32, #tpu.memory_space<vmem>>, %arg9: memref<32x8xf32, #tpu.memory_space<vmem>>, %arg10: memref<32x1xf32, #tpu.memory_space<vmem>>, %arg11: memref<1x8x256xf32, #tpu.memory_space<vmem>>, %arg12: memref<1x8x256xf32, #tpu.memory_space<vmem>>, %arg13: memref<1x8x256xf32, #tpu.memory_space<vmem>>, %arg14: memref<1x32x256xf32, #tpu.memory_space<vmem>>) attributes {dimension_semantics = [#tpu.dimension_semantics<parallel>, #tpu.dimension_semantics<parallel>], iteration_bounds = array<i64: 2, 1>, scalar_prefetch = 0 : i64, scratch_operands = 0 : i64, tpu.core_type = #tpu.core_type<tc>, window_params = [{transform_indices = @transform_0, window_bounds = array<i64: 1, 8, 256>}, {pipeline_mode = #tpu.pipeline_mode<synchronous>, transform_indices = @transform_1, window_bounds = array<i64: 8, 1>}, {pipeline_mode = #tpu.pipeline_mode<synchronous>, transform_indices = @transform_2, window_bounds = array<i64: 8, 1>}, {pipeline_mode = #tpu.pipeline_mode<synchronous>, transform_indices = @transform_3, window_bounds = array<i64: 8, 8>}, {pipeline_mode = #tpu.pipeline_mode<synchronous>, transform_indices = @transform_4, window_bounds = array<i64: 8, 1>}, {pipeline_mode = #tpu.pipeline_mode<synchronous>, transform_indices = @transform_5, window_bounds = array<i64: 8, 8>}, {pipeline_mode = #tpu.pipeline_mode<synchronous>, transform_indices = @transform_6, window_bounds = array<i64: 8, 1>}, {pipeline_mode = #tpu.pipeline_mode<synchronous>, transform_indices = @transform_7, window_bounds = array<i64: 32, 8>}, {pipeline_mode = #tpu.pipeline_mode<synchronous>, transform_indices = @transform_8, window_bounds = array<i64: 32, 1>}, {transform_indices = @transform_9, window_bounds = array<i64: 1, 8, 256>}, {transform_indices = @transform_10, window_bounds = array<i64: 1, 8, 256>}, {transform_indices = @transform_11, window_bounds = array<i64: 1, 8, 256>}, {transform_indices = @transform_12, window_bounds = array<i64: 1, 32, 256>}]} {
    %c0 = arith.constant 0 : index
    %c0_0 = arith.constant 0 : index
    %c0_1 = arith.constant 0 : index
    %0 = vector.load %arg2[%c0, %c0_0, %c0_1] : memref<1x8x256xf32, #tpu.memory_space<vmem>>, vector<1x8x256xf32>
    %1 = vector.shape_cast %0 : vector<1x8x256xf32> to vector<8x256xf32>
    %cst = arith.constant dense<0.000000e+00> : vector<256xf32>
    %2 = vector.multi_reduction <add>, %1, %cst [0] : vector<8x256xf32> to vector<256xf32>
    %3 = vector.shape_cast %2 : vector<256xf32> to vector<1x256xf32>
    %cst_2 = arith.constant 8.000000e+00 : f32
    %4 = vector.broadcast %cst_2 : f32 to vector<1x256xf32>
    %5 = arith.divf %3, %4 : vector<1x256xf32>
    %6 = vector.broadcast %5 : vector<1x256xf32> to vector<8x256xf32>
    %7 = arith.subf %1, %6 : vector<8x256xf32>
    %8 = arith.mulf %7, %7 : vector<8x256xf32>
    %cst_3 = arith.constant dense<0.000000e+00> : vector<256xf32>
    %9 = vector.multi_reduction <add>, %8, %cst_3 [0] : vector<8x256xf32> to vector<256xf32>
    %10 = vector.shape_cast %9 : vector<256xf32> to vector<1x256xf32>
    %cst_4 = arith.constant 8.000000e+00 : f32
    %11 = vector.broadcast %cst_4 : f32 to vector<1x256xf32>
    %12 = arith.divf %10, %11 : vector<1x256xf32>
    %cst_5 = arith.constant 9.99999997E-7 : f32
    %13 = vector.broadcast %cst_5 : f32 to vector<1x256xf32>
    %14 = arith.addf %12, %13 : vector<1x256xf32>
    %15 = math.rsqrt %14 : vector<1x256xf32>
    %16 = vector.broadcast %15 : vector<1x256xf32> to vector<8x256xf32>
    %17 = arith.mulf %7, %16 : vector<8x256xf32>
    %c0_6 = arith.constant 0 : index
    %c0_7 = arith.constant 0 : index
    %18 = vector.load %arg3[%c0_6, %c0_7] : memref<8x1xf32, #tpu.memory_space<vmem>>, vector<8x1xf32>
    %19 = vector.broadcast %18 : vector<8x1xf32> to vector<8x256xf32>
    %20 = arith.mulf %17, %19 : vector<8x256xf32>
    %c0_8 = arith.constant 0 : index
    %c0_9 = arith.constant 0 : index
    %21 = vector.load %arg4[%c0_8, %c0_9] : memref<8x1xf32, #tpu.memory_space<vmem>>, vector<8x1xf32>
    %22 = vector.broadcast %21 : vector<8x1xf32> to vector<8x256xf32>
    %23 = arith.addf %20, %22 : vector<8x256xf32>
    %c0_10 = arith.constant 0 : index
    %c0_11 = arith.constant 0 : index
    %c0_12 = arith.constant 0 : index
    %24 = vector.load %arg11[%c0_10, %c0_11, %c0_12] : memref<1x8x256xf32, #tpu.memory_space<vmem>>, vector<1x8x256xf32>
    %25 = vector.shape_cast %24 : vector<1x8x256xf32> to vector<8x256xf32>
    %26 = vector.shape_cast %23 : vector<8x256xf32> to vector<1x8x256xf32>
    tpu.vector_store %arg11[%c0_10, %c0_11, %c0_12], %26 {strides = array<i32>} : memref<1x8x256xf32, #tpu.memory_space<vmem>>, vector<1x8x256xf32>,
    %c0_13 = arith.constant 0 : index
    %c0_14 = arith.constant 0 : index
    %27 = vector.load %arg5[%c0_13, %c0_14] : memref<8x8xf32, #tpu.memory_space<vmem>>, vector<8x8xf32>
    %cst_15 = arith.constant dense<0.000000e+00> : vector<8x256xf32>
    %28 = tpu.matmul %27, %23, %cst_15 {dimension_numbers = #tpu.dot_dimension_numbers<[1], [0], [0], [1], [0, 0, 1, 1], [], []>} : vector<8x8xf32>, vector<8x256xf32>, vector<8x256xf32> -> vector<8x256xf32>
    %c0_16 = arith.constant 0 : index
    %c0_17 = arith.constant 0 : index
    %29 = vector.load %arg6[%c0_16, %c0_17] : memref<8x1xf32, #tpu.memory_space<vmem>>, vector<8x1xf32>
    %30 = vector.broadcast %29 : vector<8x1xf32> to vector<8x256xf32>
    %31 = arith.addf %28, %30 : vector<8x256xf32>
    %c0_18 = arith.constant 0 : index
    %c0_19 = arith.constant 0 : index
    %c0_20 = arith.constant 0 : index
    %32 = vector.load %arg12[%c0_18, %c0_19, %c0_20] : memref<1x8x256xf32, #tpu.memory_space<vmem>>, vector<1x8x256xf32>
    %33 = vector.shape_cast %32 : vector<1x8x256xf32> to vector<8x256xf32>
    %34 = vector.shape_cast %31 : vector<8x256xf32> to vector<1x8x256xf32>
    tpu.vector_store %arg12[%c0_18, %c0_19, %c0_20], %34 {strides = array<i32>} : memref<1x8x256xf32, #tpu.memory_space<vmem>>, vector<1x8x256xf32>,
    %c0_21 = arith.constant 0 : index
    %c0_22 = arith.constant 0 : index
    %35 = vector.load %arg7[%c0_21, %c0_22] : memref<8x8xf32, #tpu.memory_space<vmem>>, vector<8x8xf32>
    %cst_23 = arith.constant dense<0.000000e+00> : vector<8x256xf32>
    %36 = tpu.matmul %35, %23, %cst_23 {dimension_numbers = #tpu.dot_dimension_numbers<[1], [0], [0], [1], [0, 0, 1, 1], [], []>} : vector<8x8xf32>, vector<8x256xf32>, vector<8x256xf32> -> vector<8x256xf32>
    %c0_24 = arith.constant 0 : index
    %c0_25 = arith.constant 0 : index
    %37 = vector.load %arg8[%c0_24, %c0_25] : memref<8x1xf32, #tpu.memory_space<vmem>>, vector<8x1xf32>
    %38 = vector.broadcast %37 : vector<8x1xf32> to vector<8x256xf32>
    %39 = arith.addf %36, %38 : vector<8x256xf32>
    %c0_26 = arith.constant 0 : index
    %c0_27 = arith.constant 0 : index
    %c0_28 = arith.constant 0 : index
    %40 = vector.load %arg13[%c0_26, %c0_27, %c0_28] : memref<1x8x256xf32, #tpu.memory_space<vmem>>, vector<1x8x256xf32>
    %41 = vector.shape_cast %40 : vector<1x8x256xf32> to vector<8x256xf32>
    %42 = vector.shape_cast %39 : vector<8x256xf32> to vector<1x8x256xf32>
    tpu.vector_store %arg13[%c0_26, %c0_27, %c0_28], %42 {strides = array<i32>} : memref<1x8x256xf32, #tpu.memory_space<vmem>>, vector<1x8x256xf32>,
    %c0_29 = arith.constant 0 : index
    %c0_30 = arith.constant 0 : index
    %43 = vector.load %arg9[%c0_29, %c0_30] : memref<32x8xf32, #tpu.memory_space<vmem>>, vector<32x8xf32>
    %cst_31 = arith.constant dense<0.000000e+00> : vector<32x256xf32>
    %44 = tpu.matmul %43, %23, %cst_31 {dimension_numbers = #tpu.dot_dimension_numbers<[1], [0], [0], [1], [0, 0, 1, 1], [], []>} : vector<32x8xf32>, vector<8x256xf32>, vector<32x256xf32> -> vector<32x256xf32>
    %c0_32 = arith.constant 0 : index
    %c0_33 = arith.constant 0 : index
    %45 = vector.load %arg10[%c0_32, %c0_33] : memref<32x1xf32, #tpu.memory_space<vmem>>, vector<32x1xf32>
    %46 = vector.broadcast %45 : vector<32x1xf32> to vector<32x256xf32>
    %47 = arith.addf %44, %46 : vector<32x256xf32>
    %c0_34 = arith.constant 0 : index
    %c0_35 = arith.constant 0 : index
    %c0_36 = arith.constant 0 : index
    %48 = vector.load %arg14[%c0_34, %c0_35, %c0_36] : memref<1x32x256xf32, #tpu.memory_space<vmem>>, vector<1x32x256xf32>
    %49 = vector.shape_cast %48 : vector<1x32x256xf32> to vector<32x256xf32>
    %50 = vector.shape_cast %47 : vector<32x256xf32> to vector<1x32x256xf32>
    tpu.vector_store %arg14[%c0_34, %c0_35, %c0_36], %50 {strides = array<i32>} : memref<1x32x256xf32, #tpu.memory_space<vmem>>, vector<1x32x256xf32>,
    return
  }
  func.func @transform_0(%arg0: i32, %arg1: i32) -> (i32, i32, i32) {
    %c0_i32 = arith.constant 0 : i32
    %c0_i32_0 = arith.constant 0 : i32
    return %arg0, %c0_i32, %arg1 : i32, i32, i32
  }
  func.func @transform_1(%arg0: i32, %arg1: i32) -> (i32, i32) {
    %c0_i32 = arith.constant 0 : i32
    %c0_i32_0 = arith.constant 0 : i32
    %c0_i32_1 = arith.constant 0 : i32
    return %c0_i32, %c0_i32_0 : i32, i32
  }
  func.func @transform_2(%arg0: i32, %arg1: i32) -> (i32, i32) {
    %c0_i32 = arith.constant 0 : i32
    %c0_i32_0 = arith.constant 0 : i32
    %c0_i32_1 = arith.constant 0 : i32
    return %c0_i32, %c0_i32_0 : i32, i32
  }
  func.func @transform_3(%arg0: i32, %arg1: i32) -> (i32, i32) {
    %c0_i32 = arith.constant 0 : i32
    %c0_i32_0 = arith.constant 0 : i32
    %c0_i32_1 = arith.constant 0 : i32
    return %c0_i32, %c0_i32_0 : i32, i32
  }
  func.func @transform_4(%arg0: i32, %arg1: i32) -> (i32, i32) {
    %c0_i32 = arith.constant 0 : i32
    %c0_i32_0 = arith.constant 0 : i32
    %c0_i32_1 = arith.constant 0 : i32
    return %c0_i32, %c0_i32_0 : i32, i32
  }
  func.func @transform_5(%arg0: i32, %arg1: i32) -> (i32, i32) {
    %c0_i32 = arith.constant 0 : i32
    %c0_i32_0 = arith.constant 0 : i32
    %c0_i32_1 = arith.constant 0 : i32
    return %c0_i32, %c0_i32_0 : i32, i32
  }
  func.func @transform_6(%arg0: i32, %arg1: i32) -> (i32, i32) {
    %c0_i32 = arith.constant 0 : i32
    %c0_i32_0 = arith.constant 0 : i32
    %c0_i32_1 = arith.constant 0 : i32
    return %c0_i32, %c0_i32_0 : i32, i32
  }
  func.func @transform_7(%arg0: i32, %arg1: i32) -> (i32, i32) {
    %c0_i32 = arith.constant 0 : i32
    %c0_i32_0 = arith.constant 0 : i32
    %c0_i32_1 = arith.constant 0 : i32
    return %c0_i32, %c0_i32_0 : i32, i32
  }
  func.func @transform_8(%arg0: i32, %arg1: i32) -> (i32, i32) {
    %c0_i32 = arith.constant 0 : i32
    %c0_i32_0 = arith.constant 0 : i32
    %c0_i32_1 = arith.constant 0 : i32
    return %c0_i32, %c0_i32_0 : i32, i32
  }
  func.func @transform_9(%arg0: i32, %arg1: i32) -> (i32, i32, i32) {
    %c0_i32 = arith.constant 0 : i32
    %c0_i32_0 = arith.constant 0 : i32
    return %arg0, %c0_i32, %arg1 : i32, i32, i32
  }
  func.func @transform_10(%arg0: i32, %arg1: i32) -> (i32, i32, i32) {
    %c0_i32 = arith.constant 0 : i32
    %c0_i32_0 = arith.constant 0 : i32
    return %arg0, %c0_i32, %arg1 : i32, i32, i32
  }
  func.func @transform_11(%arg0: i32, %arg1: i32) -> (i32, i32, i32) {
    %c0_i32 = arith.constant 0 : i32
    %c0_i32_0 = arith.constant 0 : i32
    return %arg0, %c0_i32, %arg1 : i32, i32, i32
  }
  func.func @transform_12(%arg0: i32, %arg1: i32) -> (i32, i32, i32) {
    %c0_i32 = arith.constant 0 : i32
    %c0_i32_0 = arith.constant 0 : i32
    return %arg0, %c0_i32, %arg1 : i32, i32, i32
  }
}

module attributes {stable_mosaic.version = 11 : i64} {
  func.func @_mid_kernel(%arg0: i32, %arg1: i32, %arg2: memref<1x200x256xbf16, #tpu.memory_space<vmem>>, %arg3: memref<1x72x256xbf16, #tpu.memory_space<vmem>>, %arg4: memref<1x72x256xbf16, #tpu.memory_space<vmem>>, %arg5: memref<1x32x256xf32, #tpu.memory_space<vmem>>, %arg6: memref<8x200xbf16, #tpu.memory_space<vmem>>, %arg7: memref<8x1xf32, #tpu.memory_space<vmem>>, %arg8: memref<8x72xbf16, #tpu.memory_space<vmem>>, %arg9: memref<8x1xf32, #tpu.memory_space<vmem>>, %arg10: memref<32x4xf32, #tpu.memory_space<vmem>>, %arg11: memref<32x1xf32, #tpu.memory_space<vmem>>, %arg12: memref<32x1xf32, #tpu.memory_space<vmem>>, %arg13: memref<8x72xbf16, #tpu.memory_space<vmem>>, %arg14: memref<8x1xf32, #tpu.memory_space<vmem>>, %arg15: memref<1x8x256xf32, #tpu.memory_space<vmem>>, %arg16: memref<1x32x256xf32, #tpu.memory_space<vmem>>, %arg17: memref<1x8x256xf32, #tpu.memory_space<vmem>>) attributes {dimension_semantics = [#tpu.dimension_semantics<parallel>, #tpu.dimension_semantics<parallel>], iteration_bounds = array<i64: 2, 1>, scalar_prefetch = 0 : i64, scratch_operands = 0 : i64, tpu.core_type = #tpu.core_type<tc>, window_params = [{transform_indices = @transform_0, window_bounds = array<i64: 1, 200, 256>}, {transform_indices = @transform_1, window_bounds = array<i64: 1, 72, 256>}, {transform_indices = @transform_2, window_bounds = array<i64: 1, 72, 256>}, {transform_indices = @transform_3, window_bounds = array<i64: 1, 32, 256>}, {pipeline_mode = #tpu.pipeline_mode<synchronous>, transform_indices = @transform_4, window_bounds = array<i64: 8, 200>}, {pipeline_mode = #tpu.pipeline_mode<synchronous>, transform_indices = @transform_5, window_bounds = array<i64: 8, 1>}, {pipeline_mode = #tpu.pipeline_mode<synchronous>, transform_indices = @transform_6, window_bounds = array<i64: 8, 72>}, {pipeline_mode = #tpu.pipeline_mode<synchronous>, transform_indices = @transform_7, window_bounds = array<i64: 8, 1>}, {pipeline_mode = #tpu.pipeline_mode<synchronous>, transform_indices = @transform_8, window_bounds = array<i64: 32, 4>}, {pipeline_mode = #tpu.pipeline_mode<synchronous>, transform_indices = @transform_9, window_bounds = array<i64: 32, 1>}, {pipeline_mode = #tpu.pipeline_mode<synchronous>, transform_indices = @transform_10, window_bounds = array<i64: 32, 1>}, {pipeline_mode = #tpu.pipeline_mode<synchronous>, transform_indices = @transform_11, window_bounds = array<i64: 8, 72>}, {pipeline_mode = #tpu.pipeline_mode<synchronous>, transform_indices = @transform_12, window_bounds = array<i64: 8, 1>}, {transform_indices = @transform_13, window_bounds = array<i64: 1, 8, 256>}, {transform_indices = @transform_14, window_bounds = array<i64: 1, 32, 256>}, {transform_indices = @transform_15, window_bounds = array<i64: 1, 8, 256>}]} {
    %c0 = arith.constant 0 : index
    %c0_0 = arith.constant 0 : index
    %0 = vector.load %arg6[%c0, %c0_0] : memref<8x200xbf16, #tpu.memory_space<vmem>>, vector<8x200xbf16>
    %c0_1 = arith.constant 0 : index
    %c0_2 = arith.constant 0 : index
    %c0_3 = arith.constant 0 : index
    %1 = vector.load %arg2[%c0_1, %c0_2, %c0_3] : memref<1x200x256xbf16, #tpu.memory_space<vmem>>, vector<1x200x256xbf16>
    %2 = vector.shape_cast %1 : vector<1x200x256xbf16> to vector<200x256xbf16>
    %cst = arith.constant dense<0.000000e+00> : vector<8x256xf32>
    %3 = tpu.matmul %0, %2, %cst {dimension_numbers = #tpu.dot_dimension_numbers<[1], [0], [0], [1], [0, 0, 1, 1], [], []>} : vector<8x200xbf16>, vector<200x256xbf16>, vector<8x256xf32> -> vector<8x256xf32>
    %c0_4 = arith.constant 0 : index
    %c0_5 = arith.constant 0 : index
    %4 = vector.load %arg7[%c0_4, %c0_5] : memref<8x1xf32, #tpu.memory_space<vmem>>, vector<8x1xf32>
    %5 = vector.broadcast %4 : vector<8x1xf32> to vector<8x256xf32>
    %6 = arith.addf %3, %5 : vector<8x256xf32>
    %c0_6 = arith.constant 0 : index
    %c0_7 = arith.constant 0 : index
    %c0_8 = arith.constant 0 : index
    %7 = vector.load %arg15[%c0_6, %c0_7, %c0_8] : memref<1x8x256xf32, #tpu.memory_space<vmem>>, vector<1x8x256xf32>
    %8 = vector.shape_cast %7 : vector<1x8x256xf32> to vector<8x256xf32>
    %9 = vector.shape_cast %6 : vector<8x256xf32> to vector<1x8x256xf32>
    tpu.vector_store %arg15[%c0_6, %c0_7, %c0_8], %9 {strides = array<i32>} : memref<1x8x256xf32, #tpu.memory_space<vmem>>, vector<1x8x256xf32>,
    %c0_9 = arith.constant 0 : index
    %c0_10 = arith.constant 0 : index
    %10 = vector.load %arg8[%c0_9, %c0_10] : memref<8x72xbf16, #tpu.memory_space<vmem>>, vector<8x72xbf16>
    %c0_11 = arith.constant 0 : index
    %c0_12 = arith.constant 0 : index
    %c0_13 = arith.constant 0 : index
    %11 = vector.load %arg3[%c0_11, %c0_12, %c0_13] : memref<1x72x256xbf16, #tpu.memory_space<vmem>>, vector<1x72x256xbf16>
    %12 = vector.shape_cast %11 : vector<1x72x256xbf16> to vector<72x256xbf16>
    %cst_14 = arith.constant dense<0.000000e+00> : vector<8x256xf32>
    %13 = tpu.matmul %10, %12, %cst_14 {dimension_numbers = #tpu.dot_dimension_numbers<[1], [0], [0], [1], [0, 0, 1, 1], [], []>} : vector<8x72xbf16>, vector<72x256xbf16>, vector<8x256xf32> -> vector<8x256xf32>
    %c0_15 = arith.constant 0 : index
    %c0_16 = arith.constant 0 : index
    %14 = vector.load %arg9[%c0_15, %c0_16] : memref<8x1xf32, #tpu.memory_space<vmem>>, vector<8x1xf32>
    %15 = vector.broadcast %14 : vector<8x1xf32> to vector<8x256xf32>
    %16 = arith.addf %13, %15 : vector<8x256xf32>
    %17 = vector.extract_strided_slice %16 {offsets = [0, 0], sizes = [4, 256], strides = [1, 1]} : vector<8x256xf32> to vector<4x256xf32>
    %18 = vector.extract_strided_slice %16 {offsets = [4, 0], sizes = [4, 256], strides = [1, 1]} : vector<8x256xf32> to vector<4x256xf32>
    %19 = arith.mulf %17, %18 : vector<4x256xf32>
    %c0_17 = arith.constant 0 : index
    %c0_18 = arith.constant 0 : index
    %20 = vector.load %arg10[%c0_17, %c0_18] : memref<32x4xf32, #tpu.memory_space<vmem>>, vector<32x4xf32>
    %cst_19 = arith.constant dense<0.000000e+00> : vector<32x256xf32>
    %21 = tpu.matmul %20, %19, %cst_19 {dimension_numbers = #tpu.dot_dimension_numbers<[1], [0], [0], [1], [0, 0, 1, 1], [], []>} : vector<32x4xf32>, vector<4x256xf32>, vector<32x256xf32> -> vector<32x256xf32>
    %c0_20 = arith.constant 0 : index
    %c0_21 = arith.constant 0 : index
    %22 = vector.load %arg11[%c0_20, %c0_21] : memref<32x1xf32, #tpu.memory_space<vmem>>, vector<32x1xf32>
    %23 = vector.broadcast %22 : vector<32x1xf32> to vector<32x256xf32>
    %24 = arith.addf %21, %23 : vector<32x256xf32>
    %c0_22 = arith.constant 0 : index
    %c0_23 = arith.constant 0 : index
    %c0_24 = arith.constant 0 : index
    %25 = vector.load %arg5[%c0_22, %c0_23, %c0_24] : memref<1x32x256xf32, #tpu.memory_space<vmem>>, vector<1x32x256xf32>
    %26 = vector.shape_cast %25 : vector<1x32x256xf32> to vector<32x256xf32>
    %c0_25 = arith.constant 0 : index
    %c0_26 = arith.constant 0 : index
    %27 = vector.load %arg12[%c0_25, %c0_26] : memref<32x1xf32, #tpu.memory_space<vmem>>, vector<32x1xf32>
    %28 = vector.broadcast %27 : vector<32x1xf32> to vector<32x256xf32>
    %29 = arith.mulf %24, %28 : vector<32x256xf32>
    %30 = arith.addf %26, %29 : vector<32x256xf32>
    %c0_27 = arith.constant 0 : index
    %c0_28 = arith.constant 0 : index
    %c0_29 = arith.constant 0 : index
    %31 = vector.load %arg16[%c0_27, %c0_28, %c0_29] : memref<1x32x256xf32, #tpu.memory_space<vmem>>, vector<1x32x256xf32>
    %32 = vector.shape_cast %31 : vector<1x32x256xf32> to vector<32x256xf32>
    %33 = vector.shape_cast %30 : vector<32x256xf32> to vector<1x32x256xf32>
    tpu.vector_store %arg16[%c0_27, %c0_28, %c0_29], %33 {strides = array<i32>} : memref<1x32x256xf32, #tpu.memory_space<vmem>>, vector<1x32x256xf32>,
    %c0_30 = arith.constant 0 : index
    %c0_31 = arith.constant 0 : index
    %34 = vector.load %arg13[%c0_30, %c0_31] : memref<8x72xbf16, #tpu.memory_space<vmem>>, vector<8x72xbf16>
    %c0_32 = arith.constant 0 : index
    %c0_33 = arith.constant 0 : index
    %c0_34 = arith.constant 0 : index
    %35 = vector.load %arg4[%c0_32, %c0_33, %c0_34] : memref<1x72x256xbf16, #tpu.memory_space<vmem>>, vector<1x72x256xbf16>
    %36 = vector.shape_cast %35 : vector<1x72x256xbf16> to vector<72x256xbf16>
    %cst_35 = arith.constant dense<0.000000e+00> : vector<8x256xf32>
    %37 = tpu.matmul %34, %36, %cst_35 {dimension_numbers = #tpu.dot_dimension_numbers<[1], [0], [0], [1], [0, 0, 1, 1], [], []>} : vector<8x72xbf16>, vector<72x256xbf16>, vector<8x256xf32> -> vector<8x256xf32>
    %c0_36 = arith.constant 0 : index
    %c0_37 = arith.constant 0 : index
    %38 = vector.load %arg14[%c0_36, %c0_37] : memref<8x1xf32, #tpu.memory_space<vmem>>, vector<8x1xf32>
    %39 = vector.broadcast %38 : vector<8x1xf32> to vector<8x256xf32>
    %40 = arith.addf %37, %39 : vector<8x256xf32>
    %c0_38 = arith.constant 0 : index
    %c0_39 = arith.constant 0 : index
    %c0_40 = arith.constant 0 : index
    %41 = vector.load %arg17[%c0_38, %c0_39, %c0_40] : memref<1x8x256xf32, #tpu.memory_space<vmem>>, vector<1x8x256xf32>
    %42 = vector.shape_cast %41 : vector<1x8x256xf32> to vector<8x256xf32>
    %43 = vector.shape_cast %40 : vector<8x256xf32> to vector<1x8x256xf32>
    tpu.vector_store %arg17[%c0_38, %c0_39, %c0_40], %43 {strides = array<i32>} : memref<1x8x256xf32, #tpu.memory_space<vmem>>, vector<1x8x256xf32>,
    return
  }
  func.func @transform_0(%arg0: i32, %arg1: i32) -> (i32, i32, i32) {
    %c0_i32 = arith.constant 0 : i32
    %c0_i32_0 = arith.constant 0 : i32
    return %arg0, %c0_i32, %arg1 : i32, i32, i32
  }
  func.func @transform_1(%arg0: i32, %arg1: i32) -> (i32, i32, i32) {
    %c0_i32 = arith.constant 0 : i32
    %c0_i32_0 = arith.constant 0 : i32
    return %arg0, %c0_i32, %arg1 : i32, i32, i32
  }
  func.func @transform_2(%arg0: i32, %arg1: i32) -> (i32, i32, i32) {
    %c0_i32 = arith.constant 0 : i32
    %c0_i32_0 = arith.constant 0 : i32
    return %arg0, %c0_i32, %arg1 : i32, i32, i32
  }
  func.func @transform_3(%arg0: i32, %arg1: i32) -> (i32, i32, i32) {
    %c0_i32 = arith.constant 0 : i32
    %c0_i32_0 = arith.constant 0 : i32
    return %arg0, %c0_i32, %arg1 : i32, i32, i32
  }
  func.func @transform_4(%arg0: i32, %arg1: i32) -> (i32, i32) {
    %c0_i32 = arith.constant 0 : i32
    %c0_i32_0 = arith.constant 0 : i32
    %c0_i32_1 = arith.constant 0 : i32
    return %c0_i32, %c0_i32_0 : i32, i32
  }
  func.func @transform_5(%arg0: i32, %arg1: i32) -> (i32, i32) {
    %c0_i32 = arith.constant 0 : i32
    %c0_i32_0 = arith.constant 0 : i32
    %c0_i32_1 = arith.constant 0 : i32
    return %c0_i32, %c0_i32_0 : i32, i32
  }
  func.func @transform_6(%arg0: i32, %arg1: i32) -> (i32, i32) {
    %c0_i32 = arith.constant 0 : i32
    %c0_i32_0 = arith.constant 0 : i32
    %c0_i32_1 = arith.constant 0 : i32
    return %c0_i32, %c0_i32_0 : i32, i32
  }
  func.func @transform_7(%arg0: i32, %arg1: i32) -> (i32, i32) {
    %c0_i32 = arith.constant 0 : i32
    %c0_i32_0 = arith.constant 0 : i32
    %c0_i32_1 = arith.constant 0 : i32
    return %c0_i32, %c0_i32_0 : i32, i32
  }
  func.func @transform_8(%arg0: i32, %arg1: i32) -> (i32, i32) {
    %c0_i32 = arith.constant 0 : i32
    %c0_i32_0 = arith.constant 0 : i32
    %c0_i32_1 = arith.constant 0 : i32
    return %c0_i32, %c0_i32_0 : i32, i32
  }
  func.func @transform_9(%arg0: i32, %arg1: i32) -> (i32, i32) {
    %c0_i32 = arith.constant 0 : i32
    %c0_i32_0 = arith.constant 0 : i32
    %c0_i32_1 = arith.constant 0 : i32
    return %c0_i32, %c0_i32_0 : i32, i32
  }
  func.func @transform_10(%arg0: i32, %arg1: i32) -> (i32, i32) {
    %c0_i32 = arith.constant 0 : i32
    %c0_i32_0 = arith.constant 0 : i32
    %c0_i32_1 = arith.constant 0 : i32
    return %c0_i32, %c0_i32_0 : i32, i32
  }
  func.func @transform_11(%arg0: i32, %arg1: i32) -> (i32, i32) {
    %c0_i32 = arith.constant 0 : i32
    %c0_i32_0 = arith.constant 0 : i32
    %c0_i32_1 = arith.constant 0 : i32
    return %c0_i32, %c0_i32_0 : i32, i32
  }
  func.func @transform_12(%arg0: i32, %arg1: i32) -> (i32, i32) {
    %c0_i32 = arith.constant 0 : i32
    %c0_i32_0 = arith.constant 0 : i32
    %c0_i32_1 = arith.constant 0 : i32
    return %c0_i32, %c0_i32_0 : i32, i32
  }
  func.func @transform_13(%arg0: i32, %arg1: i32) -> (i32, i32, i32) {
    %c0_i32 = arith.constant 0 : i32
    %c0_i32_0 = arith.constant 0 : i32
    return %arg0, %c0_i32, %arg1 : i32, i32, i32
  }
  func.func @transform_14(%arg0: i32, %arg1: i32) -> (i32, i32, i32) {
    %c0_i32 = arith.constant 0 : i32
    %c0_i32_0 = arith.constant 0 : i32
    return %arg0, %c0_i32, %arg1 : i32, i32, i32
  }
  func.func @transform_15(%arg0: i32, %arg1: i32) -> (i32, i32, i32) {
    %c0_i32 = arith.constant 0 : i32
    %c0_i32_0 = arith.constant 0 : i32
    return %arg0, %c0_i32, %arg1 : i32, i32, i32
  }
}

module attributes {stable_mosaic.version = 11 : i64} {
  func.func @_kba_kernel(%arg0: i32, %arg1: i32, %arg2: memref<1x32x256xf32, #tpu.memory_space<vmem>>, %arg3: memref<1x72x256xf32, #tpu.memory_space<vmem>>, %arg4: memref<1x8x256xf32, #tpu.memory_space<vmem>>, %arg5: memref<288x32xf32, #tpu.memory_space<vmem>>, %arg6: memref<8x32xf32, #tpu.memory_space<vmem>>, %arg7: memref<8x1xf32, #tpu.memory_space<vmem>>, %arg8: memref<1x8x256xf32, #tpu.memory_space<vmem>>) attributes {dimension_semantics = [#tpu.dimension_semantics<parallel>, #tpu.dimension_semantics<parallel>], iteration_bounds = array<i64: 2, 1>, scalar_prefetch = 0 : i64, scratch_operands = 0 : i64, tpu.core_type = #tpu.core_type<tc>, window_params = [{transform_indices = @transform_0, window_bounds = array<i64: 1, 32, 256>}, {transform_indices = @transform_1, window_bounds = array<i64: 1, 72, 256>}, {transform_indices = @transform_2, window_bounds = array<i64: 1, 8, 256>}, {pipeline_mode = #tpu.pipeline_mode<synchronous>, transform_indices = @transform_3, window_bounds = array<i64: 288, 32>}, {pipeline_mode = #tpu.pipeline_mode<synchronous>, transform_indices = @transform_4, window_bounds = array<i64: 8, 32>}, {pipeline_mode = #tpu.pipeline_mode<synchronous>, transform_indices = @transform_5, window_bounds = array<i64: 8, 1>}, {transform_indices = @transform_6, window_bounds = array<i64: 1, 8, 256>}]} {
    %c0 = arith.constant 0 : index
    %c0_0 = arith.constant 0 : index
    %c0_1 = arith.constant 0 : index
    %0 = vector.load %arg2[%c0, %c0_0, %c0_1] : memref<1x32x256xf32, #tpu.memory_space<vmem>>, vector<1x32x256xf32>
    %1 = vector.shape_cast %0 : vector<1x32x256xf32> to vector<32x256xf32>
    %c0_2 = arith.constant 0 : index
    %c0_3 = arith.constant 0 : index
    %c0_4 = arith.constant 0 : index
    %2 = vector.load %arg3[%c0_2, %c0_3, %c0_4] : memref<1x72x256xf32, #tpu.memory_space<vmem>>, vector<1x72x256xf32>
    %3 = vector.shape_cast %2 : vector<1x72x256xf32> to vector<72x256xf32>
    %c0_5 = arith.constant 0 : index
    %c0_6 = arith.constant 0 : index
    %4 = vector.load %arg5[%c0_5, %c0_6] : memref<288x32xf32, #tpu.memory_space<vmem>>, vector<288x32xf32>
    %c0_7 = arith.constant 0 : index
    %c0_8 = arith.constant 0 : index
    %5 = vector.load %arg6[%c0_7, %c0_8] : memref<8x32xf32, #tpu.memory_space<vmem>>, vector<8x32xf32>
    %cst = arith.constant dense<0.000000e+00> : vector<8x256xf32>
    %6 = tpu.matmul %5, %1, %cst {dimension_numbers = #tpu.dot_dimension_numbers<[1], [0], [0], [1], [0, 0, 1, 1], [], []>} : vector<8x32xf32>, vector<32x256xf32>, vector<8x256xf32> -> vector<8x256xf32>
    %7 = vector.extract_strided_slice %4 {offsets = [0, 0], sizes = [36, 32], strides = [1, 1]} : vector<288x32xf32> to vector<36x32xf32>
    %cst_9 = arith.constant dense<0.000000e+00> : vector<36x256xf32>
    %8 = tpu.matmul %7, %1, %cst_9 {dimension_numbers = #tpu.dot_dimension_numbers<[1], [0], [0], [1], [0, 0, 1, 1], [], []>} : vector<36x32xf32>, vector<32x256xf32>, vector<36x256xf32> -> vector<36x256xf32>
    %9 = vector.extract_strided_slice %3 {offsets = [0, 0], sizes = [36, 256], strides = [1, 1]} : vector<72x256xf32> to vector<36x256xf32>
    %10 = arith.mulf %8, %9 : vector<36x256xf32>
    %cst_10 = arith.constant dense<0.000000e+00> : vector<256xf32>
    %11 = vector.multi_reduction <add>, %10, %cst_10 [0] : vector<36x256xf32> to vector<256xf32>
    %12 = vector.shape_cast %11 : vector<256xf32> to vector<1x256xf32>
    %13 = vector.extract_strided_slice %4 {offsets = [36, 0], sizes = [36, 32], strides = [1, 1]} : vector<288x32xf32> to vector<36x32xf32>
    %cst_11 = arith.constant dense<0.000000e+00> : vector<36x256xf32>
    %14 = tpu.matmul %13, %1, %cst_11 {dimension_numbers = #tpu.dot_dimension_numbers<[1], [0], [0], [1], [0, 0, 1, 1], [], []>} : vector<36x32xf32>, vector<32x256xf32>, vector<36x256xf32> -> vector<36x256xf32>
    %15 = vector.extract_strided_slice %3 {offsets = [0, 0], sizes = [36, 256], strides = [1, 1]} : vector<72x256xf32> to vector<36x256xf32>
    %16 = arith.mulf %14, %15 : vector<36x256xf32>
    %cst_12 = arith.constant dense<0.000000e+00> : vector<256xf32>
    %17 = vector.multi_reduction <add>, %16, %cst_12 [0] : vector<36x256xf32> to vector<256xf32>
    %18 = vector.shape_cast %17 : vector<256xf32> to vector<1x256xf32>
    %19 = vector.extract_strided_slice %4 {offsets = [72, 0], sizes = [36, 32], strides = [1, 1]} : vector<288x32xf32> to vector<36x32xf32>
    %cst_13 = arith.constant dense<0.000000e+00> : vector<36x256xf32>
    %20 = tpu.matmul %19, %1, %cst_13 {dimension_numbers = #tpu.dot_dimension_numbers<[1], [0], [0], [1], [0, 0, 1, 1], [], []>} : vector<36x32xf32>, vector<32x256xf32>, vector<36x256xf32> -> vector<36x256xf32>
    %21 = vector.extract_strided_slice %3 {offsets = [0, 0], sizes = [36, 256], strides = [1, 1]} : vector<72x256xf32> to vector<36x256xf32>
    %22 = arith.mulf %20, %21 : vector<36x256xf32>
    %cst_14 = arith.constant dense<0.000000e+00> : vector<256xf32>
    %23 = vector.multi_reduction <add>, %22, %cst_14 [0] : vector<36x256xf32> to vector<256xf32>
    %24 = vector.shape_cast %23 : vector<256xf32> to vector<1x256xf32>
    %25 = vector.extract_strided_slice %4 {offsets = [108, 0], sizes = [36, 32], strides = [1, 1]} : vector<288x32xf32> to vector<36x32xf32>
    %cst_15 = arith.constant dense<0.000000e+00> : vector<36x256xf32>
    %26 = tpu.matmul %25, %1, %cst_15 {dimension_numbers = #tpu.dot_dimension_numbers<[1], [0], [0], [1], [0, 0, 1, 1], [], []>} : vector<36x32xf32>, vector<32x256xf32>, vector<36x256xf32> -> vector<36x256xf32>
    %27 = vector.extract_strided_slice %3 {offsets = [0, 0], sizes = [36, 256], strides = [1, 1]} : vector<72x256xf32> to vector<36x256xf32>
    %28 = arith.mulf %26, %27 : vector<36x256xf32>
    %cst_16 = arith.constant dense<0.000000e+00> : vector<256xf32>
    %29 = vector.multi_reduction <add>, %28, %cst_16 [0] : vector<36x256xf32> to vector<256xf32>
    %30 = vector.shape_cast %29 : vector<256xf32> to vector<1x256xf32>
    %31 = vector.extract_strided_slice %4 {offsets = [144, 0], sizes = [36, 32], strides = [1, 1]} : vector<288x32xf32> to vector<36x32xf32>
    %cst_17 = arith.constant dense<0.000000e+00> : vector<36x256xf32>
    %32 = tpu.matmul %31, %1, %cst_17 {dimension_numbers = #tpu.dot_dimension_numbers<[1], [0], [0], [1], [0, 0, 1, 1], [], []>} : vector<36x32xf32>, vector<32x256xf32>, vector<36x256xf32> -> vector<36x256xf32>
    %33 = vector.extract_strided_slice %3 {offsets = [36, 0], sizes = [36, 256], strides = [1, 1]} : vector<72x256xf32> to vector<36x256xf32>
    %34 = arith.mulf %32, %33 : vector<36x256xf32>
    %cst_18 = arith.constant dense<0.000000e+00> : vector<256xf32>
    %35 = vector.multi_reduction <add>, %34, %cst_18 [0] : vector<36x256xf32> to vector<256xf32>
    %36 = vector.shape_cast %35 : vector<256xf32> to vector<1x256xf32>
    %37 = vector.extract_strided_slice %4 {offsets = [180, 0], sizes = [36, 32], strides = [1, 1]} : vector<288x32xf32> to vector<36x32xf32>
    %cst_19 = arith.constant dense<0.000000e+00> : vector<36x256xf32>
    %38 = tpu.matmul %37, %1, %cst_19 {dimension_numbers = #tpu.dot_dimension_numbers<[1], [0], [0], [1], [0, 0, 1, 1], [], []>} : vector<36x32xf32>, vector<32x256xf32>, vector<36x256xf32> -> vector<36x256xf32>
    %39 = vector.extract_strided_slice %3 {offsets = [36, 0], sizes = [36, 256], strides = [1, 1]} : vector<72x256xf32> to vector<36x256xf32>
    %40 = arith.mulf %38, %39 : vector<36x256xf32>
    %cst_20 = arith.constant dense<0.000000e+00> : vector<256xf32>
    %41 = vector.multi_reduction <add>, %40, %cst_20 [0] : vector<36x256xf32> to vector<256xf32>
    %42 = vector.shape_cast %41 : vector<256xf32> to vector<1x256xf32>
    %43 = vector.extract_strided_slice %4 {offsets = [216, 0], sizes = [36, 32], strides = [1, 1]} : vector<288x32xf32> to vector<36x32xf32>
    %cst_21 = arith.constant dense<0.000000e+00> : vector<36x256xf32>
    %44 = tpu.matmul %43, %1, %cst_21 {dimension_numbers = #tpu.dot_dimension_numbers<[1], [0], [0], [1], [0, 0, 1, 1], [], []>} : vector<36x32xf32>, vector<32x256xf32>, vector<36x256xf32> -> vector<36x256xf32>
    %45 = vector.extract_strided_slice %3 {offsets = [36, 0], sizes = [36, 256], strides = [1, 1]} : vector<72x256xf32> to vector<36x256xf32>
    %46 = arith.mulf %44, %45 : vector<36x256xf32>
    %cst_22 = arith.constant dense<0.000000e+00> : vector<256xf32>
    %47 = vector.multi_reduction <add>, %46, %cst_22 [0] : vector<36x256xf32> to vector<256xf32>
    %48 = vector.shape_cast %47 : vector<256xf32> to vector<1x256xf32>
    %49 = vector.extract_strided_slice %4 {offsets = [252, 0], sizes = [36, 32], strides = [1, 1]} : vector<288x32xf32> to vector<36x32xf32>
    %cst_23 = arith.constant dense<0.000000e+00> : vector<36x256xf32>
    %50 = tpu.matmul %49, %1, %cst_23 {dimension_numbers = #tpu.dot_dimension_numbers<[1], [0], [0], [1], [0, 0, 1, 1], [], []>} : vector<36x32xf32>, vector<32x256xf32>, vector<36x256xf32> -> vector<36x256xf32>
    %51 = vector.extract_strided_slice %3 {offsets = [36, 0], sizes = [36, 256], strides = [1, 1]} : vector<72x256xf32> to vector<36x256xf32>
    %52 = arith.mulf %50, %51 : vector<36x256xf32>
    %cst_24 = arith.constant dense<0.000000e+00> : vector<256xf32>
    %53 = vector.multi_reduction <add>, %52, %cst_24 [0] : vector<36x256xf32> to vector<256xf32>
    %54 = vector.shape_cast %53 : vector<256xf32> to vector<1x256xf32>
    %55 = tpu.concatenate %12, %18, %24, %30, %36, %42, %48, %54 in 0 : vector<1x256xf32>, vector<1x256xf32>, vector<1x256xf32>, vector<1x256xf32>, vector<1x256xf32>, vector<1x256xf32>, vector<1x256xf32>, vector<1x256xf32> -> vector<8x256xf32>
    %56 = arith.addf %55, %6 : vector<8x256xf32>
    %c0_25 = arith.constant 0 : index
    %c0_26 = arith.constant 0 : index
    %57 = vector.load %arg7[%c0_25, %c0_26] : memref<8x1xf32, #tpu.memory_space<vmem>>, vector<8x1xf32>
    %58 = vector.broadcast %57 : vector<8x1xf32> to vector<8x256xf32>
    %59 = arith.mulf %56, %58 : vector<8x256xf32>
    %c0_27 = arith.constant 0 : index
    %c0_28 = arith.constant 0 : index
    %c0_29 = arith.constant 0 : index
    %60 = vector.load %arg4[%c0_27, %c0_28, %c0_29] : memref<1x8x256xf32, #tpu.memory_space<vmem>>, vector<1x8x256xf32>
    %61 = vector.shape_cast %60 : vector<1x8x256xf32> to vector<8x256xf32>
    %62 = arith.addf %59, %61 : vector<8x256xf32>
    %c0_30 = arith.constant 0 : index
    %c0_31 = arith.constant 0 : index
    %c0_32 = arith.constant 0 : index
    %63 = vector.load %arg8[%c0_30, %c0_31, %c0_32] : memref<1x8x256xf32, #tpu.memory_space<vmem>>, vector<1x8x256xf32>
    %64 = vector.shape_cast %63 : vector<1x8x256xf32> to vector<8x256xf32>
    %65 = vector.shape_cast %62 : vector<8x256xf32> to vector<1x8x256xf32>
    tpu.vector_store %arg8[%c0_30, %c0_31, %c0_32], %65 {strides = array<i32>} : memref<1x8x256xf32, #tpu.memory_space<vmem>>, vector<1x8x256xf32>,
    return
  }
  func.func @transform_0(%arg0: i32, %arg1: i32) -> (i32, i32, i32) {
    %c0_i32 = arith.constant 0 : i32
    %c0_i32_0 = arith.constant 0 : i32
    return %arg0, %c0_i32, %arg1 : i32, i32, i32
  }
  func.func @transform_1(%arg0: i32, %arg1: i32) -> (i32, i32, i32) {
    %c0_i32 = arith.constant 0 : i32
    %c0_i32_0 = arith.constant 0 : i32
    return %arg0, %c0_i32, %arg1 : i32, i32, i32
  }
  func.func @transform_2(%arg0: i32, %arg1: i32) -> (i32, i32, i32) {
    %c0_i32 = arith.constant 0 : i32
    %c0_i32_0 = arith.constant 0 : i32
    return %arg0, %c0_i32, %arg1 : i32, i32, i32
  }
  func.func @transform_3(%arg0: i32, %arg1: i32) -> (i32, i32) {
    %c0_i32 = arith.constant 0 : i32
    %c0_i32_0 = arith.constant 0 : i32
    %c0_i32_1 = arith.constant 0 : i32
    return %c0_i32, %c0_i32_0 : i32, i32
  }
  func.func @transform_4(%arg0: i32, %arg1: i32) -> (i32, i32) {
    %c0_i32 = arith.constant 0 : i32
    %c0_i32_0 = arith.constant 0 : i32
    %c0_i32_1 = arith.constant 0 : i32
    return %c0_i32, %c0_i32_0 : i32, i32
  }
  func.func @transform_5(%arg0: i32, %arg1: i32) -> (i32, i32) {
    %c0_i32 = arith.constant 0 : i32
    %c0_i32_0 = arith.constant 0 : i32
    %c0_i32_1 = arith.constant 0 : i32
    return %c0_i32, %c0_i32_0 : i32, i32
  }
  func.func @transform_6(%arg0: i32, %arg1: i32) -> (i32, i32, i32) {
    %c0_i32 = arith.constant 0 : i32
    %c0_i32_0 = arith.constant 0 : i32
    return %arg0, %c0_i32, %arg1 : i32, i32, i32
  }
}

module attributes {stable_mosaic.version = 11 : i64} {
  func.func @_post_kernel(%arg0: i32, %arg1: i32, %arg2: memref<1x8x256xf32, #tpu.memory_space<vmem>>, %arg3: memref<1x8x256xf32, #tpu.memory_space<vmem>>, %arg4: memref<1x8x1xf32, #tpu.memory_space<vmem>>, %arg5: memref<1x8x1xf32, #tpu.memory_space<vmem>>, %arg6: memref<1x8x256xf32, #tpu.memory_space<vmem>>, %arg7: memref<8x8xf32, #tpu.memory_space<vmem>>, %arg8: memref<8x1xf32, #tpu.memory_space<vmem>>, %arg9: memref<8x1xf32, #tpu.memory_space<vmem>>, %arg10: memref<8x1xf32, #tpu.memory_space<vmem>>, %arg11: memref<8x1xf32, #tpu.memory_space<vmem>>, %arg12: memref<16x8xf32, #tpu.memory_space<vmem>>, %arg13: memref<16x1xf32, #tpu.memory_space<vmem>>, %arg14: memref<8x8xf32, #tpu.memory_space<vmem>>, %arg15: memref<8x1xf32, #tpu.memory_space<vmem>>, %arg16: memref<8x1xf32, #tpu.memory_space<vmem>>, %arg17: memref<1x8x256xf32, #tpu.memory_space<vmem>>) attributes {dimension_semantics = [#tpu.dimension_semantics<parallel>, #tpu.dimension_semantics<parallel>], iteration_bounds = array<i64: 2, 1>, scalar_prefetch = 0 : i64, scratch_operands = 0 : i64, tpu.core_type = #tpu.core_type<tc>, window_params = [{transform_indices = @transform_0, window_bounds = array<i64: 1, 8, 256>}, {transform_indices = @transform_1, window_bounds = array<i64: 1, 8, 256>}, {transform_indices = @transform_2, window_bounds = array<i64: 1, 8, 1>}, {transform_indices = @transform_3, window_bounds = array<i64: 1, 8, 1>}, {transform_indices = @transform_4, window_bounds = array<i64: 1, 8, 256>}, {pipeline_mode = #tpu.pipeline_mode<synchronous>, transform_indices = @transform_5, window_bounds = array<i64: 8, 8>}, {pipeline_mode = #tpu.pipeline_mode<synchronous>, transform_indices = @transform_6, window_bounds = array<i64: 8, 1>}, {pipeline_mode = #tpu.pipeline_mode<synchronous>, transform_indices = @transform_7, window_bounds = array<i64: 8, 1>}, {pipeline_mode = #tpu.pipeline_mode<synchronous>, transform_indices = @transform_8, window_bounds = array<i64: 8, 1>}, {pipeline_mode = #tpu.pipeline_mode<synchronous>, transform_indices = @transform_9, window_bounds = array<i64: 8, 1>}, {pipeline_mode = #tpu.pipeline_mode<synchronous>, transform_indices = @transform_10, window_bounds = array<i64: 16, 8>}, {pipeline_mode = #tpu.pipeline_mode<synchronous>, transform_indices = @transform_11, window_bounds = array<i64: 16, 1>}, {pipeline_mode = #tpu.pipeline_mode<synchronous>, transform_indices = @transform_12, window_bounds = array<i64: 8, 8>}, {pipeline_mode = #tpu.pipeline_mode<synchronous>, transform_indices = @transform_13, window_bounds = array<i64: 8, 1>}, {pipeline_mode = #tpu.pipeline_mode<synchronous>, transform_indices = @transform_14, window_bounds = array<i64: 8, 1>}, {transform_indices = @transform_15, window_bounds = array<i64: 1, 8, 256>}]} {
    %c0 = arith.constant 0 : index
    %c0_0 = arith.constant 0 : index
    %c0_1 = arith.constant 0 : index
    %0 = vector.load %arg2[%c0, %c0_0, %c0_1] : memref<1x8x256xf32, #tpu.memory_space<vmem>>, vector<1x8x256xf32>
    %1 = vector.shape_cast %0 : vector<1x8x256xf32> to vector<8x256xf32>
    %c0_2 = arith.constant 0 : index
    %c0_3 = arith.constant 0 : index
    %c0_4 = arith.constant 0 : index
    %2 = vector.load %arg3[%c0_2, %c0_3, %c0_4] : memref<1x8x256xf32, #tpu.memory_space<vmem>>, vector<1x8x256xf32>
    %3 = vector.shape_cast %2 : vector<1x8x256xf32> to vector<8x256xf32>
    %4 = arith.mulf %1, %3 : vector<8x256xf32>
    %c0_5 = arith.constant 0 : index
    %c0_6 = arith.constant 0 : index
    %c0_7 = arith.constant 0 : index
    %5 = vector.load %arg4[%c0_5, %c0_6, %c0_7] : memref<1x8x1xf32, #tpu.memory_space<vmem>>, vector<1x8x1xf32>
    %6 = vector.shape_cast %5 : vector<1x8x1xf32> to vector<8x1xf32>
    %7 = vector.broadcast %6 : vector<8x1xf32> to vector<8x256xf32>
    %8 = arith.mulf %4, %7 : vector<8x256xf32>
    %c0_8 = arith.constant 0 : index
    %c0_9 = arith.constant 0 : index
    %c0_10 = arith.constant 0 : index
    %9 = vector.load %arg5[%c0_8, %c0_9, %c0_10] : memref<1x8x1xf32, #tpu.memory_space<vmem>>, vector<1x8x1xf32>
    %10 = vector.shape_cast %9 : vector<1x8x1xf32> to vector<8x1xf32>
    %11 = vector.broadcast %10 : vector<8x1xf32> to vector<8x256xf32>
    %12 = arith.mulf %8, %11 : vector<8x256xf32>
    %c0_11 = arith.constant 0 : index
    %c0_12 = arith.constant 0 : index
    %c0_13 = arith.constant 0 : index
    %13 = vector.load %arg6[%c0_11, %c0_12, %c0_13] : memref<1x8x256xf32, #tpu.memory_space<vmem>>, vector<1x8x256xf32>
    %14 = vector.shape_cast %13 : vector<1x8x256xf32> to vector<8x256xf32>
    %c0_14 = arith.constant 0 : index
    %c0_15 = arith.constant 0 : index
    %15 = vector.load %arg7[%c0_14, %c0_15] : memref<8x8xf32, #tpu.memory_space<vmem>>, vector<8x8xf32>
    %cst = arith.constant dense<0.000000e+00> : vector<8x256xf32>
    %16 = tpu.matmul %15, %12, %cst {dimension_numbers = #tpu.dot_dimension_numbers<[1], [0], [0], [1], [0, 0, 1, 1], [], []>} : vector<8x8xf32>, vector<8x256xf32>, vector<8x256xf32> -> vector<8x256xf32>
    %c0_16 = arith.constant 0 : index
    %c0_17 = arith.constant 0 : index
    %17 = vector.load %arg8[%c0_16, %c0_17] : memref<8x1xf32, #tpu.memory_space<vmem>>, vector<8x1xf32>
    %18 = vector.broadcast %17 : vector<8x1xf32> to vector<8x256xf32>
    %19 = arith.addf %16, %18 : vector<8x256xf32>
    %c0_18 = arith.constant 0 : index
    %c0_19 = arith.constant 0 : index
    %20 = vector.load %arg9[%c0_18, %c0_19] : memref<8x1xf32, #tpu.memory_space<vmem>>, vector<8x1xf32>
    %21 = vector.broadcast %20 : vector<8x1xf32> to vector<8x256xf32>
    %22 = arith.mulf %19, %21 : vector<8x256xf32>
    %23 = arith.addf %14, %22 : vector<8x256xf32>
    %cst_20 = arith.constant dense<0.000000e+00> : vector<256xf32>
    %24 = vector.multi_reduction <add>, %23, %cst_20 [0] : vector<8x256xf32> to vector<256xf32>
    %25 = vector.shape_cast %24 : vector<256xf32> to vector<1x256xf32>
    %cst_21 = arith.constant 8.000000e+00 : f32
    %26 = vector.broadcast %cst_21 : f32 to vector<1x256xf32>
    %27 = arith.divf %25, %26 : vector<1x256xf32>
    %28 = vector.broadcast %27 : vector<1x256xf32> to vector<8x256xf32>
    %29 = arith.subf %23, %28 : vector<8x256xf32>
    %30 = arith.mulf %29, %29 : vector<8x256xf32>
    %cst_22 = arith.constant dense<0.000000e+00> : vector<256xf32>
    %31 = vector.multi_reduction <add>, %30, %cst_22 [0] : vector<8x256xf32> to vector<256xf32>
    %32 = vector.shape_cast %31 : vector<256xf32> to vector<1x256xf32>
    %cst_23 = arith.constant 8.000000e+00 : f32
    %33 = vector.broadcast %cst_23 : f32 to vector<1x256xf32>
    %34 = arith.divf %32, %33 : vector<1x256xf32>
    %cst_24 = arith.constant 9.99999997E-7 : f32
    %35 = vector.broadcast %cst_24 : f32 to vector<1x256xf32>
    %36 = arith.addf %34, %35 : vector<1x256xf32>
    %37 = math.rsqrt %36 : vector<1x256xf32>
    %38 = vector.broadcast %37 : vector<1x256xf32> to vector<8x256xf32>
    %39 = arith.mulf %29, %38 : vector<8x256xf32>
    %c0_25 = arith.constant 0 : index
    %c0_26 = arith.constant 0 : index
    %40 = vector.load %arg10[%c0_25, %c0_26] : memref<8x1xf32, #tpu.memory_space<vmem>>, vector<8x1xf32>
    %41 = vector.broadcast %40 : vector<8x1xf32> to vector<8x256xf32>
    %42 = arith.mulf %39, %41 : vector<8x256xf32>
    %c0_27 = arith.constant 0 : index
    %c0_28 = arith.constant 0 : index
    %43 = vector.load %arg11[%c0_27, %c0_28] : memref<8x1xf32, #tpu.memory_space<vmem>>, vector<8x1xf32>
    %44 = vector.broadcast %43 : vector<8x1xf32> to vector<8x256xf32>
    %45 = arith.addf %42, %44 : vector<8x256xf32>
    %c0_29 = arith.constant 0 : index
    %c0_30 = arith.constant 0 : index
    %46 = vector.load %arg12[%c0_29, %c0_30] : memref<16x8xf32, #tpu.memory_space<vmem>>, vector<16x8xf32>
    %cst_31 = arith.constant dense<0.000000e+00> : vector<16x256xf32>
    %47 = tpu.matmul %46, %45, %cst_31 {dimension_numbers = #tpu.dot_dimension_numbers<[1], [0], [0], [1], [0, 0, 1, 1], [], []>} : vector<16x8xf32>, vector<8x256xf32>, vector<16x256xf32> -> vector<16x256xf32>
    %c0_32 = arith.constant 0 : index
    %c0_33 = arith.constant 0 : index
    %48 = vector.load %arg13[%c0_32, %c0_33] : memref<16x1xf32, #tpu.memory_space<vmem>>, vector<16x1xf32>
    %49 = vector.broadcast %48 : vector<16x1xf32> to vector<16x256xf32>
    %50 = arith.addf %47, %49 : vector<16x256xf32>
    %51 = vector.extract_strided_slice %50 {offsets = [0, 0], sizes = [8, 256], strides = [1, 1]} : vector<16x256xf32> to vector<8x256xf32>
    %52 = vector.extract_strided_slice %50 {offsets = [8, 0], sizes = [8, 256], strides = [1, 1]} : vector<16x256xf32> to vector<8x256xf32>
    %53 = arith.mulf %51, %52 : vector<8x256xf32>
    %c0_34 = arith.constant 0 : index
    %c0_35 = arith.constant 0 : index
    %54 = vector.load %arg14[%c0_34, %c0_35] : memref<8x8xf32, #tpu.memory_space<vmem>>, vector<8x8xf32>
    %cst_36 = arith.constant dense<0.000000e+00> : vector<8x256xf32>
    %55 = tpu.matmul %54, %53, %cst_36 {dimension_numbers = #tpu.dot_dimension_numbers<[1], [0], [0], [1], [0, 0, 1, 1], [], []>} : vector<8x8xf32>, vector<8x256xf32>, vector<8x256xf32> -> vector<8x256xf32>
    %c0_37 = arith.constant 0 : index
    %c0_38 = arith.constant 0 : index
    %56 = vector.load %arg15[%c0_37, %c0_38] : memref<8x1xf32, #tpu.memory_space<vmem>>, vector<8x1xf32>
    %57 = vector.broadcast %56 : vector<8x1xf32> to vector<8x256xf32>
    %58 = arith.addf %55, %57 : vector<8x256xf32>
    %c0_39 = arith.constant 0 : index
    %c0_40 = arith.constant 0 : index
    %59 = vector.load %arg16[%c0_39, %c0_40] : memref<8x1xf32, #tpu.memory_space<vmem>>, vector<8x1xf32>
    %60 = vector.broadcast %59 : vector<8x1xf32> to vector<8x256xf32>
    %61 = arith.mulf %58, %60 : vector<8x256xf32>
    %62 = arith.addf %23, %61 : vector<8x256xf32>
    %c0_41 = arith.constant 0 : index
    %c0_42 = arith.constant 0 : index
    %c0_43 = arith.constant 0 : index
    %63 = vector.load %arg17[%c0_41, %c0_42, %c0_43] : memref<1x8x256xf32, #tpu.memory_space<vmem>>, vector<1x8x256xf32>
    %64 = vector.shape_cast %63 : vector<1x8x256xf32> to vector<8x256xf32>
    %65 = vector.shape_cast %62 : vector<8x256xf32> to vector<1x8x256xf32>
    tpu.vector_store %arg17[%c0_41, %c0_42, %c0_43], %65 {strides = array<i32>} : memref<1x8x256xf32, #tpu.memory_space<vmem>>, vector<1x8x256xf32>,
    return
  }
  func.func @transform_0(%arg0: i32, %arg1: i32) -> (i32, i32, i32) {
    %c0_i32 = arith.constant 0 : i32
    %c0_i32_0 = arith.constant 0 : i32
    return %arg0, %c0_i32, %arg1 : i32, i32, i32
  }
  func.func @transform_1(%arg0: i32, %arg1: i32) -> (i32, i32, i32) {
    %c0_i32 = arith.constant 0 : i32
    %c0_i32_0 = arith.constant 0 : i32
    return %arg0, %c0_i32, %arg1 : i32, i32, i32
  }
  func.func @transform_2(%arg0: i32, %arg1: i32) -> (i32, i32, i32) {
    %c0_i32 = arith.constant 0 : i32
    %c0_i32_0 = arith.constant 0 : i32
    %c0_i32_1 = arith.constant 0 : i32
    return %arg0, %c0_i32, %c0_i32_0 : i32, i32, i32
  }
  func.func @transform_3(%arg0: i32, %arg1: i32) -> (i32, i32, i32) {
    %c0_i32 = arith.constant 0 : i32
    %c0_i32_0 = arith.constant 0 : i32
    %c0_i32_1 = arith.constant 0 : i32
    return %arg0, %c0_i32, %c0_i32_0 : i32, i32, i32
  }
  func.func @transform_4(%arg0: i32, %arg1: i32) -> (i32, i32, i32) {
    %c0_i32 = arith.constant 0 : i32
    %c0_i32_0 = arith.constant 0 : i32
    return %arg0, %c0_i32, %arg1 : i32, i32, i32
  }
  func.func @transform_5(%arg0: i32, %arg1: i32) -> (i32, i32) {
    %c0_i32 = arith.constant 0 : i32
    %c0_i32_0 = arith.constant 0 : i32
    %c0_i32_1 = arith.constant 0 : i32
    return %c0_i32, %c0_i32_0 : i32, i32
  }
  func.func @transform_6(%arg0: i32, %arg1: i32) -> (i32, i32) {
    %c0_i32 = arith.constant 0 : i32
    %c0_i32_0 = arith.constant 0 : i32
    %c0_i32_1 = arith.constant 0 : i32
    return %c0_i32, %c0_i32_0 : i32, i32
  }
  func.func @transform_7(%arg0: i32, %arg1: i32) -> (i32, i32) {
    %c0_i32 = arith.constant 0 : i32
    %c0_i32_0 = arith.constant 0 : i32
    %c0_i32_1 = arith.constant 0 : i32
    return %c0_i32, %c0_i32_0 : i32, i32
  }
  func.func @transform_8(%arg0: i32, %arg1: i32) -> (i32, i32) {
    %c0_i32 = arith.constant 0 : i32
    %c0_i32_0 = arith.constant 0 : i32
    %c0_i32_1 = arith.constant 0 : i32
    return %c0_i32, %c0_i32_0 : i32, i32
  }
  func.func @transform_9(%arg0: i32, %arg1: i32) -> (i32, i32) {
    %c0_i32 = arith.constant 0 : i32
    %c0_i32_0 = arith.constant 0 : i32
    %c0_i32_1 = arith.constant 0 : i32
    return %c0_i32, %c0_i32_0 : i32, i32
  }
  func.func @transform_10(%arg0: i32, %arg1: i32) -> (i32, i32) {
    %c0_i32 = arith.constant 0 : i32
    %c0_i32_0 = arith.constant 0 : i32
    %c0_i32_1 = arith.constant 0 : i32
    return %c0_i32, %c0_i32_0 : i32, i32
  }
  func.func @transform_11(%arg0: i32, %arg1: i32) -> (i32, i32) {
    %c0_i32 = arith.constant 0 : i32
    %c0_i32_0 = arith.constant 0 : i32
    %c0_i32_1 = arith.constant 0 : i32
    return %c0_i32, %c0_i32_0 : i32, i32
  }
  func.func @transform_12(%arg0: i32, %arg1: i32) -> (i32, i32) {
    %c0_i32 = arith.constant 0 : i32
    %c0_i32_0 = arith.constant 0 : i32
    %c0_i32_1 = arith.constant 0 : i32
    return %c0_i32, %c0_i32_0 : i32, i32
  }
  func.func @transform_13(%arg0: i32, %arg1: i32) -> (i32, i32) {
    %c0_i32 = arith.constant 0 : i32
    %c0_i32_0 = arith.constant 0 : i32
    %c0_i32_1 = arith.constant 0 : i32
    return %c0_i32, %c0_i32_0 : i32, i32
  }
  func.func @transform_14(%arg0: i32, %arg1: i32) -> (i32, i32) {
    %c0_i32 = arith.constant 0 : i32
    %c0_i32_0 = arith.constant 0 : i32
    %c0_i32_1 = arith.constant 0 : i32
    return %c0_i32, %c0_i32_0 : i32, i32
  }
  func.func @transform_15(%arg0: i32, %arg1: i32) -> (i32, i32, i32) {
    %c0_i32 = arith.constant 0 : i32
    %c0_i32_0 = arith.constant 0 : i32
    return %arg0, %c0_i32, %arg1 : i32, i32, i32
  }
}

</mosaic_0001>

<llo_original>
// kernel: kbblock_forward.4
$region0: #{kbblock_forward.4}
  #allocation0 [shape = 'u32[]', space=smem, size = 0x4, offset = 0x4, fixed_abs, tag = 'smem constant byte address 0x4 - core index']
  #allocation1 [shape = 'u32[72,128]{1,0:T(1,128)}', space=vmem, size = 0x9000, scoped, tag = 'internal scratch']
  %s0 = inlined_call_operand.vmem [shape: f32[2,8,256], index: 0, kind: input, shape index: {}]
  %s1 = inlined_call_operand.vmem [shape: f32[8,1], index: 1, kind: input, shape index: {}]
  %s2 = inlined_call_operand.vmem [shape: f32[8,1], index: 2, kind: input, shape index: {}]
  %s3 = inlined_call_operand.hbm [shape: f32[8,8], index: 3, kind: input, shape index: {}]
  %s4 = inlined_call_operand.hbm [shape: f32[8,1], index: 4, kind: input, shape index: {}]
  %s5 = inlined_call_operand.hbm [shape: f32[8,8], index: 5, kind: input, shape index: {}]
  %s6 = inlined_call_operand.hbm [shape: f32[8,1], index: 6, kind: input, shape index: {}]
  %s7 = inlined_call_operand.hbm [shape: f32[32,8], index: 7, kind: input, shape index: {}]
  %s8 = inlined_call_operand.hbm [shape: f32[32,1], index: 8, kind: input, shape index: {}]
  %s9 = inlined_call_operand.vmem [shape: f32[2,8,256], index: 9, kind: output, shape index: {0}]
  %s10 = inlined_call_operand.vmem [shape: f32[2,8,256], index: 10, kind: output, shape index: {1}]
  %s11 = inlined_call_operand.vmem [shape: f32[2,8,256], index: 11, kind: output, shape index: {2}]
  %s12 = inlined_call_operand.vmem [shape: f32[2,32,256], index: 12, kind: output, shape index: {3}]
  %13 = xla_tuple %s9, %s10, %s11, %s12
  %s14 = sld [smem:[#allocation0]]
  $region117: #{kbblock_forward.4} parent=0
    _
  %s16 = ssub.s32 1, %s14
  %s17 = scalar_select 0, %s16, %s14
  $region1: #{kbblock_forward.4} parent=0
    #allocation2 [shape = 'u8[4096]{0}', space=vmem, size = 0x1000, scoped, tag = 'input window, operand 3, single buffered']
    #allocation3 [shape = 's32[2]{0}', space=sflag, size = 0x8, scoped, tag = 'scoped memory for kbblock_forward.4']
    #allocation4 [shape = 'u8[4096]{0}', space=vmem, size = 0x1000, scoped, tag = 'input window, operand 4, single buffered']
    #allocation5 [shape = 's32[1]{0}', space=sflag, size = 0x4, scoped, tag = 'scoped memory for kbblock_forward.4']
    #allocation6 [shape = 'u8[4096]{0}', space=vmem, size = 0x1000, scoped, tag = 'input window, operand 5, single buffered']
    #allocation7 [shape = 'u8[4096]{0}', space=vmem, size = 0x1000, scoped, tag = 'input window, operand 6, single buffered']
    #allocation8 [shape = 's32[1]{0}', space=sflag, size = 0x4, scoped, tag = 'scoped memory for kbblock_forward.4']
    #allocation9 [shape = 'u8[16384]{0}', space=vmem, size = 0x4000, scoped, tag = 'input window, operand 7, single buffered']
    #allocation10 [shape = 'u8[16384]{0}', space=vmem, size = 0x4000, scoped, tag = 'input window, operand 8, single buffered']
    #allocation11 [shape = 's32[1]{0}', space=sflag, size = 0x4, scoped, tag = 'scoped memory for kbblock_forward.4']
    %18 = vsyncpa [#allocation3], 0
    %19 = vsyncpa [#allocation5], 0
    %20 = vsyncpa [#allocation8], 0
    %21 = vsyncpa [#allocation11], 0
    loop: start=0, step=1, limit=4
    $region2: #{kbblock_forward.4} parent=1 // loop_pre_header
      _
    $region3: #{kbblock_forward.4} parent=1 // loop_header
      %s23 = sphi 0, %s27
      %p24 = scmp.ge.s32.totalorder %s23, 4
      %s30 = sphi 0, %s42
      %s31 = sphi 0, %s38
      %s32 = sphi 0, %s30
      %s33 = sphi 0, %s31
      %s34 = sphi 0, %s32
      %s35 = sphi 0, %s33
      %s47 = sphi 0, %s49
      %s50 = sphi 0, %s47
      %s51 = sphi 0, %s50
      %s67 = sphi 0, %s51
      %s71 = sphi 0, %s71
      %s73 = sphi 0, %s71
      %s74 = sphi 0, %s73
      %s88 = sphi 0, %s74
      %s92 = sphi 0, %s92
      %s94 = sphi 0, %s92
      %s95 = sphi 0, %s94
      %s109 = sphi 0, %s95
      %s113 = sphi 0, %s113
      %s115 = sphi 0, %s113
      %s116 = sphi 0, %s115
      %s130 = sphi 0, %s116
      %s134 = sphi 0, %s134
      %s136 = sphi 0, %s134
      %s137 = sphi 0, %s136
      %s151 = sphi 0, %s137
      %s155 = sphi 0, %s155
      %s157 = sphi 0, %s155
      %s158 = sphi 0, %s157
      %s172 = sphi 0, %s158
      %s176 = sphi 0, %s176
      %s178 = sphi 0, %s176
      %s179 = sphi 0, %s178
      %s193 = sphi 0, %s179
      %s197 = sphi 0, %s197
      %s199 = sphi 0, %s197
      %s200 = sphi 0, %s199
      %s214 = sphi 0, %s200
      %s218 = sphi 0, %s218
      %s220 = sphi 0, %s218
      %s221 = sphi 0, %s220
      %s235 = sphi 0, %s221
      %s243 = sphi 0, %s245
      %s246 = sphi 0, %s243
      %s247 = sphi 0, %s246
      %s263 = sphi 0, %s247
      %s271 = sphi 0, %s273
      %s274 = sphi 0, %s271
      %s275 = sphi 0, %s274
      %s291 = sphi 0, %s275
      %s299 = sphi 0, %s301
      %s302 = sphi 0, %s299
      %s303 = sphi 0, %s302
      %s319 = sphi 0, %s303
      %s327 = sphi 0, %s329
      %s330 = sphi 0, %s327
      %s331 = sphi 0, %s330
      %s347 = sphi 0, %s331
    $region4: #{kbblock_forward.4} parent=1 // loop_header_branch
      %26 = sbr.rel (%p24) target = $region8
    $region5: #{kbblock_forward.4} parent=1 // loop_body
      %s28 = ssub.s32 %s23, 1
      %s29 = ssub.s32 %s23, 2
      %s36 = sadd.s32 1, %s31
      %p37 = scmp.ge.s32.totalorder %s36, 1
      %s38 = scalar_select %p37, 0, %s36
      %s39 = sadd.s32 1, %s30
      %s40 = scalar_select %p37, %s39, %s30
      %p41 = scmp.ge.s32.totalorder %s40, 2
      %s42 = scalar_select %p41, 0, %s40
      %s43 = ssub.s32 %s30, %s42
      %s44 = ssub.s32 %s31, %s38
      %s45 = sor.u32 %s43, %s44
      %p46 = scmp.eq.s32.totalorder %s45, 0
      %s48 = sadd.s32 %s47, 1
      %s49 = scalar_select %p46, %s47, %s48
      %p52 = pneg %p46
      %p53 = scmp.eq.s32.totalorder %s23, 1
      %p54 = por %p52, %p53
      %p55 = scmp.ne.s32.totalorder %s47, %s50
      %p56 = scmp.eq.s32.totalorder %s23, 0
      %p57 = por %p55, %p56
      %p58 = scmp.ne.s32.totalorder %s47, %s50
      %p59 = scmp.eq.s32.totalorder %s28, 1
      %p60 = por %p58, %p59
      %p61 = scmp.ne.s32.totalorder %s50, %s51
      %p62 = scmp.eq.s32.totalorder %s28, 0
      %p63 = por %p61, %p62
      %p64 = scmp.ne.s32.totalorder %s50, %s51
      %p65 = scmp.eq.s32.totalorder %s29, 1
      %p66 = por %p64, %p65
      %p68 = scmp.ne.s32.totalorder %s51, %s67
      %p69 = scmp.eq.s32.totalorder %s29, 0
      %p70 = por %p68, %p69
      %s72 = sadd.s32 %s71, 1
      %p75 = scmp.eq.s32.totalorder %s23, 1
      %p76 = scmp.ne.s32.totalorder %s71, %s73
      %p77 = scmp.eq.s32.totalorder %s23, 0
      %p78 = por %p76, %p77
      %p79 = scmp.ne.s32.totalorder %s71, %s73
      %p80 = scmp.eq.s32.totalorder %s28, 1
      %p81 = por %p79, %p80
      %p82 = scmp.ne.s32.totalorder %s73, %s74
      %p83 = scmp.eq.s32.totalorder %s28, 0
      %p84 = por %p82, %p83
      %p85 = scmp.ne.s32.totalorder %s73, %s74
      %p86 = scmp.eq.s32.totalorder %s29, 1
      %p87 = por %p85, %p86
      %p89 = scmp.ne.s32.totalorder %s74, %s88
      %p90 = scmp.eq.s32.totalorder %s29, 0
      %p91 = por %p89, %p90
      %s93 = sadd.s32 %s92, 1
      %p96 = scmp.eq.s32.totalorder %s23, 1
      %p97 = scmp.ne.s32.totalorder %s92, %s94
      %p98 = scmp.eq.s32.totalorder %s23, 0
      %p99 = por %p97, %p98
      %p100 = scmp.ne.s32.totalorder %s92, %s94
      %p101 = scmp.eq.s32.totalorder %s28, 1
      %p102 = por %p100, %p101
      %p103 = scmp.ne.s32.totalorder %s94, %s95
      %p104 = scmp.eq.s32.totalorder %s28, 0
      %p105 = por %p103, %p104
      %p106 = scmp.ne.s32.totalorder %s94, %s95
      %p107 = scmp.eq.s32.totalorder %s29, 1
      %p108 = por %p106, %p107
      %p110 = scmp.ne.s32.totalorder %s95, %s109
      %p111 = scmp.eq.s32.totalorder %s29, 0
      %p112 = por %p110, %p111
      %s114 = sadd.s32 %s113, 1
      %p117 = scmp.eq.s32.totalorder %s23, 1
      %p118 = scmp.ne.s32.totalorder %s113, %s115
      %p119 = scmp.eq.s32.totalorder %s23, 0
      %p120 = por %p118, %p119
      %p121 = scmp.ne.s32.totalorder %s113, %s115
      %p122 = scmp.eq.s32.totalorder %s28, 1
      %p123 = por %p121, %p122
      %p124 = scmp.ne.s32.totalorder %s115, %s116
      %p125 = scmp.eq.s32.totalorder %s28, 0
      %p126 = por %p124, %p125
      %p127 = scmp.ne.s32.totalorder %s115, %s116
      %p128 = scmp.eq.s32.totalorder %s29, 1
      %p129 = por %p127, %p128
      %p131 = scmp.ne.s32.totalorder %s116, %s130
      %p132 = scmp.eq.s32.totalorder %s29, 0
      %p133 = por %p131, %p132
      %s135 = sadd.s32 %s134, 1
      %p138 = scmp.eq.s32.totalorder %s23, 1
      %p139 = scmp.ne.s32.totalorder %s134, %s136
      %p140 = scmp.eq.s32.totalorder %s23, 0
      %p141 = por %p139, %p140
      %p142 = scmp.ne.s32.totalorder %s134, %s136
      %p143 = scmp.eq.s32.totalorder %s28, 1
      %p144 = por %p142, %p143
      %p145 = scmp.ne.s32.totalorder %s136, %s137
      %p146 = scmp.eq.s32.totalorder %s28, 0
      %p147 = por %p145, %p146
      %p148 = scmp.ne.s32.totalorder %s136, %s137
      %p149 = scmp.eq.s32.totalorder %s29, 1
      %p150 = por %p148, %p149
      %p152 = scmp.ne.s32.totalorder %s137, %s151
      %p153 = scmp.eq.s32.totalorder %s29, 0
      %p154 = por %p152, %p153
      %s156 = sadd.s32 %s155, 1
      %p159 = scmp.eq.s32.totalorder %s23, 1
      %p160 = scmp.ne.s32.totalorder %s155, %s157
      %p161 = scmp.eq.s32.totalorder %s23, 0
      %p162 = por %p160, %p161
      %p163 = scmp.ne.s32.totalorder %s155, %s157
      %p164 = scmp.eq.s32.totalorder %s28, 1
      %p165 = por %p163, %p164
      %p166 = scmp.ne.s32.totalorder %s157, %s158
      %p167 = scmp.eq.s32.totalorder %s28, 0
      %p168 = por %p166, %p167
      %p169 = scmp.ne.s32.totalorder %s157, %s158
      %p170 = scmp.eq.s32.totalorder %s29, 1
      %p171 = por %p169, %p170
      %p173 = scmp.ne.s32.totalorder %s158, %s172
      %p174 = scmp.eq.s32.totalorder %s29, 0
      %p175 = por %p173, %p174
      %s177 = sadd.s32 %s176, 1
      %p180 = scmp.eq.s32.totalorder %s23, 1
      %p181 = scmp.ne.s32.totalorder %s176, %s178
      %p182 = scmp.eq.s32.totalorder %s23, 0
      %p183 = por %p181, %p182
      %p184 = scmp.ne.s32.totalorder %s176, %s178
      %p185 = scmp.eq.s32.totalorder %s28, 1
      %p186 = por %p184, %p185
      %p187 = scmp.ne.s32.totalorder %s178, %s179
      %p188 = scmp.eq.s32.totalorder %s28, 0
      %p189 = por %p187, %p188
      %p190 = scmp.ne.s32.totalorder %s178, %s179
      %p191 = scmp.eq.s32.totalorder %s29, 1
      %p192 = por %p190, %p191
      %p194 = scmp.ne.s32.totalorder %s179, %s193
      %p195 = scmp.eq.s32.totalorder %s29, 0
      %p196 = por %p194, %p195
      %s198 = sadd.s32 %s197, 1
      %p201 = scmp.eq.s32.totalorder %s23, 1
      %p202 = scmp.ne.s32.totalorder %s197, %s199
      %p203 = scmp.eq.s32.totalorder %s23, 0
      %p204 = por %p202, %p203
      %p205 = scmp.ne.s32.totalorder %s197, %s199
      %p206 = scmp.eq.s32.totalorder %s28, 1
      %p207 = por %p205, %p206
      %p208 = scmp.ne.s32.totalorder %s199, %s200
      %p209 = scmp.eq.s32.totalorder %s28, 0
      %p210 = por %p208, %p209
      %p211 = scmp.ne.s32.totalorder %s199, %s200
      %p212 = scmp.eq.s32.totalorder %s29, 1
      %p213 = por %p211, %p212
      %p215 = scmp.ne.s32.totalorder %s200, %s214
      %p216 = scmp.eq.s32.totalorder %s29, 0
      %p217 = por %p215, %p216
      %s219 = sadd.s32 %s218, 1
      %p222 = scmp.eq.s32.totalorder %s23, 1
      %p223 = scmp.ne.s32.totalorder %s218, %s220
      %p224 = scmp.eq.s32.totalorder %s23, 0
      %p225 = por %p223, %p224
      %p226 = scmp.ne.s32.totalorder %s218, %s220
      %p227 = scmp.eq.s32.totalorder %s28, 1
      %p228 = por %p226, %p227
      %p229 = scmp.ne.s32.totalorder %s220, %s221
      %p230 = scmp.eq.s32.totalorder %s28, 0
      %p231 = por %p229, %p230
      %p232 = scmp.ne.s32.totalorder %s220, %s221
      %p233 = scmp.eq.s32.totalorder %s29, 1
      %p234 = por %p232, %p233
      %p236 = scmp.ne.s32.totalorder %s221, %s235
      %p237 = scmp.eq.s32.totalorder %s29, 0
      %p238 = por %p236, %p237
      %s239 = ssub.s32 %s30, %s42
      %s240 = ssub.s32 %s31, %s38
      %s241 = sor.u32 %s239, %s240
      %p242 = scmp.eq.s32.totalorder %s241, 0
      %s244 = sadd.s32 %s243, 1
      %s245 = scalar_select %p242, %s243, %s244
      %p248 = pneg %p242
      %p249 = scmp.eq.s32.totalorder %s23, 1
      %p250 = por %p248, %p249
      %p251 = scmp.ne.s32.totalorder %s243, %s246
      %p252 = scmp.eq.s32.totalorder %s23, 0
      %p253 = por %p251, %p252
      %p254 = scmp.ne.s32.totalorder %s243, %s246
      %p255 = scmp.eq.s32.totalorder %s28, 1
      %p256 = por %p254, %p255
      %p257 = scmp.ne.s32.totalorder %s246, %s247
      %p258 = scmp.eq.s32.totalorder %s28, 0
      %p259 = por %p257, %p258
      %p260 = scmp.ne.s32.totalorder %s246, %s247
      %p261 = scmp.eq.s32.totalorder %s29, 1
      %p262 = por %p260, %p261
      %p264 = scmp.ne.s32.totalorder %s247, %s263
      %p265 = scmp.eq.s32.totalorder %s29, 0
      %p266 = por %p264, %p265
      %s267 = ssub.s32 %s30, %s42
      %s268 = ssub.s32 %s31, %s38
      %s269 = sor.u32 %s267, %s268
      %p270 = scmp.eq.s32.totalorder %s269, 0
      %s272 = sadd.s32 %s271, 1
      %s273 = scalar_select %p270, %s271, %s272
      %p276 = pneg %p270
      %p277 = scmp.eq.s32.totalorder %s23, 1
      %p278 = por %p276, %p277
      %p279 = scmp.ne.s32.totalorder %s271, %s274
      %p280 = scmp.eq.s32.totalorder %s23, 0
      %p281 = por %p279, %p280
      %p282 = scmp.ne.s32.totalorder %s271, %s274
      %p283 = scmp.eq.s32.totalorder %s28, 1
      %p284 = por %p282, %p283
      %p285 = scmp.ne.s32.totalorder %s274, %s275
      %p286 = scmp.eq.s32.totalorder %s28, 0
      %p287 = por %p285, %p286
      %p288 = scmp.ne.s32.totalorder %s274, %s275
      %p289 = scmp.eq.s32.totalorder %s29, 1
      %p290 = por %p288, %p289
      %p292 = scmp.ne.s32.totalorder %s275, %s291
      %p293 = scmp.eq.s32.totalorder %s29, 0
      %p294 = por %p292, %p293
      %s295 = ssub.s32 %s30, %s42
      %s296 = ssub.s32 %s31, %s38
      %s297 = sor.u32 %s295, %s296
      %p298 = scmp.eq.s32.totalorder %s297, 0
      %s300 = sadd.s32 %s299, 1
      %s301 = scalar_select %p298, %s299, %s300
      %p304 = pneg %p298
      %p305 = scmp.eq.s32.totalorder %s23, 1
      %p306 = por %p304, %p305
      %p307 = scmp.ne.s32.totalorder %s299, %s302
      %p308 = scmp.eq.s32.totalorder %s23, 0
      %p309 = por %p307, %p308
      %p310 = scmp.ne.s32.totalorder %s299, %s302
      %p311 = scmp.eq.s32.totalorder %s28, 1
      %p312 = por %p310, %p311
      %p313 = scmp.ne.s32.totalorder %s302, %s303
      %p314 = scmp.eq.s32.totalorder %s28, 0
      %p315 = por %p313, %p314
      %p316 = scmp.ne.s32.totalorder %s302, %s303
      %p317 = scmp.eq.s32.totalorder %s29, 1
      %p318 = por %p316, %p317
      %p320 = scmp.ne.s32.totalorder %s303, %s319
      %p321 = scmp.eq.s32.totalorder %s29, 0
      %p322 = por %p320, %p321
      %s323 = ssub.s32 %s30, %s42
      %s324 = ssub.s32 %s31, %s38
      %s325 = sor.u32 %s323, %s324
      %p326 = scmp.eq.s32.totalorder %s325, 0
      %s328 = sadd.s32 %s327, 1
      %s329 = scalar_select %p326, %s327, %s328
      %p332 = pneg %p326
      %p333 = scmp.eq.s32.totalorder %s23, 1
      %p334 = por %p332, %p333
      %p335 = scmp.ne.s32.totalorder %s327, %s330
      %p336 = scmp.eq.s32.totalorder %s23, 0
      %p337 = por %p335, %p336
      %p338 = scmp.ne.s32.totalorder %s327, %s330
      %p339 = scmp.eq.s32.totalorder %s28, 1
      %p340 = por %p338, %p339
      %p341 = scmp.ne.s32.totalorder %s330, %s331
      %p342 = scmp.eq.s32.totalorder %s28, 0
      %p343 = por %p341, %p342
      %p344 = scmp.ne.s32.totalorder %s330, %s331
      %p345 = scmp.eq.s32.totalorder %s29, 1
      %p346 = por %p344, %p345
      %p348 = scmp.ne.s32.totalorder %s331, %s347
      %p349 = scmp.eq.s32.totalorder %s29, 0
      %p350 = por %p348, %p349
      %p351 = scmp.le.s32.totalorder 1, %s23
      %p352 = scmp.lt.s32.totalorder %s23, 3
      %p353 = pnand %p351, %p352
      %p354 = pneg %p353
      // Predicated region
      $region9: #{kbblock_forward.4} parent=5 // pred_check
        _
      $region10: #{kbblock_forward.4} parent=5 // pred_check_branch
        %356 = sbr.rel (%p353) target = $region12
      $region11: #{kbblock_forward.4} parent=5 // pred_region
        %s357 = ssub.s32 %s23, 1
        // Predicated region
        $region13: #{kbblock_forward.4} parent=11 // pred_check
          %p358 = pneg %p84
        $region14: #{kbblock_forward.4} parent=11 // pred_check_branch
          %360 = sbr.rel (%p358) target = $region16
        $region15: #{kbblock_forward.4} parent=11 // pred_region
          _
        $region16: #{kbblock_forward.4} parent=11 // pred_fallthru
          _
        // Predicated region
        $region17: #{kbblock_forward.4} parent=11 // pred_check
          %p361 = pneg %p105
        $region18: #{kbblock_forward.4} parent=11 // pred_check_branch
          %363 = sbr.rel (%p361) target = $region20
        $region19: #{kbblock_forward.4} parent=11 // pred_region
          _
        $region20: #{kbblock_forward.4} parent=11 // pred_fallthru
          _
        // Predicated region
        $region21: #{kbblock_forward.4} parent=11 // pred_check
          %p364 = pneg %p126
        $region22: #{kbblock_forward.4} parent=11 // pred_check_branch
          %366 = sbr.rel (%p364) target = $region24
        $region23: #{kbblock_forward.4} parent=11 // pred_region
          %368 = vsyncadd [#allocation3], 0
          %s370 = sshll.u32 %s3, 4
          %s371 = int_to_ptr.hbm [resolvable:$true] %s370
          %s372 = sshll.u32 [#allocation2], 4
          %s373 = int_to_ptr.vmem [resolvable:$true] %s372
          %375 = dma.hbm_to_vmem [thread:$0]  %s371, 128, %s373, [#allocation3]
        $region24: #{kbblock_forward.4} parent=11 // pred_fallthru
          _
        // Predicated region
        $region25: #{kbblock_forward.4} parent=11 // pred_check
          %p376 = pneg %p147
        $region26: #{kbblock_forward.4} parent=11 // pred_check_branch
          %378 = sbr.rel (%p376) target = $region28
        $region27: #{kbblock_forward.4} parent=11 // pred_region
          %380 = vsyncadd [#allocation5], 0
          %s382 = sshll.u32 %s4, 4
          %s383 = int_to_ptr.hbm [resolvable:$true] %s382
          %s384 = sshll.u32 [#allocation4], 4
          %s385 = int_to_ptr.vmem [resolvable:$true] %s384
          %387 = dma.hbm_to_vmem [thread:$0]  %s383, 128, %s385, [#allocation5]
        $region28: #{kbblock_forward.4} parent=11 // pred_fallthru
          _
        // Predicated region
        $region29: #{kbblock_forward.4} parent=11 // pred_check
          %p388 = pneg %p168
        $region30: #{kbblock_forward.4} parent=11 // pred_check_branch
          %390 = sbr.rel (%p388) target = $region32
        $region31: #{kbblock_forward.4} parent=11 // pred_region
          %392 = vsyncadd [#allocation5], 0
          %s394 = sshll.u32 %s5, 4
          %s395 = int_to_ptr.hbm [resolvable:$true] %s394
          %s396 = sshll.u32 [#allocation6], 4
          %s397 = int_to_ptr.vmem [resolvable:$true] %s396
          %399 = dma.hbm_to_vmem [thread:$0]  %s395, 128, %s397, [#allocation5]
        $region32: #{kbblock_forward.4} parent=11 // pred_fallthru
          _
        // Predicated region
        $region33: #{kbblock_forward.4} parent=11 // pred_check
          %p400 = pneg %p189
        $region34: #{kbblock_forward.4} parent=11 // pred_check_branch
          %402 = sbr.rel (%p400) target = $region36
        $region35: #{kbblock_forward.4} parent=11 // pred_region
          %404 = vsyncadd [#allocation8], 0
          %s406 = sshll.u32 %s6, 4
          %s407 = int_to_ptr.hbm [resolvable:$true] %s406
          %s408 = sshll.u32 [#allocation7], 4
          %s409 = int_to_ptr.vmem [resolvable:$true] %s408
          %411 = dma.hbm_to_vmem [thread:$0]  %s407, 128, %s409, [#allocation8]
        $region36: #{kbblock_forward.4} parent=11 // pred_fallthru
          _
        // Predicated region
        $region37: #{kbblock_forward.4} parent=11 // pred_check
          %p412 = pneg %p210
        $region38: #{kbblock_forward.4} parent=11 // pred_check_branch
          %414 = sbr.rel (%p412) target = $region40
        $region39: #{kbblock_forward.4} parent=11 // pred_region
          %416 = vsyncadd [#allocation8], 0
          %s417 = sshll.u32 %s7, 4
          %s418 = int_to_ptr.hbm [resolvable:$true] %s417
          %s419 = sshll.u32 [#allocation9], 4
          %s420 = int_to_ptr.vmem [resolvable:$true] %s419
          %425 = dma.hbm_to_vmem [thread:$0]  %s418, 512, %s420, [#allocation8], 128, 128, 8
        $region40: #{kbblock_forward.4} parent=11 // pred_fallthru
          _
        // Predicated region
        $region41: #{kbblock_forward.4} parent=11 // pred_check
          %p426 = pneg %p231
        $region42: #{kbblock_forward.4} parent=11 // pred_check_branch
          %428 = sbr.rel (%p426) target = $region44
        $region43: #{kbblock_forward.4} parent=11 // pred_region
          %430 = vsyncadd [#allocation11], 0
          %s431 = sshll.u32 %s8, 4
          %s432 = int_to_ptr.hbm [resolvable:$true] %s431
          %s433 = sshll.u32 [#allocation10], 4
          %s434 = int_to_ptr.vmem [resolvable:$true] %s433
          %439 = dma.hbm_to_vmem [thread:$0]  %s432, 512, %s434, [#allocation11], 128, 128, 8
        $region44: #{kbblock_forward.4} parent=11 // pred_fallthru
          _
      $region12: #{kbblock_forward.4} parent=5 // pred_fallthru
        _
      %p440 = scmp.lt.s32.totalorder %s23, 2
      // Predicated region
      $region45: #{kbblock_forward.4} parent=5 // pred_check
        %p441 = pneg %p440
      $region46: #{kbblock_forward.4} parent=5 // pred_check_branch
        %443 = sbr.rel (%p441) target = $region48
      $region47: #{kbblock_forward.4} parent=5 // pred_region
        // Predicated region
        $region49: #{kbblock_forward.4} parent=47 // pred_check
          %p444 = pneg %p57
        $region50: #{kbblock_forward.4} parent=47 // pred_check_branch
          %446 = sbr.rel (%p444) target = $region52
        $region51: #{kbblock_forward.4} parent=47 // pred_region
          %s447 = smul.u32 2, %s31
          %p448 = scmp.lt.s32.totalorder %s30, 1
          %s449 = scalar_select %p448, %s30, 1
          %p450 = scmp.lt.s32.totalorder %s447, 1
          %s451 = scalar_select %p450, %s447, 1
          %s452 = smul.addr %s449, 2
          %s453 = sadd.s32 %s451, %s452
          %s454 = smul.addr %s453, 8
          %s455 = scalar_lea.vmem %s0, %s454
          %s456 = smul.u32 2, %s31
        $region52: #{kbblock_forward.4} parent=47 // pred_fallthru
          _
      $region48: #{kbblock_forward.4} parent=5 // pred_fallthru
        _
      %p457 = scmp.le.s32.totalorder 1, %s23
      %p458 = scmp.lt.s32.totalorder %s23, 3
      %p459 = pnand %p457, %p458
      %p460 = pneg %p459
      // Predicated region
      $region53: #{kbblock_forward.4} parent=5 // pred_check
        _
      $region54: #{kbblock_forward.4} parent=5 // pred_check_branch
        %462 = sbr.rel (%p459) target = $region56
      $region55: #{kbblock_forward.4} parent=5 // pred_region
        %s463 = ssub.s32 %s23, 1
        // Predicated region
        $region57: #{kbblock_forward.4} parent=55 // pred_check
          %p464 = pneg %p126
        $region58: #{kbblock_forward.4} parent=55 // pred_check_branch
          %466 = sbr.rel (%p464) target = $region60
        $region59: #{kbblock_forward.4} parent=55 // pred_region
          %468 = dma.done [#allocation3], 128
        $region60: #{kbblock_forward.4} parent=55 // pred_fallthru
          _
        // Predicated region
        $region61: #{kbblock_forward.4} parent=55 // pred_check
          %p469 = pneg %p147
        $region62: #{kbblock_forward.4} parent=55 // pred_check_branch
          %471 = sbr.rel (%p469) target = $region64
        $region63: #{kbblock_forward.4} parent=55 // pred_region
          %473 = dma.done [#allocation5], 128
        $region64: #{kbblock_forward.4} parent=55 // pred_fallthru
          _
        // Predicated region
        $region65: #{kbblock_forward.4} parent=55 // pred_check
          %p474 = pneg %p168
        $region66: #{kbblock_forward.4} parent=55 // pred_check_branch
          %476 = sbr.rel (%p474) target = $region68
        $region67: #{kbblock_forward.4} parent=55 // pred_region
          %478 = dma.done [#allocation5], 128
        $region68: #{kbblock_forward.4} parent=55 // pred_fallthru
          _
        // Predicated region
        $region69: #{kbblock_forward.4} parent=55 // pred_check
          %p479 = pneg %p189
        $region70: #{kbblock_forward.4} parent=55 // pred_check_branch
          %481 = sbr.rel (%p479) target = $region72
        $region71: #{kbblock_forward.4} parent=55 // pred_region
          %483 = dma.done [#allocation8], 128
        $region72: #{kbblock_forward.4} parent=55 // pred_fallthru
          _
        // Predicated region
        $region73: #{kbblock_forward.4} parent=55 // pred_check
          %p484 = pneg %p210
        $region74: #{kbblock_forward.4} parent=55 // pred_check_branch
          %486 = sbr.rel (%p484) target = $region76
        $region75: #{kbblock_forward.4} parent=55 // pred_region
          %488 = dma.done [#allocation8], 512
        $region76: #{kbblock_forward.4} parent=55 // pred_fallthru
          _
        // Predicated region
        $region77: #{kbblock_forward.4} parent=55 // pred_check
          %p489 = pneg %p231
        $region78: #{kbblock_forward.4} parent=55 // pred_check_branch
          %491 = sbr.rel (%p489) target = $region80
        $region79: #{kbblock_forward.4} parent=55 // pred_region
          %493 = dma.done [#allocation11], 512
        $region80: #{kbblock_forward.4} parent=55 // pred_fallthru
          _
        %s494 = smul.u32 2, %s33
        %p495 = scmp.lt.s32.totalorder %s32, 1
        %s496 = scalar_select %p495, %s32, 1
        %p497 = scmp.lt.s32.totalorder %s494, 1
        %s498 = scalar_select %p497, %s494, 1
        %s499 = smul.addr %s496, 2
        %s500 = sadd.s32 %s498, %s499
        %s501 = smul.addr %s500, 8
        %s502 = scalar_lea.vmem %s0, %s501
        %p503 = pneg %p63
        %p504 = pneg %p60
        %p505 = pneg %p84
        %p506 = pneg %p81
        %p507 = pneg %p105
        %p508 = pneg %p102
        %p509 = pneg %p126
        %p510 = pneg %p123
        %p511 = pneg %p147
        %p512 = pneg %p144
        %p513 = pneg %p168
        %p514 = pneg %p165
        %p515 = pneg %p189
        %p516 = pneg %p186
        %p517 = pneg %p210
        %p518 = pneg %p207
        %p519 = pneg %p231
        %p520 = pneg %p228
        %p521 = pneg %p259
        %p522 = pneg %p256
        %s523 = smul.u32 2, %s33
        %p524 = scmp.lt.s32.totalorder %s32, 1
        %s525 = scalar_select %p524, %s32, 1
        %p526 = scmp.lt.s32.totalorder %s523, 1
        %s527 = scalar_select %p526, %s523, 1
        %s528 = smul.addr %s525, 2
        %s529 = sadd.s32 %s527, %s528
        %s530 = smul.addr %s529, 8
        %s531 = scalar_lea.vmem %s9, %s530
        %p532 = pneg %p287
        %p533 = pneg %p284
        %s534 = smul.u32 2, %s33
        %p535 = scmp.lt.s32.totalorder %s32, 1
        %s536 = scalar_select %p535, %s32, 1
        %p537 = scmp.lt.s32.totalorder %s534, 1
        %s538 = scalar_select %p537, %s534, 1
        %s539 = smul.addr %s536, 2
        %s540 = sadd.s32 %s538, %s539
        %s541 = smul.addr %s540, 8
        %s542 = scalar_lea.vmem %s10, %s541
        %p543 = pneg %p315
        %p544 = pneg %p312
        %s545 = smul.u32 2, %s33
        %p546 = scmp.lt.s32.totalorder %s32, 1
        %s547 = scalar_select %p546, %s32, 1
        %p548 = scmp.lt.s32.totalorder %s545, 1
        %s549 = scalar_select %p548, %s545, 1
        %s550 = smul.addr %s547, 2
        %s551 = sadd.s32 %s549, %s550
        %s552 = smul.addr %s551, 8
        %s553 = scalar_lea.vmem %s11, %s552
        %p554 = pneg %p343
        %p555 = pneg %p340
        %s556 = smul.u32 2, %s33
        %p557 = scmp.lt.s32.totalorder %s32, 1
        %s558 = scalar_select %p557, %s32, 1
        %p559 = scmp.lt.s32.totalorder %s556, 1
        %s560 = scalar_select %p559, %s556, 1
        %s561 = smul.addr %s558, 8
        %s562 = sadd.s32 %s560, %s561
        %s563 = smul.addr %s562, 8
        %s564 = scalar_lea.vmem %s12, %s563
        %s565 = smul.u32 2, %s33
        %p566 = scmp.lt.s32.totalorder %s32, 1
        %s567 = scalar_select %p566, %s32, 1
        %p568 = scmp.lt.s32.totalorder %s565, 1
        %s569 = scalar_select %p568, %s565, 1
        %s570 = smul.addr %s567, 2
        %s571 = sadd.s32 %s569, %s570
        %s572 = smul.addr %s571, 8
        %s573 = scalar_lea.vmem %s0, %s572
        %s574 = smul.u32 2, %s33
        %s575 = smul.u32 2, %s33
        %p576 = scmp.lt.s32.totalorder %s32, 1
        %s577 = scalar_select %p576, %s32, 1
        %p578 = scmp.lt.s32.totalorder %s575, 1
        %s579 = scalar_select %p578, %s575, 1
        %s580 = smul.addr %s577, 2
        %s581 = sadd.s32 %s579, %s580
        %s582 = smul.addr %s581, 8
        %s583 = scalar_lea.vmem %s9, %s582
        %s584 = smul.u32 2, %s33
        %s585 = smul.u32 2, %s33
        %p586 = scmp.lt.s32.totalorder %s32, 1
        %s587 = scalar_select %p586, %s32, 1
        %p588 = scmp.lt.s32.totalorder %s585, 1
        %s589 = scalar_select %p588, %s585, 1
        %s590 = smul.addr %s587, 2
        %s591 = sadd.s32 %s589, %s590
        %s592 = smul.addr %s591, 8
        %s593 = scalar_lea.vmem %s10, %s592
        %s594 = smul.u32 2, %s33
        %s595 = smul.u32 2, %s33
        %p596 = scmp.lt.s32.totalorder %s32, 1
        %s597 = scalar_select %p596, %s32, 1
        %p598 = scmp.lt.s32.totalorder %s595, 1
        %s599 = scalar_select %p598, %s595, 1
        %s600 = smul.addr %s597, 2
        %s601 = sadd.s32 %s599, %s600
        %s602 = smul.addr %s601, 8
        %s603 = scalar_lea.vmem %s11, %s602
        %s604 = smul.u32 2, %s33
        %s605 = smul.u32 2, %s33
        %p606 = scmp.lt.s32.totalorder %s32, 1
        %s607 = scalar_select %p606, %s32, 1
        %p608 = scmp.lt.s32.totalorder %s605, 1
        %s609 = scalar_select %p608, %s605, 1
        %s610 = smul.addr %s607, 8
        %s611 = sadd.s32 %s609, %s610
        %s612 = smul.addr %s611, 8
        %s613 = scalar_lea.vmem %s12, %s612
        %s614 = smul.u32 2, %s33
        %v615 = vld [vmem:[%s573] sm:$0xff]
        %v616 = vld [vmem:[%s573 + $0x8] sm:$0xff]
        %v617 = vrot.slane %v615, 4
        %v618 = vadd.f32 %v615, %v617
        %v619 = vrot.slane %v618, 2
        %v620 = vadd.f32 %v618, %v619
        %v621 = vrot.slane %v620, 1
        %v622 = vadd.f32 %v620, %v621
        %v623 = vrot.slane %v616, 4
        %v624 = vadd.f32 %v616, %v623
        %v625 = vrot.slane %v624, 2
        %v626 = vadd.f32 %v624, %v625
        %v627 = vrot.slane %v626, 1
        %v628 = vadd.f32 %v626, %v627
        %v629 = vrcp.pop 8.0
        %v630 = vmul.f32 8.0, %v629
        %v631 = vsub.f32 1.0, %v630
        %v632 = vmul.f32 %v629, %v631
        %v633 = vadd.f32 %v629, %v632
        %vm634 = vweird.f32 %v629
        %v635 = vsel %vm634, %v629, %v633
        %v636 = vmul.f32 %v622, %v635
        %v637 = vmul.f32 %v628, %v635
        %v638 = vsub.f32 %v615, %v636
        %v639 = vsub.f32 %v616, %v637
        %v640 = vmul.f32 %v638, %v638
        %v641 = vmul.f32 %v639, %v639
        %v642 = vrot.slane %v640, 4
        %v643 = vadd.f32 %v640, %v642
        %v644 = vrot.slane %v643, 2
        %v645 = vadd.f32 %v643, %v644
        %v646 = vrot.slane %v645, 1
        %v647 = vadd.f32 %v645, %v646
        %v648 = vrot.slane %v641, 4
        %v649 = vadd.f32 %v641, %v648
        %v650 = vrot.slane %v649, 2
        %v651 = vadd.f32 %v649, %v650
        %v652 = vrot.slane %v651, 1
        %v653 = vadd.f32 %v651, %v652
        %v654 = vmul.f32 %v647, %v635
        %v655 = vmul.f32 %v653, %v635
        %v656 = vadd.f32 %v654, 1e-06
        %v657 = vadd.f32 %v655, 1e-06
        %v658 = vrsqrt.pop %v656
        %v659 = vmul.f32 %v658, %v656
        %v660 = vmul.f32 %v659, %v658
        %v661 = vmul.f32 0.5, %v660
        %v662 = vsub.f32 1.5, %v661
        %v663 = vmul.f32 %v658, %v662
        %vm664 = vweird.f32 %v656
        %vm665 = vweird.f32 %v658
        %vm666 = vmor %vm664, %vm665
        %v667 = vsel %vm666, %v658, %v663
        %v668 = vrsqrt.pop %v657
        %v669 = vmul.f32 %v668, %v657
        %v670 = vmul.f32 %v669, %v668
        %v671 = vmul.f32 0.5, %v670
        %v672 = vsub.f32 1.5, %v671
        %v673 = vmul.f32 %v668, %v672
        %vm674 = vweird.f32 %v657
        %vm675 = vweird.f32 %v668
        %vm676 = vmor %vm674, %vm675
        %v677 = vsel %vm676, %v668, %v673
        %v678 = vmul.f32 %v638, %v667
        %v679 = vmul.f32 %v639, %v677
        %v680 = vld [vmem:[%s1] sm:$0xff]
        %682 = vset.pattern.permute.xlu0 0
        %683 = vperm.xlu0 %682, %v680
        %v684 = vpop.permute.xlu0 %683
        %v686 = vmul.f32 %v678, %v684
        %v687 = vmul.f32 %v679, %v684
        %v688 = vld [vmem:[%s2] sm:$0xff]
        %690 = vset.pattern.permute.xlu0 0
        %691 = vperm.xlu0 %690, %v688
        %v692 = vpop.permute.xlu0 %691
        %v694 = vadd.f32 %v686, %v692
        %v695 = vadd.f32 %v687, %v692
        %696 = vst [vmem:[%s583] sm:$0xff] %v694
        %697 = vst [vmem:[%s583 + $0x8] sm:$0xff] %v695
        %v698 = vld [vmem:[#allocation2] sm:$0xff]
        %v699 = vld [vmem:[#allocation4] sm:$0xff]
        %701 = vset.pattern.permute.xlu0 0
        %702 = vperm.xlu0 %701, %v699
        %v703 = vpop.permute.xlu0 %702
        %vm705 = vcmask 64512
        %v707 = vsel %vm705, %v698, 0
        %709 = vmatpush.msra.mxu0 0.0
        %710 = vmatpush.msra.mxu0 0.0
        %711 = vmatpush.msra.mxu0 0.0
        %712 = vmatpush.msra.mxu0 0.0
        %713 = vmatpush.msra.mxu0 0.0
        %714 = vmatpush.msra.mxu0 0.0
        %715 = vmatpush.msra.mxu0 0.0
        %716 = vmatpush.msra.mxu0 0.0
        %717 = vmatpush.msra.mxu0 0.0
        %718 = vmatpush.msra.mxu0 0.0
        %719 = vmatpush.msra.mxu0 0.0
        %720 = vmatpush.msra.mxu0 0.0
        %721 = vmatpush.msra.mxu0 0.0
        %722 = vmatpush.msra.mxu0 0.0
        %723 = vmatpush.msra.mxu0 0.0
        %724 = vmatpush.msra.mxu0 %v694
        %725 = vmatmul.f32.gmra.mxu0 %v707
        %v726 = vpop.f32.mrf.mxu0
        %v727 = vadd.f32 %v703, %v726
        %728 = vdwg.mxu0
        %729 = vmatpush.msra.mxu0 0.0
        %730 = vmatpush.msra.mxu0 0.0
        %731 = vmatpush.msra.mxu0 0.0
        %732 = vmatpush.msra.mxu0 0.0
        %733 = vmatpush.msra.mxu0 0.0
        %734 = vmatpush.msra.mxu0 0.0
        %735 = vmatpush.msra.mxu0 0.0
        %736 = vmatpush.msra.mxu0 0.0
        %737 = vmatpush.msra.mxu0 0.0
        %738 = vmatpush.msra.mxu0 0.0
        %739 = vmatpush.msra.mxu0 0.0
        %740 = vmatpush.msra.mxu0 0.0
        %741 = vmatpush.msra.mxu0 0.0
        %742 = vmatpush.msra.mxu0 0.0
        %743 = vmatpush.msra.mxu0 0.0
        %744 = vmatpush.msra.mxu0 %v695
        %745 = vmatmul.f32.gmra.mxu0 %v707
        %v746 = vpop.f32.mrf.mxu0
        %v747 = vadd.f32 %v703, %v746
        %748 = vdwg.mxu0
        %749 = vst [vmem:[%s593] sm:$0xff] %v727
        %750 = vst [vmem:[%s593 + $0x8] sm:$0xff] %v747
        %v751 = vld [vmem:[#allocation6] sm:$0xff]
        %v752 = vld [vmem:[#allocation7] sm:$0xff]
        %754 = vset.pattern.permute.xlu0 0
        %755 = vperm.xlu0 %754, %v752
        %v756 = vpop.permute.xlu0 %755
        %v759 = vsel %vm705, %v751, 0
        %761 = vmatpush.msra.mxu0 0.0
        %762 = vmatpush.msra.mxu0 0.0
        %763 = vmatpush.msra.mxu0 0.0
        %764 = vmatpush.msra.mxu0 0.0
        %765 = vmatpush.msra.mxu0 0.0
        %766 = vmatpush.msra.mxu0 0.0
        %767 = vmatpush.msra.mxu0 0.0
        %768 = vmatpush.msra.mxu0 0.0
        %769 = vmatpush.msra.mxu0 0.0
        %770 = vmatpush.msra.mxu0 0.0
        %771 = vmatpush.msra.mxu0 0.0
        %772 = vmatpush.msra.mxu0 0.0
        %773 = vmatpush.msra.mxu0 0.0
        %774 = vmatpush.msra.mxu0 0.0
        %775 = vmatpush.msra.mxu0 0.0
        %776 = vmatpush.msra.mxu0 %v694
        %777 = vmatmul.f32.gmra.mxu0 %v759
        %v778 = vpop.f32.mrf.mxu0
        %v779 = vadd.f32 %v756, %v778
        %780 = vdwg.mxu0
        %781 = vmatpush.msra.mxu0 0.0
        %782 = vmatpush.msra.mxu0 0.0
        %783 = vmatpush.msra.mxu0 0.0
        %784 = vmatpush.msra.mxu0 0.0
        %785 = vmatpush.msra.mxu0 0.0
        %786 = vmatpush.msra.mxu0 0.0
        %787 = vmatpush.msra.mxu0 0.0
        %788 = vmatpush.msra.mxu0 0.0
        %789 = vmatpush.msra.mxu0 0.0
        %790 = vmatpush.msra.mxu0 0.0
        %791 = vmatpush.msra.mxu0 0.0
        %792 = vmatpush.msra.mxu0 0.0
        %793 = vmatpush.msra.mxu0 0.0
        %794 = vmatpush.msra.mxu0 0.0
        %795 = vmatpush.msra.mxu0 0.0
        %796 = vmatpush.msra.mxu0 %v695
        %797 = vmatmul.f32.gmra.mxu0 %v759
        %v798 = vpop.f32.mrf.mxu0
        %v799 = vadd.f32 %v756, %v798
        %800 = vdwg.mxu0
        %801 = vst [vmem:[%s603] sm:$0xff] %v779
        %802 = vst [vmem:[%s603 + $0x8] sm:$0xff] %v799
        %v803 = vld [vmem:[#allocation9] sm:$0xff]
        %v804 = vld [vmem:[#allocation9 + $0x8] sm:$0xff]
        %v805 = vld [vmem:[#allocation9 + $0x10] sm:$0xff]
        %v806 = vld [vmem:[#allocation9 + $0x18] sm:$0xff]
        %v807 = vld [vmem:[#allocation10] sm:$0xff]
        %v808 = vld [vmem:[#allocation10 + $0x8] sm:$0xff]
        %v809 = vld [vmem:[#allocation10 + $0x10] sm:$0xff]
        %v810 = vld [vmem:[#allocation10 + $0x18] sm:$0xff]
        %812 = vset.pattern.permute.xlu0 0
        %813 = vperm.xlu0 %812, %v807
        %v814 = vpop.permute.xlu0 %813
        %817 = vset.pattern.permute.xlu0 0
        %818 = vperm.xlu0 %817, %v808
        %v819 = vpop.permute.xlu0 %818
        %822 = vset.pattern.permute.xlu0 0
        %823 = vperm.xlu0 %822, %v809
        %v824 = vpop.permute.xlu0 %823
        %827 = vset.pattern.permute.xlu0 0
        %828 = vperm.xlu0 %827, %v810
        %v829 = vpop.permute.xlu0 %828
        %v832 = vsel %vm705, %v803, 0
        %v835 = vsel %vm705, %v804, 0
        %v838 = vsel %vm705, %v805, 0
        %v841 = vsel %vm705, %v806, 0
        %843 = vmatpush.msra.mxu0 0.0
        %844 = vmatpush.msra.mxu0 0.0
        %845 = vmatpush.msra.mxu0 0.0
        %846 = vmatpush.msra.mxu0 0.0
        %847 = vmatpush.msra.mxu0 0.0
        %848 = vmatpush.msra.mxu0 0.0
        %849 = vmatpush.msra.mxu0 0.0
        %850 = vmatpush.msra.mxu0 0.0
        %851 = vmatpush.msra.mxu0 0.0
        %852 = vmatpush.msra.mxu0 0.0
        %853 = vmatpush.msra.mxu0 0.0
        %854 = vmatpush.msra.mxu0 0.0
        %855 = vmatpush.msra.mxu0 0.0
        %856 = vmatpush.msra.mxu0 0.0
        %857 = vmatpush.msra.mxu0 0.0
        %858 = vmatpush.msra.mxu0 %v694
        %859 = vmatmul.f32.gmra.mxu0 %v832
        %v860 = vpop.f32.mrf.mxu0
        %v861 = vadd.f32 %v814, %v860
        %862 = vmatmul.f32.gmra.mxu0 %v835
        %v863 = vpop.f32.mrf.mxu0
        %v864 = vadd.f32 %v819, %v863
        %865 = vmatmul.f32.gmra.mxu0 %v838
        %v866 = vpop.f32.mrf.mxu0
        %v867 = vadd.f32 %v824, %v866
        %868 = vmatmul.f32.gmra.mxu0 %v841
        %v869 = vpop.f32.mrf.mxu0
        %v870 = vadd.f32 %v829, %v869
        %871 = vdwg.mxu0
        %872 = vmatpush.msra.mxu0 0.0
        %873 = vmatpush.msra.mxu0 0.0
        %874 = vmatpush.msra.mxu0 0.0
        %875 = vmatpush.msra.mxu0 0.0
        %876 = vmatpush.msra.mxu0 0.0
        %877 = vmatpush.msra.mxu0 0.0
        %878 = vmatpush.msra.mxu0 0.0
        %879 = vmatpush.msra.mxu0 0.0
        %880 = vmatpush.msra.mxu0 0.0
        %881 = vmatpush.msra.mxu0 0.0
        %882 = vmatpush.msra.mxu0 0.0
        %883 = vmatpush.msra.mxu0 0.0
        %884 = vmatpush.msra.mxu0 0.0
        %885 = vmatpush.msra.mxu0 0.0
        %886 = vmatpush.msra.mxu0 0.0
        %887 = vmatpush.msra.mxu0 %v695
        %888 = vmatmul.f32.gmra.mxu0 %v832
        %v889 = vpop.f32.mrf.mxu0
        %v890 = vadd.f32 %v814, %v889
        %891 = vmatmul.f32.gmra.mxu0 %v835
        %v892 = vpop.f32.mrf.mxu0
        %v893 = vadd.f32 %v819, %v892
        %894 = vmatmul.f32.gmra.mxu0 %v838
        %v895 = vpop.f32.mrf.mxu0
        %v896 = vadd.f32 %v824, %v895
        %897 = vmatmul.f32.gmra.mxu0 %v841
        %v898 = vpop.f32.mrf.mxu0
        %v899 = vadd.f32 %v829, %v898
        %900 = vdwg.mxu0
        %901 = vst [vmem:[%s613] sm:$0xff] %v861
        %902 = vst [vmem:[%s613 + $0x8] sm:$0xff] %v890
        %903 = vst [vmem:[%s613 + $0x10] sm:$0xff] %v864
        %904 = vst [vmem:[%s613 + $0x18] sm:$0xff] %v893
        %905 = vst [vmem:[%s613 + $0x20] sm:$0xff] %v867
        %906 = vst [vmem:[%s613 + $0x28] sm:$0xff] %v896
        %907 = vst [vmem:[%s613 + $0x30] sm:$0xff] %v870
        %908 = vst [vmem:[%s613 + $0x38] sm:$0xff] %v899
        %s909 = smul.u32 2, %s33
        %p910 = scmp.lt.s32.totalorder %s32, 1
        %s911 = scalar_select %p910, %s32, 1
        %p912 = scmp.lt.s32.totalorder %s909, 1
        %s913 = scalar_select %p912, %s909, 1
        %s914 = smul.addr %s911, 2
        %s915 = sadd.s32 %s913, %s914
        %s916 = smul.addr %s915, 8
        %s917 = scalar_lea.vmem %s9, %s916
        %s918 = smul.u32 2, %s33
        %p919 = scmp.lt.s32.totalorder %s32, 1
        %s920 = scalar_select %p919, %s32, 1
        %p921 = scmp.lt.s32.totalorder %s918, 1
        %s922 = scalar_select %p921, %s918, 1
        %s923 = smul.addr %s920, 2
        %s924 = sadd.s32 %s922, %s923
        %s925 = smul.addr %s924, 8
        %s926 = scalar_lea.vmem %s10, %s925
        %s927 = smul.u32 2, %s33
        %p928 = scmp.lt.s32.totalorder %s32, 1
        %s929 = scalar_select %p928, %s32, 1
        %p930 = scmp.lt.s32.totalorder %s927, 1
        %s931 = scalar_select %p930, %s927, 1
        %s932 = smul.addr %s929, 2
        %s933 = sadd.s32 %s931, %s932
        %s934 = smul.addr %s933, 8
        %s935 = scalar_lea.vmem %s11, %s934
        %s936 = smul.u32 2, %s33
        %p937 = scmp.lt.s32.totalorder %s32, 1
        %s938 = scalar_select %p937, %s32, 1
        %p939 = scmp.lt.s32.totalorder %s936, 1
        %s940 = scalar_select %p939, %s936, 1
        %s941 = smul.addr %s938, 8
        %s942 = sadd.s32 %s940, %s941
        %s943 = smul.addr %s942, 8
        %s944 = scalar_lea.vmem %s12, %s943
        // Predicated region
        $region81: #{kbblock_forward.4} parent=55 // pred_check
          %p945 = pneg %p256
        $region82: #{kbblock_forward.4} parent=55 // pred_check_branch
          %947 = sbr.rel (%p945) target = $region84
        $region83: #{kbblock_forward.4} parent=55 // pred_region
          %s948 = smul.u32 2, %s33
        $region84: #{kbblock_forward.4} parent=55 // pred_fallthru
          _
        // Predicated region
        $region85: #{kbblock_forward.4} parent=55 // pred_check
          %p949 = pneg %p284
        $region86: #{kbblock_forward.4} parent=55 // pred_check_branch
          %951 = sbr.rel (%p949) target = $region88
        $region87: #{kbblock_forward.4} parent=55 // pred_region
          %s952 = smul.u32 2, %s33
        $region88: #{kbblock_forward.4} parent=55 // pred_fallthru
          _
        // Predicated region
        $region89: #{kbblock_forward.4} parent=55 // pred_check
          %p953 = pneg %p312
        $region90: #{kbblock_forward.4} parent=55 // pred_check_branch
          %955 = sbr.rel (%p953) target = $region92
        $region91: #{kbblock_forward.4} parent=55 // pred_region
          %s956 = smul.u32 2, %s33
        $region92: #{kbblock_forward.4} parent=55 // pred_fallthru
          _
        // Predicated region
        $region93: #{kbblock_forward.4} parent=55 // pred_check
          %p957 = pneg %p340
        $region94: #{kbblock_forward.4} parent=55 // pred_check_branch
          %959 = sbr.rel (%p957) target = $region96
        $region95: #{kbblock_forward.4} parent=55 // pred_region
          %s960 = smul.u32 2, %s33
        $region96: #{kbblock_forward.4} parent=55 // pred_fallthru
          _
      $region56: #{kbblock_forward.4} parent=5 // pred_fallthru
        _
      %p961 = scmp.le.s32.totalorder 2, %s23
      // Predicated region
      $region97: #{kbblock_forward.4} parent=5 // pred_check
        %p962 = pneg %p961
      $region98: #{kbblock_forward.4} parent=5 // pred_check_branch
        %964 = sbr.rel (%p962) target = $region100
      $region99: #{kbblock_forward.4} parent=5 // pred_region
        %s965 = ssub.s32 %s23, 2
        // Predicated region
        $region101: #{kbblock_forward.4} parent=99 // pred_check
          %p966 = pneg %p262
        $region102: #{kbblock_forward.4} parent=99 // pred_check_branch
          %968 = sbr.rel (%p966) target = $region104
        $region103: #{kbblock_forward.4} parent=99 // pred_region
          %s969 = smul.u32 2, %s35
          %p970 = scmp.lt.s32.totalorder %s34, 1
          %s971 = scalar_select %p970, %s34, 1
          %p972 = scmp.lt.s32.totalorder %s969, 1
          %s973 = scalar_select %p972, %s969, 1
          %s974 = smul.addr %s971, 2
          %s975 = sadd.s32 %s973, %s974
          %s976 = smul.addr %s975, 8
          %s977 = scalar_lea.vmem %s9, %s976
        $region104: #{kbblock_forward.4} parent=99 // pred_fallthru
          _
        // Predicated region
        $region105: #{kbblock_forward.4} parent=99 // pred_check
          %p978 = pneg %p290
        $region106: #{kbblock_forward.4} parent=99 // pred_check_branch
          %980 = sbr.rel (%p978) target = $region108
        $region107: #{kbblock_forward.4} parent=99 // pred_region
          %s981 = smul.u32 2, %s35
          %p982 = scmp.lt.s32.totalorder %s34, 1
          %s983 = scalar_select %p982, %s34, 1
          %p984 = scmp.lt.s32.totalorder %s981, 1
          %s985 = scalar_select %p984, %s981, 1
          %s986 = smul.addr %s983, 2
          %s987 = sadd.s32 %s985, %s986
          %s988 = smul.addr %s987, 8
          %s989 = scalar_lea.vmem %s10, %s988
        $region108: #{kbblock_forward.4} parent=99 // pred_fallthru
          _
        // Predicated region
        $region109: #{kbblock_forward.4} parent=99 // pred_check
          %p990 = pneg %p318
        $region110: #{kbblock_forward.4} parent=99 // pred_check_branch
          %992 = sbr.rel (%p990) target = $region112
        $region111: #{kbblock_forward.4} parent=99 // pred_region
          %s993 = smul.u32 2, %s35
          %p994 = scmp.lt.s32.totalorder %s34, 1
          %s995 = scalar_select %p994, %s34, 1
          %p996 = scmp.lt.s32.totalorder %s993, 1
          %s997 = scalar_select %p996, %s993, 1
          %s998 = smul.addr %s995, 2
          %s999 = sadd.s32 %s997, %s998
          %s1000 = smul.addr %s999, 8
          %s1001 = scalar_lea.vmem %s11, %s1000
        $region112: #{kbblock_forward.4} parent=99 // pred_fallthru
          _
        // Predicated region
        $region113: #{kbblock_forward.4} parent=99 // pred_check
          %p1002 = pneg %p346
        $region114: #{kbblock_forward.4} parent=99 // pred_check_branch
          %1004 = sbr.rel (%p1002) target = $region116
        $region115: #{kbblock_forward.4} parent=99 // pred_region
          %s1005 = smul.u32 2, %s35
          %p1006 = scmp.lt.s32.totalorder %s34, 1
          %s1007 = scalar_select %p1006, %s34, 1
          %p1008 = scmp.lt.s32.totalorder %s1005, 1
          %s1009 = scalar_select %p1008, %s1005, 1
          %s1010 = smul.addr %s1007, 8
          %s1011 = sadd.s32 %s1009, %s1010
          %s1012 = smul.addr %s1011, 8
          %s1013 = scalar_lea.vmem %s12, %s1012
        $region116: #{kbblock_forward.4} parent=99 // pred_fallthru
          _
      $region100: #{kbblock_forward.4} parent=5 // pred_fallthru
        _
    $region6: #{kbblock_forward.4} parent=1 // loop_footer
      %s27 = sadd.s32 1, %s23
    $region7: #{kbblock_forward.4} parent=1 // loop_footer_branch
      %22 = sbr.rel target = $region3
    $region8: #{kbblock_forward.4} parent=1 // loop_exit
      _
    %1014 = vsyncpa [#allocation3], 1
    %s1015 = scalar_lea.sflag [#allocation3], 1
    %1016 = vsyncpa %s1015, 1
    %1017 = vsyncpa [#allocation5], 1
    %1018 = vsyncpa [#allocation8], 1
    %1019 = vsyncpa [#allocation11], 1

// kernel: kbblock_forward.5
$region0: #{kbblock_forward.5}
  #allocation0 [shape = 'u32[]', space=smem, size = 0x4, offset = 0x4, fixed_abs, tag = 'smem constant byte address 0x4 - core index']
  #allocation1 [shape = 'u32[72,128]{1,0:T(1,128)}', space=vmem, size = 0x9000, scoped, tag = 'internal scratch']
  %s0 = inlined_call_operand.vmem [shape: bf16[2,200,256], index: 0, kind: input, shape index: {}]
  %s1 = inlined_call_operand.vmem [shape: bf16[2,72,256], index: 1, kind: input, shape index: {}]
  %s2 = inlined_call_operand.vmem [shape: bf16[2,72,256], index: 2, kind: input, shape index: {}]
  %s3 = inlined_call_operand.vmem [shape: f32[2,32,256], index: 3, kind: input, shape index: {}]
  %s4 = inlined_call_operand.vmem [shape: bf16[8,200], index: 4, kind: input, shape index: {}]
  %s5 = inlined_call_operand.vmem [shape: f32[8,1], index: 5, kind: input, shape index: {}]
  %s6 = inlined_call_operand.vmem [shape: bf16[8,72], index: 6, kind: input, shape index: {}]
  %s7 = inlined_call_operand.vmem [shape: f32[8,1], index: 7, kind: input, shape index: {}]
  %s8 = inlined_call_operand.vmem [shape: f32[32,4], index: 8, kind: input, shape index: {}]
  %s9 = inlined_call_operand.vmem [shape: f32[32,1], index: 9, kind: input, shape index: {}]
  %s10 = inlined_call_operand.vmem [shape: f32[32,1], index: 10, kind: input, shape index: {}]
  %s11 = inlined_call_operand.vmem [shape: bf16[8,72], index: 11, kind: input, shape index: {}]
  %s12 = inlined_call_operand.vmem [shape: f32[8,1], index: 12, kind: input, shape index: {}]
  %s13 = inlined_call_operand.vmem [shape: f32[2,8,256], index: 13, kind: output, shape index: {0}]
  %s14 = inlined_call_operand.vmem [shape: f32[2,32,256], index: 14, kind: output, shape index: {1}]
  %s15 = inlined_call_operand.vmem [shape: f32[2,8,256], index: 15, kind: output, shape index: {2}]
  %16 = xla_tuple %s13, %s14, %s15
  %s17 = sld [smem:[#allocation0]]
  $region101: #{kbblock_forward.5} parent=0
    _
  %s19 = ssub.s32 1, %s17
  %s20 = scalar_select 0, %s19, %s17
  loop: start=0, step=1, limit=4
  $region2: #{kbblock_forward.5} parent=0 // loop_pre_header
    _
  $region3: #{kbblock_forward.5} parent=0 // loop_header
    %s22 = sphi 0, %s26
    %p23 = scmp.ge.s32.totalorder %s22, 4
    %s29 = sphi 0, %s41
    %s30 = sphi 0, %s37
    %s31 = sphi 0, %s29
    %s32 = sphi 0, %s30
    %s33 = sphi 0, %s31
    %s34 = sphi 0, %s32
    %s46 = sphi 0, %s48
    %s49 = sphi 0, %s46
    %s50 = sphi 0, %s49
    %s66 = sphi 0, %s50
    %s74 = sphi 0, %s76
    %s77 = sphi 0, %s74
    %s78 = sphi 0, %s77
    %s94 = sphi 0, %s78
    %s102 = sphi 0, %s104
    %s105 = sphi 0, %s102
    %s106 = sphi 0, %s105
    %s122 = sphi 0, %s106
    %s130 = sphi 0, %s132
    %s133 = sphi 0, %s130
    %s134 = sphi 0, %s133
    %s150 = sphi 0, %s134
    %s154 = sphi 0, %s154
    %s156 = sphi 0, %s154
    %s157 = sphi 0, %s156
    %s171 = sphi 0, %s157
    %s175 = sphi 0, %s175
    %s177 = sphi 0, %s175
    %s178 = sphi 0, %s177
    %s192 = sphi 0, %s178
    %s196 = sphi 0, %s196
    %s198 = sphi 0, %s196
    %s199 = sphi 0, %s198
    %s213 = sphi 0, %s199
    %s217 = sphi 0, %s217
    %s219 = sphi 0, %s217
    %s220 = sphi 0, %s219
    %s234 = sphi 0, %s220
    %s238 = sphi 0, %s238
    %s240 = sphi 0, %s238
    %s241 = sphi 0, %s240
    %s255 = sphi 0, %s241
    %s259 = sphi 0, %s259
    %s261 = sphi 0, %s259
    %s262 = sphi 0, %s261
    %s276 = sphi 0, %s262
    %s280 = sphi 0, %s280
    %s282 = sphi 0, %s280
    %s283 = sphi 0, %s282
    %s297 = sphi 0, %s283
    %s301 = sphi 0, %s301
    %s303 = sphi 0, %s301
    %s304 = sphi 0, %s303
    %s318 = sphi 0, %s304
    %s322 = sphi 0, %s322
    %s324 = sphi 0, %s322
    %s325 = sphi 0, %s324
    %s339 = sphi 0, %s325
    %s347 = sphi 0, %s349
    %s350 = sphi 0, %s347
    %s351 = sphi 0, %s350
    %s367 = sphi 0, %s351
    %s375 = sphi 0, %s377
    %s378 = sphi 0, %s375
    %s379 = sphi 0, %s378
    %s395 = sphi 0, %s379
    %s403 = sphi 0, %s405
    %s406 = sphi 0, %s403
    %s407 = sphi 0, %s406
    %s423 = sphi 0, %s407
  $region4: #{kbblock_forward.5} parent=0 // loop_header_branch
    %25 = sbr.rel (%p23) target = $region8
  $region5: #{kbblock_forward.5} parent=0 // loop_body
    %s27 = ssub.s32 %s22, 1
    %s28 = ssub.s32 %s22, 2
    %s35 = sadd.s32 1, %s30
    %p36 = scmp.ge.s32.totalorder %s35, 1
    %s37 = scalar_select %p36, 0, %s35
    %s38 = sadd.s32 1, %s29
    %s39 = scalar_select %p36, %s38, %s29
    %p40 = scmp.ge.s32.totalorder %s39, 2
    %s41 = scalar_select %p40, 0, %s39
    %s42 = ssub.s32 %s29, %s41
    %s43 = ssub.s32 %s30, %s37
    %s44 = sor.u32 %s42, %s43
    %p45 = scmp.eq.s32.totalorder %s44, 0
    %s47 = sadd.s32 %s46, 1
    %s48 = scalar_select %p45, %s46, %s47
    %p51 = pneg %p45
    %p52 = scmp.eq.s32.totalorder %s22, 1
    %p53 = por %p51, %p52
    %p54 = scmp.ne.s32.totalorder %s46, %s49
    %p55 = scmp.eq.s32.totalorder %s22, 0
    %p56 = por %p54, %p55
    %p57 = scmp.ne.s32.totalorder %s46, %s49
    %p58 = scmp.eq.s32.totalorder %s27, 1
    %p59 = por %p57, %p58
    %p60 = scmp.ne.s32.totalorder %s49, %s50
    %p61 = scmp.eq.s32.totalorder %s27, 0
    %p62 = por %p60, %p61
    %p63 = scmp.ne.s32.totalorder %s49, %s50
    %p64 = scmp.eq.s32.totalorder %s28, 1
    %p65 = por %p63, %p64
    %p67 = scmp.ne.s32.totalorder %s50, %s66
    %p68 = scmp.eq.s32.totalorder %s28, 0
    %p69 = por %p67, %p68
    %s70 = ssub.s32 %s29, %s41
    %s71 = ssub.s32 %s30, %s37
    %s72 = sor.u32 %s70, %s71
    %p73 = scmp.eq.s32.totalorder %s72, 0
    %s75 = sadd.s32 %s74, 1
    %s76 = scalar_select %p73, %s74, %s75
    %p79 = pneg %p73
    %p80 = scmp.eq.s32.totalorder %s22, 1
    %p81 = por %p79, %p80
    %p82 = scmp.ne.s32.totalorder %s74, %s77
    %p83 = scmp.eq.s32.totalorder %s22, 0
    %p84 = por %p82, %p83
    %p85 = scmp.ne.s32.totalorder %s74, %s77
    %p86 = scmp.eq.s32.totalorder %s27, 1
    %p87 = por %p85, %p86
    %p88 = scmp.ne.s32.totalorder %s77, %s78
    %p89 = scmp.eq.s32.totalorder %s27, 0
    %p90 = por %p88, %p89
    %p91 = scmp.ne.s32.totalorder %s77, %s78
    %p92 = scmp.eq.s32.totalorder %s28, 1
    %p93 = por %p91, %p92
    %p95 = scmp.ne.s32.totalorder %s78, %s94
    %p96 = scmp.eq.s32.totalorder %s28, 0
    %p97 = por %p95, %p96
    %s98 = ssub.s32 %s29, %s41
    %s99 = ssub.s32 %s30, %s37
    %s100 = sor.u32 %s98, %s99
    %p101 = scmp.eq.s32.totalorder %s100, 0
    %s103 = sadd.s32 %s102, 1
    %s104 = scalar_select %p101, %s102, %s103
    %p107 = pneg %p101
    %p108 = scmp.eq.s32.totalorder %s22, 1
    %p109 = por %p107, %p108
    %p110 = scmp.ne.s32.totalorder %s102, %s105
    %p111 = scmp.eq.s32.totalorder %s22, 0
    %p112 = por %p110, %p111
    %p113 = scmp.ne.s32.totalorder %s102, %s105
    %p114 = scmp.eq.s32.totalorder %s27, 1
    %p115 = por %p113, %p114
    %p116 = scmp.ne.s32.totalorder %s105, %s106
    %p117 = scmp.eq.s32.totalorder %s27, 0
    %p118 = por %p116, %p117
    %p119 = scmp.ne.s32.totalorder %s105, %s106
    %p120 = scmp.eq.s32.totalorder %s28, 1
    %p121 = por %p119, %p120
    %p123 = scmp.ne.s32.totalorder %s106, %s122
    %p124 = scmp.eq.s32.totalorder %s28, 0
    %p125 = por %p123, %p124
    %s126 = ssub.s32 %s29, %s41
    %s127 = ssub.s32 %s30, %s37
    %s128 = sor.u32 %s126, %s127
    %p129 = scmp.eq.s32.totalorder %s128, 0
    %s131 = sadd.s32 %s130, 1
    %s132 = scalar_select %p129, %s130, %s131
    %p135 = pneg %p129
    %p136 = scmp.eq.s32.totalorder %s22, 1
    %p137 = por %p135, %p136
    %p138 = scmp.ne.s32.totalorder %s130, %s133
    %p139 = scmp.eq.s32.totalorder %s22, 0
    %p140 = por %p138, %p139
    %p141 = scmp.ne.s32.totalorder %s130, %s133
    %p142 = scmp.eq.s32.totalorder %s27, 1
    %p143 = por %p141, %p142
    %p144 = scmp.ne.s32.totalorder %s133, %s134
    %p145 = scmp.eq.s32.totalorder %s27, 0
    %p146 = por %p144, %p145
    %p147 = scmp.ne.s32.totalorder %s133, %s134
    %p148 = scmp.eq.s32.totalorder %s28, 1
    %p149 = por %p147, %p148
    %p151 = scmp.ne.s32.totalorder %s134, %s150
    %p152 = scmp.eq.s32.totalorder %s28, 0
    %p153 = por %p151, %p152
    %s155 = sadd.s32 %s154, 1
    %p158 = scmp.eq.s32.totalorder %s22, 1
    %p159 = scmp.ne.s32.totalorder %s154, %s156
    %p160 = scmp.eq.s32.totalorder %s22, 0
    %p161 = por %p159, %p160
    %p162 = scmp.ne.s32.totalorder %s154, %s156
    %p163 = scmp.eq.s32.totalorder %s27, 1
    %p164 = por %p162, %p163
    %p165 = scmp.ne.s32.totalorder %s156, %s157
    %p166 = scmp.eq.s32.totalorder %s27, 0
    %p167 = por %p165, %p166
    %p168 = scmp.ne.s32.totalorder %s156, %s157
    %p169 = scmp.eq.s32.totalorder %s28, 1
    %p170 = por %p168, %p169
    %p172 = scmp.ne.s32.totalorder %s157, %s171
    %p173 = scmp.eq.s32.totalorder %s28, 0
    %p174 = por %p172, %p173
    %s176 = sadd.s32 %s175, 1
    %p179 = scmp.eq.s32.totalorder %s22, 1
    %p180 = scmp.ne.s32.totalorder %s175, %s177
    %p181 = scmp.eq.s32.totalorder %s22, 0
    %p182 = por %p180, %p181
    %p183 = scmp.ne.s32.totalorder %s175, %s177
    %p184 = scmp.eq.s32.totalorder %s27, 1
    %p185 = por %p183, %p184
    %p186 = scmp.ne.s32.totalorder %s177, %s178
    %p187 = scmp.eq.s32.totalorder %s27, 0
    %p188 = por %p186, %p187
    %p189 = scmp.ne.s32.totalorder %s177, %s178
    %p190 = scmp.eq.s32.totalorder %s28, 1
    %p191 = por %p189, %p190
    %p193 = scmp.ne.s32.totalorder %s178, %s192
    %p194 = scmp.eq.s32.totalorder %s28, 0
    %p195 = por %p193, %p194
    %s197 = sadd.s32 %s196, 1
    %p200 = scmp.eq.s32.totalorder %s22, 1
    %p201 = scmp.ne.s32.totalorder %s196, %s198
    %p202 = scmp.eq.s32.totalorder %s22, 0
    %p203 = por %p201, %p202
    %p204 = scmp.ne.s32.totalorder %s196, %s198
    %p205 = scmp.eq.s32.totalorder %s27, 1
    %p206 = por %p204, %p205
    %p207 = scmp.ne.s32.totalorder %s198, %s199
    %p208 = scmp.eq.s32.totalorder %s27, 0
    %p209 = por %p207, %p208
    %p210 = scmp.ne.s32.totalorder %s198, %s199
    %p211 = scmp.eq.s32.totalorder %s28, 1
    %p212 = por %p210, %p211
    %p214 = scmp.ne.s32.totalorder %s199, %s213
    %p215 = scmp.eq.s32.totalorder %s28, 0
    %p216 = por %p214, %p215
    %s218 = sadd.s32 %s217, 1
    %p221 = scmp.eq.s32.totalorder %s22, 1
    %p222 = scmp.ne.s32.totalorder %s217, %s219
    %p223 = scmp.eq.s32.totalorder %s22, 0
    %p224 = por %p222, %p223
    %p225 = scmp.ne.s32.totalorder %s217, %s219
    %p226 = scmp.eq.s32.totalorder %s27, 1
    %p227 = por %p225, %p226
    %p228 = scmp.ne.s32.totalorder %s219, %s220
    %p229 = scmp.eq.s32.totalorder %s27, 0
    %p230 = por %p228, %p229
    %p231 = scmp.ne.s32.totalorder %s219, %s220
    %p232 = scmp.eq.s32.totalorder %s28, 1
    %p233 = por %p231, %p232
    %p235 = scmp.ne.s32.totalorder %s220, %s234
    %p236 = scmp.eq.s32.totalorder %s28, 0
    %p237 = por %p235, %p236
    %s239 = sadd.s32 %s238, 1
    %p242 = scmp.eq.s32.totalorder %s22, 1
    %p243 = scmp.ne.s32.totalorder %s238, %s240
    %p244 = scmp.eq.s32.totalorder %s22, 0
    %p245 = por %p243, %p244
    %p246 = scmp.ne.s32.totalorder %s238, %s240
    %p247 = scmp.eq.s32.totalorder %s27, 1
    %p248 = por %p246, %p247
    %p249 = scmp.ne.s32.totalorder %s240, %s241
    %p250 = scmp.eq.s32.totalorder %s27, 0
    %p251 = por %p249, %p250
    %p252 = scmp.ne.s32.totalorder %s240, %s241
    %p253 = scmp.eq.s32.totalorder %s28, 1
    %p254 = por %p252, %p253
    %p256 = scmp.ne.s32.totalorder %s241, %s255
    %p257 = scmp.eq.s32.totalorder %s28, 0
    %p258 = por %p256, %p257
    %s260 = sadd.s32 %s259, 1
    %p263 = scmp.eq.s32.totalorder %s22, 1
    %p264 = scmp.ne.s32.totalorder %s259, %s261
    %p265 = scmp.eq.s32.totalorder %s22, 0
    %p266 = por %p264, %p265
    %p267 = scmp.ne.s32.totalorder %s259, %s261
    %p268 = scmp.eq.s32.totalorder %s27, 1
    %p269 = por %p267, %p268
    %p270 = scmp.ne.s32.totalorder %s261, %s262
    %p271 = scmp.eq.s32.totalorder %s27, 0
    %p272 = por %p270, %p271
    %p273 = scmp.ne.s32.totalorder %s261, %s262
    %p274 = scmp.eq.s32.totalorder %s28, 1
    %p275 = por %p273, %p274
    %p277 = scmp.ne.s32.totalorder %s262, %s276
    %p278 = scmp.eq.s32.totalorder %s28, 0
    %p279 = por %p277, %p278
    %s281 = sadd.s32 %s280, 1
    %p284 = scmp.eq.s32.totalorder %s22, 1
    %p285 = scmp.ne.s32.totalorder %s280, %s282
    %p286 = scmp.eq.s32.totalorder %s22, 0
    %p287 = por %p285, %p286
    %p288 = scmp.ne.s32.totalorder %s280, %s282
    %p289 = scmp.eq.s32.totalorder %s27, 1
    %p290 = por %p288, %p289
    %p291 = scmp.ne.s32.totalorder %s282, %s283
    %p292 = scmp.eq.s32.totalorder %s27, 0
    %p293 = por %p291, %p292
    %p294 = scmp.ne.s32.totalorder %s282, %s283
    %p295 = scmp.eq.s32.totalorder %s28, 1
    %p296 = por %p294, %p295
    %p298 = scmp.ne.s32.totalorder %s283, %s297
    %p299 = scmp.eq.s32.totalorder %s28, 0
    %p300 = por %p298, %p299
    %s302 = sadd.s32 %s301, 1
    %p305 = scmp.eq.s32.totalorder %s22, 1
    %p306 = scmp.ne.s32.totalorder %s301, %s303
    %p307 = scmp.eq.s32.totalorder %s22, 0
    %p308 = por %p306, %p307
    %p309 = scmp.ne.s32.totalorder %s301, %s303
    %p310 = scmp.eq.s32.totalorder %s27, 1
    %p311 = por %p309, %p310
    %p312 = scmp.ne.s32.totalorder %s303, %s304
    %p313 = scmp.eq.s32.totalorder %s27, 0
    %p314 = por %p312, %p313
    %p315 = scmp.ne.s32.totalorder %s303, %s304
    %p316 = scmp.eq.s32.totalorder %s28, 1
    %p317 = por %p315, %p316
    %p319 = scmp.ne.s32.totalorder %s304, %s318
    %p320 = scmp.eq.s32.totalorder %s28, 0
    %p321 = por %p319, %p320
    %s323 = sadd.s32 %s322, 1
    %p326 = scmp.eq.s32.totalorder %s22, 1
    %p327 = scmp.ne.s32.totalorder %s322, %s324
    %p328 = scmp.eq.s32.totalorder %s22, 0
    %p329 = por %p327, %p328
    %p330 = scmp.ne.s32.totalorder %s322, %s324
    %p331 = scmp.eq.s32.totalorder %s27, 1
    %p332 = por %p330, %p331
    %p333 = scmp.ne.s32.totalorder %s324, %s325
    %p334 = scmp.eq.s32.totalorder %s27, 0
    %p335 = por %p333, %p334
    %p336 = scmp.ne.s32.totalorder %s324, %s325
    %p337 = scmp.eq.s32.totalorder %s28, 1
    %p338 = por %p336, %p337
    %p340 = scmp.ne.s32.totalorder %s325, %s339
    %p341 = scmp.eq.s32.totalorder %s28, 0
    %p342 = por %p340, %p341
    %s343 = ssub.s32 %s29, %s41
    %s344 = ssub.s32 %s30, %s37
    %s345 = sor.u32 %s343, %s344
    %p346 = scmp.eq.s32.totalorder %s345, 0
    %s348 = sadd.s32 %s347, 1
    %s349 = scalar_select %p346, %s347, %s348
    %p352 = pneg %p346
    %p353 = scmp.eq.s32.totalorder %s22, 1
    %p354 = por %p352, %p353
    %p355 = scmp.ne.s32.totalorder %s347, %s350
    %p356 = scmp.eq.s32.totalorder %s22, 0
    %p357 = por %p355, %p356
    %p358 = scmp.ne.s32.totalorder %s347, %s350
    %p359 = scmp.eq.s32.totalorder %s27, 1
    %p360 = por %p358, %p359
    %p361 = scmp.ne.s32.totalorder %s350, %s351
    %p362 = scmp.eq.s32.totalorder %s27, 0
    %p363 = por %p361, %p362
    %p364 = scmp.ne.s32.totalorder %s350, %s351
    %p365 = scmp.eq.s32.totalorder %s28, 1
    %p366 = por %p364, %p365
    %p368 = scmp.ne.s32.totalorder %s351, %s367
    %p369 = scmp.eq.s32.totalorder %s28, 0
    %p370 = por %p368, %p369
    %s371 = ssub.s32 %s29, %s41
    %s372 = ssub.s32 %s30, %s37
    %s373 = sor.u32 %s371, %s372
    %p374 = scmp.eq.s32.totalorder %s373, 0
    %s376 = sadd.s32 %s375, 1
    %s377 = scalar_select %p374, %s375, %s376
    %p380 = pneg %p374
    %p381 = scmp.eq.s32.totalorder %s22, 1
    %p382 = por %p380, %p381
    %p383 = scmp.ne.s32.totalorder %s375, %s378
    %p384 = scmp.eq.s32.totalorder %s22, 0
    %p385 = por %p383, %p384
    %p386 = scmp.ne.s32.totalorder %s375, %s378
    %p387 = scmp.eq.s32.totalorder %s27, 1
    %p388 = por %p386, %p387
    %p389 = scmp.ne.s32.totalorder %s378, %s379
    %p390 = scmp.eq.s32.totalorder %s27, 0
    %p391 = por %p389, %p390
    %p392 = scmp.ne.s32.totalorder %s378, %s379
    %p393 = scmp.eq.s32.totalorder %s28, 1
    %p394 = por %p392, %p393
    %p396 = scmp.ne.s32.totalorder %s379, %s395
    %p397 = scmp.eq.s32.totalorder %s28, 0
    %p398 = por %p396, %p397
    %s399 = ssub.s32 %s29, %s41
    %s400 = ssub.s32 %s30, %s37
    %s401 = sor.u32 %s399, %s400
    %p402 = scmp.eq.s32.totalorder %s401, 0
    %s404 = sadd.s32 %s403, 1
    %s405 = scalar_select %p402, %s403, %s404
    %p408 = pneg %p402
    %p409 = scmp.eq.s32.totalorder %s22, 1
    %p410 = por %p408, %p409
    %p411 = scmp.ne.s32.totalorder %s403, %s406
    %p412 = scmp.eq.s32.totalorder %s22, 0
    %p413 = por %p411, %p412
    %p414 = scmp.ne.s32.totalorder %s403, %s406
    %p415 = scmp.eq.s32.totalorder %s27, 1
    %p416 = por %p414, %p415
    %p417 = scmp.ne.s32.totalorder %s406, %s407
    %p418 = scmp.eq.s32.totalorder %s27, 0
    %p419 = por %p417, %p418
    %p420 = scmp.ne.s32.totalorder %s406, %s407
    %p421 = scmp.eq.s32.totalorder %s28, 1
    %p422 = por %p420, %p421
    %p424 = scmp.ne.s32.totalorder %s407, %s423
    %p425 = scmp.eq.s32.totalorder %s28, 0
    %p426 = por %p424, %p425
    %p427 = scmp.le.s32.totalorder 1, %s22
    %p428 = scmp.lt.s32.totalorder %s22, 3
    %p429 = pnand %p427, %p428
    %p430 = pneg %p429
    // Predicated region
    $region9: #{kbblock_forward.5} parent=5 // pred_check
      _
    $region10: #{kbblock_forward.5} parent=5 // pred_check_branch
      %432 = sbr.rel (%p429) target = $region12
    $region11: #{kbblock_forward.5} parent=5 // pred_region
      %s433 = ssub.s32 %s22, 1
      // Predicated region
      $region13: #{kbblock_forward.5} parent=11 // pred_check
        %p434 = pneg %p167
      $region14: #{kbblock_forward.5} parent=11 // pred_check_branch
        %436 = sbr.rel (%p434) target = $region16
      $region15: #{kbblock_forward.5} parent=11 // pred_region
        _
      $region16: #{kbblock_forward.5} parent=11 // pred_fallthru
        _
      // Predicated region
      $region17: #{kbblock_forward.5} parent=11 // pred_check
        %p437 = pneg %p188
      $region18: #{kbblock_forward.5} parent=11 // pred_check_branch
        %439 = sbr.rel (%p437) target = $region20
      $region19: #{kbblock_forward.5} parent=11 // pred_region
        _
      $region20: #{kbblock_forward.5} parent=11 // pred_fallthru
        _
      // Predicated region
      $region21: #{kbblock_forward.5} parent=11 // pred_check
        %p440 = pneg %p209
      $region22: #{kbblock_forward.5} parent=11 // pred_check_branch
        %442 = sbr.rel (%p440) target = $region24
      $region23: #{kbblock_forward.5} parent=11 // pred_region
        _
      $region24: #{kbblock_forward.5} parent=11 // pred_fallthru
        _
      // Predicated region
      $region25: #{kbblock_forward.5} parent=11 // pred_check
        %p443 = pneg %p230
      $region26: #{kbblock_forward.5} parent=11 // pred_check_branch
        %445 = sbr.rel (%p443) target = $region28
      $region27: #{kbblock_forward.5} parent=11 // pred_region
        _
      $region28: #{kbblock_forward.5} parent=11 // pred_fallthru
        _
      // Predicated region
      $region29: #{kbblock_forward.5} parent=11 // pred_check
        %p446 = pneg %p251
      $region30: #{kbblock_forward.5} parent=11 // pred_check_branch
        %448 = sbr.rel (%p446) target = $region32
      $region31: #{kbblock_forward.5} parent=11 // pred_region
        _
      $region32: #{kbblock_forward.5} parent=11 // pred_fallthru
        _
      // Predicated region
      $region33: #{kbblock_forward.5} parent=11 // pred_check
        %p449 = pneg %p272
      $region34: #{kbblock_forward.5} parent=11 // pred_check_branch
        %451 = sbr.rel (%p449) target = $region36
      $region35: #{kbblock_forward.5} parent=11 // pred_region
        _
      $region36: #{kbblock_forward.5} parent=11 // pred_fallthru
        _
      // Predicated region
      $region37: #{kbblock_forward.5} parent=11 // pred_check
        %p452 = pneg %p293
      $region38: #{kbblock_forward.5} parent=11 // pred_check_branch
        %454 = sbr.rel (%p452) target = $region40
      $region39: #{kbblock_forward.5} parent=11 // pred_region
        _
      $region40: #{kbblock_forward.5} parent=11 // pred_fallthru
        _
      // Predicated region
      $region41: #{kbblock_forward.5} parent=11 // pred_check
        %p455 = pneg %p314
      $region42: #{kbblock_forward.5} parent=11 // pred_check_branch
        %457 = sbr.rel (%p455) target = $region44
      $region43: #{kbblock_forward.5} parent=11 // pred_region
        _
      $region44: #{kbblock_forward.5} parent=11 // pred_fallthru
        _
      // Predicated region
      $region45: #{kbblock_forward.5} parent=11 // pred_check
        %p458 = pneg %p335
      $region46: #{kbblock_forward.5} parent=11 // pred_check_branch
        %460 = sbr.rel (%p458) target = $region48
      $region47: #{kbblock_forward.5} parent=11 // pred_region
        _
      $region48: #{kbblock_forward.5} parent=11 // pred_fallthru
        _
    $region12: #{kbblock_forward.5} parent=5 // pred_fallthru
      _
    %p461 = scmp.lt.s32.totalorder %s22, 2
    // Predicated region
    $region49: #{kbblock_forward.5} parent=5 // pred_check
      %p462 = pneg %p461
    $region50: #{kbblock_forward.5} parent=5 // pred_check_branch
      %464 = sbr.rel (%p462) target = $region52
    $region51: #{kbblock_forward.5} parent=5 // pred_region
      // Predicated region
      $region53: #{kbblock_forward.5} parent=51 // pred_check
        %p465 = pneg %p56
      $region54: #{kbblock_forward.5} parent=51 // pred_check_branch
        %467 = sbr.rel (%p465) target = $region56
      $region55: #{kbblock_forward.5} parent=51 // pred_region
        %s468 = smul.u32 2, %s30
        %p469 = scmp.lt.s32.totalorder %s29, 1
        %s470 = scalar_select %p469, %s29, 1
        %p471 = scmp.lt.s32.totalorder %s468, 1
        %s472 = scalar_select %p471, %s468, 1
        %s473 = smul.addr %s470, 50
        %s474 = sadd.s32 %s472, %s473
        %s475 = smul.addr %s474, 4
        %s476 = scalar_lea.vmem %s0, %s475
        %s477 = smul.u32 2, %s30
      $region56: #{kbblock_forward.5} parent=51 // pred_fallthru
        _
      // Predicated region
      $region57: #{kbblock_forward.5} parent=51 // pred_check
        %p478 = pneg %p84
      $region58: #{kbblock_forward.5} parent=51 // pred_check_branch
        %480 = sbr.rel (%p478) target = $region60
      $region59: #{kbblock_forward.5} parent=51 // pred_region
        %s481 = smul.u32 2, %s30
        %p482 = scmp.lt.s32.totalorder %s29, 1
        %s483 = scalar_select %p482, %s29, 1
        %p484 = scmp.lt.s32.totalorder %s481, 1
        %s485 = scalar_select %p484, %s481, 1
        %s486 = smul.addr %s483, 18
        %s487 = sadd.s32 %s485, %s486
        %s488 = smul.addr %s487, 4
        %s489 = scalar_lea.vmem %s1, %s488
        %s490 = smul.u32 2, %s30
      $region60: #{kbblock_forward.5} parent=51 // pred_fallthru
        _
      // Predicated region
      $region61: #{kbblock_forward.5} parent=51 // pred_check
        %p491 = pneg %p112
      $region62: #{kbblock_forward.5} parent=51 // pred_check_branch
        %493 = sbr.rel (%p491) target = $region64
      $region63: #{kbblock_forward.5} parent=51 // pred_region
        %s494 = smul.u32 2, %s30
        %p495 = scmp.lt.s32.totalorder %s29, 1
        %s496 = scalar_select %p495, %s29, 1
        %p497 = scmp.lt.s32.totalorder %s494, 1
        %s498 = scalar_select %p497, %s494, 1
        %s499 = smul.addr %s496, 18
        %s500 = sadd.s32 %s498, %s499
        %s501 = smul.addr %s500, 4
        %s502 = scalar_lea.vmem %s2, %s501
        %s503 = smul.u32 2, %s30
      $region64: #{kbblock_forward.5} parent=51 // pred_fallthru
        _
      // Predicated region
      $region65: #{kbblock_forward.5} parent=51 // pred_check
        %p504 = pneg %p140
      $region66: #{kbblock_forward.5} parent=51 // pred_check_branch
        %506 = sbr.rel (%p504) target = $region68
      $region67: #{kbblock_forward.5} parent=51 // pred_region
        %s507 = smul.u32 2, %s30
        %p508 = scmp.lt.s32.totalorder %s29, 1
        %s509 = scalar_select %p508, %s29, 1
        %p510 = scmp.lt.s32.totalorder %s507, 1
        %s511 = scalar_select %p510, %s507, 1
        %s512 = smul.addr %s509, 8
        %s513 = sadd.s32 %s511, %s512
        %s514 = smul.addr %s513, 8
        %s515 = scalar_lea.vmem %s3, %s514
        %s516 = smul.u32 2, %s30
      $region68: #{kbblock_forward.5} parent=51 // pred_fallthru
        _
    $region52: #{kbblock_forward.5} parent=5 // pred_fallthru
      _
    %p517 = scmp.le.s32.totalorder 1, %s22
    %p518 = scmp.lt.s32.totalorder %s22, 3
    %p519 = pnand %p517, %p518
    %p520 = pneg %p519
    // Predicated region
    $region69: #{kbblock_forward.5} parent=5 // pred_check
      _
    $region70: #{kbblock_forward.5} parent=5 // pred_check_branch
      %522 = sbr.rel (%p519) target = $region72
    $region71: #{kbblock_forward.5} parent=5 // pred_region
      %s523 = ssub.s32 %s22, 1
      %s524 = smul.u32 2, %s32
      %p525 = scmp.lt.s32.totalorder %s31, 1
      %s526 = scalar_select %p525, %s31, 1
      %p527 = scmp.lt.s32.totalorder %s524, 1
      %s528 = scalar_select %p527, %s524, 1
      %s529 = smul.addr %s526, 50
      %s530 = sadd.s32 %s528, %s529
      %s531 = smul.addr %s530, 4
      %s532 = scalar_lea.vmem %s0, %s531
      %p533 = pneg %p62
      %p534 = pneg %p59
      %s535 = smul.u32 2, %s32
      %p536 = scmp.lt.s32.totalorder %s31, 1
      %s537 = scalar_select %p536, %s31, 1
      %p538 = scmp.lt.s32.totalorder %s535, 1
      %s539 = scalar_select %p538, %s535, 1
      %s540 = smul.addr %s537, 18
      %s541 = sadd.s32 %s539, %s540
      %s542 = smul.addr %s541, 4
      %s543 = scalar_lea.vmem %s1, %s542
      %p544 = pneg %p90
      %p545 = pneg %p87
      %s546 = smul.u32 2, %s32
      %p547 = scmp.lt.s32.totalorder %s31, 1
      %s548 = scalar_select %p547, %s31, 1
      %p549 = scmp.lt.s32.totalorder %s546, 1
      %s550 = scalar_select %p549, %s546, 1
      %s551 = smul.addr %s548, 18
      %s552 = sadd.s32 %s550, %s551
      %s553 = smul.addr %s552, 4
      %s554 = scalar_lea.vmem %s2, %s553
      %p555 = pneg %p118
      %p556 = pneg %p115
      %s557 = smul.u32 2, %s32
      %p558 = scmp.lt.s32.totalorder %s31, 1
      %s559 = scalar_select %p558, %s31, 1
      %p560 = scmp.lt.s32.totalorder %s557, 1
      %s561 = scalar_select %p560, %s557, 1
      %s562 = smul.addr %s559, 8
      %s563 = sadd.s32 %s561, %s562
      %s564 = smul.addr %s563, 8
      %s565 = scalar_lea.vmem %s3, %s564
      %p566 = pneg %p146
      %p567 = pneg %p143
      %p568 = pneg %p167
      %p569 = pneg %p164
      %p570 = pneg %p188
      %p571 = pneg %p185
      %p572 = pneg %p209
      %p573 = pneg %p206
      %p574 = pneg %p230
      %p575 = pneg %p227
      %p576 = pneg %p251
      %p577 = pneg %p248
      %p578 = pneg %p272
      %p579 = pneg %p269
      %p580 = pneg %p293
      %p581 = pneg %p290
      %p582 = pneg %p314
      %p583 = pneg %p311
      %p584 = pneg %p335
      %p585 = pneg %p332
      %p586 = pneg %p363
      %p587 = pneg %p360
      %s588 = smul.u32 2, %s32
      %p589 = scmp.lt.s32.totalorder %s31, 1
      %s590 = scalar_select %p589, %s31, 1
      %p591 = scmp.lt.s32.totalorder %s588, 1
      %s592 = scalar_select %p591, %s588, 1
      %s593 = smul.addr %s590, 2
      %s594 = sadd.s32 %s592, %s593
      %s595 = smul.addr %s594, 8
      %s596 = scalar_lea.vmem %s13, %s595
      %p597 = pneg %p391
      %p598 = pneg %p388
      %s599 = smul.u32 2, %s32
      %p600 = scmp.lt.s32.totalorder %s31, 1
      %s601 = scalar_select %p600, %s31, 1
      %p602 = scmp.lt.s32.totalorder %s599, 1
      %s603 = scalar_select %p602, %s599, 1
      %s604 = smul.addr %s601, 8
      %s605 = sadd.s32 %s603, %s604
      %s606 = smul.addr %s605, 8
      %s607 = scalar_lea.vmem %s14, %s606
      %p608 = pneg %p419
      %p609 = pneg %p416
      %s610 = smul.u32 2, %s32
      %p611 = scmp.lt.s32.totalorder %s31, 1
      %s612 = scalar_select %p611, %s31, 1
      %p613 = scmp.lt.s32.totalorder %s610, 1
      %s614 = scalar_select %p613, %s610, 1
      %s615 = smul.addr %s612, 2
      %s616 = sadd.s32 %s614, %s615
      %s617 = smul.addr %s616, 8
      %s618 = scalar_lea.vmem %s15, %s617
      %s619 = smul.u32 2, %s32
      %p620 = scmp.lt.s32.totalorder %s31, 1
      %s621 = scalar_select %p620, %s31, 1
      %p622 = scmp.lt.s32.totalorder %s619, 1
      %s623 = scalar_select %p622, %s619, 1
      %s624 = smul.addr %s621, 50
      %s625 = sadd.s32 %s623, %s624
      %s626 = smul.addr %s625, 4
      %s627 = scalar_lea.vmem %s0, %s626
      %s628 = smul.u32 2, %s32
      %s629 = smul.u32 2, %s32
      %p630 = scmp.lt.s32.totalorder %s31, 1
      %s631 = scalar_select %p630, %s31, 1
      %p632 = scmp.lt.s32.totalorder %s629, 1
      %s633 = scalar_select %p632, %s629, 1
      %s634 = smul.addr %s631, 18
      %s635 = sadd.s32 %s633, %s634
      %s636 = smul.addr %s635, 4
      %s637 = scalar_lea.vmem %s1, %s636
      %s638 = smul.u32 2, %s32
      %s639 = smul.u32 2, %s32
      %p640 = scmp.lt.s32.totalorder %s31, 1
      %s641 = scalar_select %p640, %s31, 1
      %p642 = scmp.lt.s32.totalorder %s639, 1
      %s643 = scalar_select %p642, %s639, 1
      %s644 = smul.addr %s641, 18
      %s645 = sadd.s32 %s643, %s644
      %s646 = smul.addr %s645, 4
      %s647 = scalar_lea.vmem %s2, %s646
      %s648 = smul.u32 2, %s32
      %s649 = smul.u32 2, %s32
      %p650 = scmp.lt.s32.totalorder %s31, 1
      %s651 = scalar_select %p650, %s31, 1
      %p652 = scmp.lt.s32.totalorder %s649, 1
      %s653 = scalar_select %p652, %s649, 1
      %s654 = smul.addr %s651, 8
      %s655 = sadd.s32 %s653, %s654
      %s656 = smul.addr %s655, 8
      %s657 = scalar_lea.vmem %s3, %s656
      %s658 = smul.u32 2, %s32
      %s659 = smul.u32 2, %s32
      %p660 = scmp.lt.s32.totalorder %s31, 1
      %s661 = scalar_select %p660, %s31, 1
      %p662 = scmp.lt.s32.totalorder %s659, 1
      %s663 = scalar_select %p662, %s659, 1
      %s664 = smul.addr %s661, 2
      %s665 = sadd.s32 %s663, %s664
      %s666 = smul.addr %s665, 8
      %s667 = scalar_lea.vmem %s13, %s666
      %s668 = smul.u32 2, %s32
      %s669 = smul.u32 2, %s32
      %p670 = scmp.lt.s32.totalorder %s31, 1
      %s671 = scalar_select %p670, %s31, 1
      %p672 = scmp.lt.s32.totalorder %s669, 1
      %s673 = scalar_select %p672, %s669, 1
      %s674 = smul.addr %s671, 8
      %s675 = sadd.s32 %s673, %s674
      %s676 = smul.addr %s675, 8
      %s677 = scalar_lea.vmem %s14, %s676
      %s678 = smul.u32 2, %s32
      %s679 = smul.u32 2, %s32
      %p680 = scmp.lt.s32.totalorder %s31, 1
      %s681 = scalar_select %p680, %s31, 1
      %p682 = scmp.lt.s32.totalorder %s679, 1
      %s683 = scalar_select %p682, %s679, 1
      %s684 = smul.addr %s681, 2
      %s685 = sadd.s32 %s683, %s684
      %s686 = smul.addr %s685, 8
      %s687 = scalar_lea.vmem %s15, %s686
      %s688 = smul.u32 2, %s32
      %v690 = vld [vmem:[%s4] sm:$0xff]
      %v691 = vld [vmem:[%s627] sm:$0xff]
      %v692 = vld [vmem:[%s627 + $0x8] sm:$0xff]
      %v693 = vld [vmem:[%s627 + $0x10] sm:$0xff]
      %v694 = vld [vmem:[%s627 + $0x18] sm:$0xff]
      %v695 = vld [vmem:[%s627 + $0x20] sm:$0xff]
      %v696 = vld [vmem:[%s627 + $0x28] sm:$0xff]
      %v697 = vld [vmem:[%s627 + $0x30] sm:$0xff]
      %v698 = vld [vmem:[%s627 + $0x38] sm:$0xff]
      %v699 = vld [vmem:[%s627 + $0x40] sm:$0xff]
      %v700 = vld [vmem:[%s627 + $0x48] sm:$0xff]
      %v701 = vld [vmem:[%s627 + $0x50] sm:$0xff]
      %v702 = vld [vmem:[%s627 + $0x58] sm:$0xff]
      %v703 = vld [vmem:[%s627 + $0x60] sm:$0xff]
      %v704 = vld [vmem:[%s627 + $0x68] sm:$0xff]
      %v705 = vld [vmem:[%s627 + $0x70] sm:$0xff]
      %v706 = vld [vmem:[%s627 + $0x78] sm:$0xff]
      %v707 = vld [vmem:[%s627 + $0x80] sm:$0xff]
      %v708 = vld [vmem:[%s627 + $0x88] sm:$0xff]
      %v709 = vld [vmem:[%s627 + $0x90] sm:$0xff]
      %v710 = vld [vmem:[%s627 + $0x98] sm:$0xff]
      %v711 = vld [vmem:[%s627 + $0xa0] sm:$0xff]
      %v712 = vld [vmem:[%s627 + $0xa8] sm:$0xff]
      %v713 = vld [vmem:[%s627 + $0xb0] sm:$0xff]
      %v714 = vld [vmem:[%s627 + $0xb8] sm:$0xff]
      %v715 = vld [vmem:[%s627 + $0xc0] sm:$0xff]
      %v716 = vld [vmem:[%s5] sm:$0xff]
      %718 = vset.pattern.permute.xlu0 0
      %719 = vperm.xlu0 %718, %v716
      %v720 = vpop.permute.xlu0 %719
      %v723 = vunpack.c.l.b16 %v690
      %v724 = vunpack.c.h.b16 %v690
      %v725 = vpack.c.b16 %v723, %v723
      %v726 = vpack.c.b16 %v724, %v724
      %v753 = vunpack.c.l.b16 %v691
      %v754 = vunpack.c.h.b16 %v691
      %v755 = vunpack.c.l.b16 %v692
      %v756 = vunpack.c.h.b16 %v692
      %v757 = vunpack.c.l.b16 %v693
      %v758 = vunpack.c.h.b16 %v693
      %v759 = vunpack.c.l.b16 %v694
      %v760 = vunpack.c.h.b16 %v694
      %v761 = vunpack.c.l.b16 %v695
      %v762 = vunpack.c.h.b16 %v695
      %v763 = vunpack.c.l.b16 %v696
      %v764 = vunpack.c.h.b16 %v696
      %v765 = vunpack.c.l.b16 %v697
      %v766 = vunpack.c.h.b16 %v697
      %v767 = vunpack.c.l.b16 %v698
      %v768 = vunpack.c.h.b16 %v698
      %v769 = vunpack.c.l.b16 %v699
      %v770 = vunpack.c.h.b16 %v699
      %v771 = vunpack.c.l.b16 %v700
      %v772 = vunpack.c.h.b16 %v700
      %v773 = vunpack.c.l.b16 %v701
      %v774 = vunpack.c.h.b16 %v701
      %v775 = vunpack.c.l.b16 %v702
      %v776 = vunpack.c.h.b16 %v702
      %v777 = vunpack.c.l.b16 %v703
      %v778 = vunpack.c.h.b16 %v703
      %v779 = vunpack.c.l.b16 %v704
      %v780 = vunpack.c.h.b16 %v704
      %v781 = vunpack.c.l.b16 %v705
      %v782 = vunpack.c.h.b16 %v705
      %v783 = vunpack.c.l.b16 %v706
      %v784 = vunpack.c.h.b16 %v706
      %v785 = vunpack.c.l.b16 %v707
      %v786 = vunpack.c.h.b16 %v707
      %v787 = vunpack.c.l.b16 %v708
      %v788 = vunpack.c.h.b16 %v708
      %v789 = vunpack.c.l.b16 %v709
      %v790 = vunpack.c.h.b16 %v709
      %v791 = vunpack.c.l.b16 %v710
      %v792 = vunpack.c.h.b16 %v710
      %v793 = vunpack.c.l.b16 %v711
      %v794 = vunpack.c.h.b16 %v711
      %v795 = vunpack.c.l.b16 %v712
      %v796 = vunpack.c.h.b16 %v712
      %v797 = vunpack.c.l.b16 %v713
      %v798 = vunpack.c.h.b16 %v713
      %v799 = vunpack.c.l.b16 %v714
      %v800 = vunpack.c.h.b16 %v714
      %v801 = vunpack.c.l.b16 %v715
      %v802 = vunpack.c.h.b16 %v715
      %v803 = vpack.c.b16 %v755, %v753
      %v804 = vpack.c.b16 %v756, %v754
      %v805 = vpack.c.b16 %v759, %v757
      %v806 = vpack.c.b16 %v760, %v758
      %v807 = vpack.c.b16 %v763, %v761
      %v808 = vpack.c.b16 %v764, %v762
      %v809 = vpack.c.b16 %v767, %v765
      %v810 = vpack.c.b16 %v768, %v766
      %v811 = vpack.c.b16 %v771, %v769
      %v812 = vpack.c.b16 %v772, %v770
      %v813 = vpack.c.b16 %v775, %v773
      %v814 = vpack.c.b16 %v776, %v774
      %v815 = vpack.c.b16 %v779, %v777
      %v816 = vpack.c.b16 %v780, %v778
      %v817 = vpack.c.b16 %v783, %v781
      %v818 = vpack.c.b16 %v784, %v782
      %v819 = vpack.c.b16 %v787, %v785
      %v820 = vpack.c.b16 %v788, %v786
      %v821 = vpack.c.b16 %v791, %v789
      %v822 = vpack.c.b16 %v792, %v790
      %v823 = vpack.c.b16 %v795, %v793
      %v824 = vpack.c.b16 %v796, %v794
      %v825 = vpack.c.b16 %v799, %v797
      %v826 = vpack.c.b16 %v800, %v798
      %v827 = vpack.c.b16 %v801, %v801
      %v828 = vpack.c.b16 %v802, %v802
      %vm853 = vcmask 588800
      %v855 = vsel %vm853, %v726, 0
      %vm857 = vcmask 1043456
      %v859 = vsel %vm857, %v827, 0
      %v862 = vsel %vm857, %v828, 0
      %864 = vmatpush.bf16.msra.mxu0 %v817
      %865 = vmatpush.bf16.msra.mxu0 %v815
      %866 = vmatpush.bf16.msra.mxu0 %v813
      %867 = vmatpush.bf16.msra.mxu0 %v811
      %868 = vmatpush.bf16.msra.mxu0 %v809
      %869 = vmatpush.bf16.msra.mxu0 %v807
      %870 = vmatpush.bf16.msra.mxu0 %v805
      %871 = vmatpush.bf16.msra.mxu0 %v803
      %872 = vmatmul.bf16.gmra.mxu0 %v725
      %v873 = vpop.f32.mrf.mxu0
      %v874 = vadd.f32 %v720, %v873
      %v875 = vpop.f32.mrf.mxu0
      %876 = vdwg.mxu0
      %877 = vmatpush.bf16.msra.mxu0 0
      %878 = vmatpush.bf16.msra.mxu0 0
      %879 = vmatpush.bf16.msra.mxu0 0
      %880 = vmatpush.bf16.msra.mxu0 %v859
      %881 = vmatpush.bf16.msra.mxu0 %v825
      %882 = vmatpush.bf16.msra.mxu0 %v823
      %883 = vmatpush.bf16.msra.mxu0 %v821
      %884 = vmatpush.bf16.msra.mxu0 %v819
      %885 = vmatmul.bf16.gmra.mxu0 %v855
      %v886 = vpop.f32.mrf.mxu0
      %v887 = vadd.f32 %v874, %v886
      %v888 = vpop.f32.mrf.mxu0
      %889 = vdwg.mxu0
      %890 = vmatpush.bf16.msra.mxu0 %v818
      %891 = vmatpush.bf16.msra.mxu0 %v816
      %892 = vmatpush.bf16.msra.mxu0 %v814
      %893 = vmatpush.bf16.msra.mxu0 %v812
      %894 = vmatpush.bf16.msra.mxu0 %v810
      %895 = vmatpush.bf16.msra.mxu0 %v808
      %896 = vmatpush.bf16.msra.mxu0 %v806
      %897 = vmatpush.bf16.msra.mxu0 %v804
      %898 = vmatmul.bf16.gmra.mxu0 %v725
      %v899 = vpop.f32.mrf.mxu0
      %v900 = vadd.f32 %v720, %v899
      %v901 = vpop.f32.mrf.mxu0
      %902 = vdwg.mxu0
      %903 = vmatpush.bf16.msra.mxu0 0
      %904 = vmatpush.bf16.msra.mxu0 0
      %905 = vmatpush.bf16.msra.mxu0 0
      %906 = vmatpush.bf16.msra.mxu0 %v862
      %907 = vmatpush.bf16.msra.mxu0 %v826
      %908 = vmatpush.bf16.msra.mxu0 %v824
      %909 = vmatpush.bf16.msra.mxu0 %v822
      %910 = vmatpush.bf16.msra.mxu0 %v820
      %911 = vmatmul.bf16.gmra.mxu0 %v855
      %v912 = vpop.f32.mrf.mxu0
      %v913 = vadd.f32 %v900, %v912
      %v914 = vpop.f32.mrf.mxu0
      %915 = vdwg.mxu0
      %916 = vst [vmem:[%s667] sm:$0xff] %v887
      %917 = vst [vmem:[%s667 + $0x8] sm:$0xff] %v913
      %v918 = vld [vmem:[%s6] sm:$0xf]
      %v919 = vld [vmem:[%s637] sm:$0xff]
      %v920 = vld [vmem:[%s637 + $0x8] sm:$0xff]
      %v921 = vld [vmem:[%s637 + $0x10] sm:$0xff]
      %v922 = vld [vmem:[%s637 + $0x18] sm:$0xff]
      %v923 = vld [vmem:[%s637 + $0x20] sm:$0xff]
      %v924 = vld [vmem:[%s637 + $0x28] sm:$0xff]
      %v925 = vld [vmem:[%s637 + $0x30] sm:$0xff]
      %v926 = vld [vmem:[%s637 + $0x38] sm:$0xff]
      %v927 = vld [vmem:[%s637 + $0x40] sm:$0xff]
      %v928 = vld [vmem:[%s7] sm:$0xff]
      %930 = vset.pattern.permute.xlu0 0
      %931 = vperm.xlu0 %930, %v928
      %v932 = vpop.permute.xlu0 %931
      %v943 = vunpack.c.l.b16 %v919
      %v944 = vunpack.c.h.b16 %v919
      %v945 = vunpack.c.l.b16 %v920
      %v946 = vunpack.c.h.b16 %v920
      %v947 = vunpack.c.l.b16 %v921
      %v948 = vunpack.c.h.b16 %v921
      %v949 = vunpack.c.l.b16 %v922
      %v950 = vunpack.c.h.b16 %v922
      %v951 = vunpack.c.l.b16 %v923
      %v952 = vunpack.c.h.b16 %v923
      %v953 = vunpack.c.l.b16 %v924
      %v954 = vunpack.c.h.b16 %v924
      %v955 = vunpack.c.l.b16 %v925
      %v956 = vunpack.c.h.b16 %v925
      %v957 = vunpack.c.l.b16 %v926
      %v958 = vunpack.c.h.b16 %v926
      %v959 = vunpack.c.l.b16 %v927
      %v960 = vunpack.c.h.b16 %v927
      %v961 = vpack.c.b16 %v945, %v943
      %v962 = vpack.c.b16 %v946, %v944
      %v963 = vpack.c.b16 %v949, %v947
      %v964 = vpack.c.b16 %v950, %v948
      %v965 = vpack.c.b16 %v953, %v951
      %v966 = vpack.c.b16 %v954, %v952
      %v967 = vpack.c.b16 %v957, %v955
      %v968 = vpack.c.b16 %v958, %v956
      %v969 = vpack.c.b16 %v959, %v959
      %v970 = vpack.c.b16 %v960, %v960
      %v980 = vsel %vm853, %v918, 0
      %v983 = vsel %vm857, %v969, 0
      %v986 = vsel %vm857, %v970, 0
      %988 = vmatpush.bf16.msra.mxu0 0
      %989 = vmatpush.bf16.msra.mxu0 0
      %990 = vmatpush.bf16.msra.mxu0 0
      %991 = vmatpush.bf16.msra.mxu0 %v983
      %992 = vmatpush.bf16.msra.mxu0 %v967
      %993 = vmatpush.bf16.msra.mxu0 %v965
      %994 = vmatpush.bf16.msra.mxu0 %v963
      %995 = vmatpush.bf16.msra.mxu0 %v961
      %996 = vmatmul.bf16.gmra.mxu0 %v980
      %v997 = vpop.f32.mrf.mxu0
      %v998 = vadd.f32 %v932, %v997
      %v999 = vpop.f32.mrf.mxu0
      %1000 = vdwg.mxu0
      %1001 = vmatpush.bf16.msra.mxu0 0
      %1002 = vmatpush.bf16.msra.mxu0 0
      %1003 = vmatpush.bf16.msra.mxu0 0
      %1004 = vmatpush.bf16.msra.mxu0 %v986
      %1005 = vmatpush.bf16.msra.mxu0 %v968
      %1006 = vmatpush.bf16.msra.mxu0 %v966
      %1007 = vmatpush.bf16.msra.mxu0 %v964
      %1008 = vmatpush.bf16.msra.mxu0 %v962
      %1009 = vmatmul.bf16.gmra.mxu0 %v980
      %v1010 = vpop.f32.mrf.mxu0
      %v1011 = vadd.f32 %v932, %v1010
      %v1012 = vpop.f32.mrf.mxu0
      %1013 = vdwg.mxu0
      %v1016 = vrot.slane %v998, 4
      %v1017 = vrot.slane %v1011, 4
      %v1020 = vmul.f32 %v998, %v1016
      %v1021 = vmul.f32 %v1011, %v1017
      %v1022 = vld [vmem:[%s8] sm:$0xff]
      %v1023 = vld [vmem:[%s8 + $0x8] sm:$0xff]
      %v1024 = vld [vmem:[%s8 + $0x10] sm:$0xff]
      %v1025 = vld [vmem:[%s8 + $0x18] sm:$0xff]
      %v1026 = vld [vmem:[%s9] sm:$0xff]
      %v1027 = vld [vmem:[%s9 + $0x8] sm:$0xff]
      %v1028 = vld [vmem:[%s9 + $0x10] sm:$0xff]
      %v1029 = vld [vmem:[%s9 + $0x18] sm:$0xff]
      %1031 = vset.pattern.permute.xlu0 0
      %1032 = vperm.xlu0 %1031, %v1026
      %v1033 = vpop.permute.xlu0 %1032
      %1036 = vset.pattern.permute.xlu0 0
      %1037 = vperm.xlu0 %1036, %v1027
      %v1038 = vpop.permute.xlu0 %1037
      %1041 = vset.pattern.permute.xlu0 0
      %1042 = vperm.xlu0 %1041, %v1028
      %v1043 = vpop.permute.xlu0 %1042
      %1046 = vset.pattern.permute.xlu0 0
      %1047 = vperm.xlu0 %1046, %v1029
      %v1048 = vpop.permute.xlu0 %1047
      %vm1050 = vcmask 31744
      %v1052 = vsel %vm1050, %v1022, 0
      %v1055 = vsel %vm1050, %v1023, 0
      %v1058 = vsel %vm1050, %v1024, 0
      %v1061 = vsel %vm1050, %v1025, 0
      %v1064 = vsel %vm857, %v1020, 0
      %v1067 = vsel %vm857, %v1021, 0
      %1069 = vmatpush.msra.mxu0 0.0
      %1070 = vmatpush.msra.mxu0 0.0
      %1071 = vmatpush.msra.mxu0 0.0
      %1072 = vmatpush.msra.mxu0 0.0
      %1073 = vmatpush.msra.mxu0 0.0
      %1074 = vmatpush.msra.mxu0 0.0
      %1075 = vmatpush.msra.mxu0 0.0
      %1076 = vmatpush.msra.mxu0 0.0
      %1077 = vmatpush.msra.mxu0 0.0
      %1078 = vmatpush.msra.mxu0 0.0
      %1079 = vmatpush.msra.mxu0 0.0
      %1080 = vmatpush.msra.mxu0 0.0
      %1081 = vmatpush.msra.mxu0 0.0
      %1082 = vmatpush.msra.mxu0 0.0
      %1083 = vmatpush.msra.mxu0 0.0
      %1084 = vmatpush.msra.mxu0 %v1064
      %1085 = vmatmul.f32.gmra.mxu0 %v1052
      %v1086 = vpop.f32.mrf.mxu0
      %v1087 = vadd.f32 %v1033, %v1086
      %1088 = vmatmul.f32.gmra.mxu0 %v1055
      %v1089 = vpop.f32.mrf.mxu0
      %v1090 = vadd.f32 %v1038, %v1089
      %1091 = vmatmul.f32.gmra.mxu0 %v1058
      %v1092 = vpop.f32.mrf.mxu0
      %v1093 = vadd.f32 %v1043, %v1092
      %1094 = vmatmul.f32.gmra.mxu0 %v1061
      %v1095 = vpop.f32.mrf.mxu0
      %v1096 = vadd.f32 %v1048, %v1095
      %1097 = vdwg.mxu0
      %1098 = vmatpush.msra.mxu0 0.0
      %1099 = vmatpush.msra.mxu0 0.0
      %1100 = vmatpush.msra.mxu0 0.0
      %1101 = vmatpush.msra.mxu0 0.0
      %1102 = vmatpush.msra.mxu0 0.0
      %1103 = vmatpush.msra.mxu0 0.0
      %1104 = vmatpush.msra.mxu0 0.0
      %1105 = vmatpush.msra.mxu0 0.0
      %1106 = vmatpush.msra.mxu0 0.0
      %1107 = vmatpush.msra.mxu0 0.0
      %1108 = vmatpush.msra.mxu0 0.0
      %1109 = vmatpush.msra.mxu0 0.0
      %1110 = vmatpush.msra.mxu0 0.0
      %1111 = vmatpush.msra.mxu0 0.0
      %1112 = vmatpush.msra.mxu0 0.0
      %1113 = vmatpush.msra.mxu0 %v1067
      %1114 = vmatmul.f32.gmra.mxu0 %v1052
      %v1115 = vpop.f32.mrf.mxu0
      %v1116 = vadd.f32 %v1033, %v1115
      %1117 = vmatmul.f32.gmra.mxu0 %v1055
      %v1118 = vpop.f32.mrf.mxu0
      %v1119 = vadd.f32 %v1038, %v1118
      %1120 = vmatmul.f32.gmra.mxu0 %v1058
      %v1121 = vpop.f32.mrf.mxu0
      %v1122 = vadd.f32 %v1043, %v1121
      %1123 = vmatmul.f32.gmra.mxu0 %v1061
      %v1124 = vpop.f32.mrf.mxu0
      %v1125 = vadd.f32 %v1048, %v1124
      %1126 = vdwg.mxu0
      %v1127 = vld [vmem:[%s657] sm:$0xff]
      %v1128 = vld [vmem:[%s657 + $0x8] sm:$0xff]
      %v1129 = vld [vmem:[%s657 + $0x10] sm:$0xff]
      %v1130 = vld [vmem:[%s657 + $0x18] sm:$0xff]
      %v1131 = vld [vmem:[%s657 + $0x20] sm:$0xff]
      %v1132 = vld [vmem:[%s657 + $0x28] sm:$0xff]
      %v1133 = vld [vmem:[%s657 + $0x30] sm:$0xff]
      %v1134 = vld [vmem:[%s657 + $0x38] sm:$0xff]
      %v1135 = vld [vmem:[%s10] sm:$0xff]
      %v1136 = vld [vmem:[%s10 + $0x8] sm:$0xff]
      %v1137 = vld [vmem:[%s10 + $0x10] sm:$0xff]
      %v1138 = vld [vmem:[%s10 + $0x18] sm:$0xff]
      %1140 = vset.pattern.permute.xlu0 0
      %1141 = vperm.xlu0 %1140, %v1135
      %v1142 = vpop.permute.xlu0 %1141
      %1145 = vset.pattern.permute.xlu0 0
      %1146 = vperm.xlu0 %1145, %v1136
      %v1147 = vpop.permute.xlu0 %1146
      %1150 = vset.pattern.permute.xlu0 0
      %1151 = vperm.xlu0 %1150, %v1137
      %v1152 = vpop.permute.xlu0 %1151
      %1155 = vset.pattern.permute.xlu0 0
      %1156 = vperm.xlu0 %1155, %v1138
      %v1157 = vpop.permute.xlu0 %1156
      %v1159 = vmul.f32 %v1087, %v1142
      %v1160 = vmul.f32 %v1116, %v1142
      %v1161 = vmul.f32 %v1090, %v1147
      %v1162 = vmul.f32 %v1119, %v1147
      %v1163 = vmul.f32 %v1093, %v1152
      %v1164 = vmul.f32 %v1122, %v1152
      %v1165 = vmul.f32 %v1096, %v1157
      %v1166 = vmul.f32 %v1125, %v1157
      %v1167 = vadd.f32 %v1127, %v1159
      %v1168 = vadd.f32 %v1128, %v1160
      %v1169 = vadd.f32 %v1129, %v1161
      %v1170 = vadd.f32 %v1130, %v1162
      %v1171 = vadd.f32 %v1131, %v1163
      %v1172 = vadd.f32 %v1132, %v1164
      %v1173 = vadd.f32 %v1133, %v1165
      %v1174 = vadd.f32 %v1134, %v1166
      %1175 = vst [vmem:[%s677] sm:$0xff] %v1167
      %1176 = vst [vmem:[%s677 + $0x8] sm:$0xff] %v1168
      %1177 = vst [vmem:[%s677 + $0x10] sm:$0xff] %v1169
      %1178 = vst [vmem:[%s677 + $0x18] sm:$0xff] %v1170
      %1179 = vst [vmem:[%s677 + $0x20] sm:$0xff] %v1171
      %1180 = vst [vmem:[%s677 + $0x28] sm:$0xff] %v1172
      %1181 = vst [vmem:[%s677 + $0x30] sm:$0xff] %v1173
      %1182 = vst [vmem:[%s677 + $0x38] sm:$0xff] %v1174
      %v1183 = vld [vmem:[%s11] sm:$0xf]
      %v1184 = vld [vmem:[%s647] sm:$0xff]
      %v1185 = vld [vmem:[%s647 + $0x8] sm:$0xff]
      %v1186 = vld [vmem:[%s647 + $0x10] sm:$0xff]
      %v1187 = vld [vmem:[%s647 + $0x18] sm:$0xff]
      %v1188 = vld [vmem:[%s647 + $0x20] sm:$0xff]
      %v1189 = vld [vmem:[%s647 + $0x28] sm:$0xff]
      %v1190 = vld [vmem:[%s647 + $0x30] sm:$0xff]
      %v1191 = vld [vmem:[%s647 + $0x38] sm:$0xff]
      %v1192 = vld [vmem:[%s647 + $0x40] sm:$0xff]
      %v1193 = vld [vmem:[%s12] sm:$0xff]
      %1195 = vset.pattern.permute.xlu0 0
      %1196 = vperm.xlu0 %1195, %v1193
      %v1197 = vpop.permute.xlu0 %1196
      %v1208 = vunpack.c.l.b16 %v1184
      %v1209 = vunpack.c.h.b16 %v1184
      %v1210 = vunpack.c.l.b16 %v1185
      %v1211 = vunpack.c.h.b16 %v1185
      %v1212 = vunpack.c.l.b16 %v1186
      %v1213 = vunpack.c.h.b16 %v1186
      %v1214 = vunpack.c.l.b16 %v1187
      %v1215 = vunpack.c.h.b16 %v1187
      %v1216 = vunpack.c.l.b16 %v1188
      %v1217 = vunpack.c.h.b16 %v1188
      %v1218 = vunpack.c.l.b16 %v1189
      %v1219 = vunpack.c.h.b16 %v1189
      %v1220 = vunpack.c.l.b16 %v1190
      %v1221 = vunpack.c.h.b16 %v1190
      %v1222 = vunpack.c.l.b16 %v1191
      %v1223 = vunpack.c.h.b16 %v1191
      %v1224 = vunpack.c.l.b16 %v1192
      %v1225 = vunpack.c.h.b16 %v1192
      %v1226 = vpack.c.b16 %v1210, %v1208
      %v1227 = vpack.c.b16 %v1211, %v1209
      %v1228 = vpack.c.b16 %v1214, %v1212
      %v1229 = vpack.c.b16 %v1215, %v1213
      %v1230 = vpack.c.b16 %v1218, %v1216
      %v1231 = vpack.c.b16 %v1219, %v1217
      %v1232 = vpack.c.b16 %v1222, %v1220
      %v1233 = vpack.c.b16 %v1223, %v1221
      %v1234 = vpack.c.b16 %v1224, %v1224
      %v1235 = vpack.c.b16 %v1225, %v1225
      %v1245 = vsel %vm853, %v1183, 0
      %v1248 = vsel %vm857, %v1234, 0
      %v1251 = vsel %vm857, %v1235, 0
      %1253 = vmatpush.bf16.msra.mxu0 0
      %1254 = vmatpush.bf16.msra.mxu0 0
      %1255 = vmatpush.bf16.msra.mxu0 0
      %1256 = vmatpush.bf16.msra.mxu0 %v1248
      %1257 = vmatpush.bf16.msra.mxu0 %v1232
      %1258 = vmatpush.bf16.msra.mxu0 %v1230
      %1259 = vmatpush.bf16.msra.mxu0 %v1228
      %1260 = vmatpush.bf16.msra.mxu0 %v1226
      %1261 = vmatmul.bf16.gmra.mxu0 %v1245
      %v1262 = vpop.f32.mrf.mxu0
      %v1263 = vadd.f32 %v1197, %v1262
      %v1264 = vpop.f32.mrf.mxu0
      %1265 = vdwg.mxu0
      %1266 = vmatpush.bf16.msra.mxu0 0
      %1267 = vmatpush.bf16.msra.mxu0 0
      %1268 = vmatpush.bf16.msra.mxu0 0
      %1269 = vmatpush.bf16.msra.mxu0 %v1251
      %1270 = vmatpush.bf16.msra.mxu0 %v1233
      %1271 = vmatpush.bf16.msra.mxu0 %v1231
      %1272 = vmatpush.bf16.msra.mxu0 %v1229
      %1273 = vmatpush.bf16.msra.mxu0 %v1227
      %1274 = vmatmul.bf16.gmra.mxu0 %v1245
      %v1275 = vpop.f32.mrf.mxu0
      %v1276 = vadd.f32 %v1197, %v1275
      %v1277 = vpop.f32.mrf.mxu0
      %1278 = vdwg.mxu0
      %1279 = vst [vmem:[%s687] sm:$0xff] %v1263
      %1280 = vst [vmem:[%s687 + $0x8] sm:$0xff] %v1276
      %s1281 = smul.u32 2, %s32
      %p1282 = scmp.lt.s32.totalorder %s31, 1
      %s1283 = scalar_select %p1282, %s31, 1
      %p1284 = scmp.lt.s32.totalorder %s1281, 1
      %s1285 = scalar_select %p1284, %s1281, 1
      %s1286 = smul.addr %s1283, 2
      %s1287 = sadd.s32 %s1285, %s1286
      %s1288 = smul.addr %s1287, 8
      %s1289 = scalar_lea.vmem %s13, %s1288
      %s1290 = smul.u32 2, %s32
      %p1291 = scmp.lt.s32.totalorder %s31, 1
      %s1292 = scalar_select %p1291, %s31, 1
      %p1293 = scmp.lt.s32.totalorder %s1290, 1
      %s1294 = scalar_select %p1293, %s1290, 1
      %s1295 = smul.addr %s1292, 8
      %s1296 = sadd.s32 %s1294, %s1295
      %s1297 = smul.addr %s1296, 8
      %s1298 = scalar_lea.vmem %s14, %s1297
      %s1299 = smul.u32 2, %s32
      %p1300 = scmp.lt.s32.totalorder %s31, 1
      %s1301 = scalar_select %p1300, %s31, 1
      %p1302 = scmp.lt.s32.totalorder %s1299, 1
      %s1303 = scalar_select %p1302, %s1299, 1
      %s1304 = smul.addr %s1301, 2
      %s1305 = sadd.s32 %s1303, %s1304
      %s1306 = smul.addr %s1305, 8
      %s1307 = scalar_lea.vmem %s15, %s1306
      // Predicated region
      $region73: #{kbblock_forward.5} parent=71 // pred_check
        %p1308 = pneg %p360
      $region74: #{kbblock_forward.5} parent=71 // pred_check_branch
        %1310 = sbr.rel (%p1308) target = $region76
      $region75: #{kbblock_forward.5} parent=71 // pred_region
        %s1311 = smul.u32 2, %s32
      $region76: #{kbblock_forward.5} parent=71 // pred_fallthru
        _
      // Predicated region
      $region77: #{kbblock_forward.5} parent=71 // pred_check
        %p1312 = pneg %p388
      $region78: #{kbblock_forward.5} parent=71 // pred_check_branch
        %1314 = sbr.rel (%p1312) target = $region80
      $region79: #{kbblock_forward.5} parent=71 // pred_region
        %s1315 = smul.u32 2, %s32
      $region80: #{kbblock_forward.5} parent=71 // pred_fallthru
        _
      // Predicated region
      $region81: #{kbblock_forward.5} parent=71 // pred_check
        %p1316 = pneg %p416
      $region82: #{kbblock_forward.5} parent=71 // pred_check_branch
        %1318 = sbr.rel (%p1316) target = $region84
      $region83: #{kbblock_forward.5} parent=71 // pred_region
        %s1319 = smul.u32 2, %s32
      $region84: #{kbblock_forward.5} parent=71 // pred_fallthru
        _
    $region72: #{kbblock_forward.5} parent=5 // pred_fallthru
      _
    %p1320 = scmp.le.s32.totalorder 2, %s22
    // Predicated region
    $region85: #{kbblock_forward.5} parent=5 // pred_check
      %p1321 = pneg %p1320
    $region86: #{kbblock_forward.5} parent=5 // pred_check_branch
      %1323 = sbr.rel (%p1321) target = $region88
    $region87: #{kbblock_forward.5} parent=5 // pred_region
      %s1324 = ssub.s32 %s22, 2
      // Predicated region
      $region89: #{kbblock_forward.5} parent=87 // pred_check
        %p1325 = pneg %p366
      $region90: #{kbblock_forward.5} parent=87 // pred_check_branch
        %1327 = sbr.rel (%p1325) target = $region92
      $region91: #{kbblock_forward.5} parent=87 // pred_region
        %s1328 = smul.u32 2, %s34
        %p1329 = scmp.lt.s32.totalorder %s33, 1
        %s1330 = scalar_select %p1329, %s33, 1
        %p1331 = scmp.lt.s32.totalorder %s1328, 1
        %s1332 = scalar_select %p1331, %s1328, 1
        %s1333 = smul.addr %s1330, 2
        %s1334 = sadd.s32 %s1332, %s1333
        %s1335 = smul.addr %s1334, 8
        %s1336 = scalar_lea.vmem %s13, %s1335
      $region92: #{kbblock_forward.5} parent=87 // pred_fallthru
        _
      // Predicated region
      $region93: #{kbblock_forward.5} parent=87 // pred_check
        %p1337 = pneg %p394
      $region94: #{kbblock_forward.5} parent=87 // pred_check_branch
        %1339 = sbr.rel (%p1337) target = $region96
      $region95: #{kbblock_forward.5} parent=87 // pred_region
        %s1340 = smul.u32 2, %s34
        %p1341 = scmp.lt.s32.totalorder %s33, 1
        %s1342 = scalar_select %p1341, %s33, 1
        %p1343 = scmp.lt.s32.totalorder %s1340, 1
        %s1344 = scalar_select %p1343, %s1340, 1
        %s1345 = smul.addr %s1342, 8
        %s1346 = sadd.s32 %s1344, %s1345
        %s1347 = smul.addr %s1346, 8
        %s1348 = scalar_lea.vmem %s14, %s1347
      $region96: #{kbblock_forward.5} parent=87 // pred_fallthru
        _
      // Predicated region
      $region97: #{kbblock_forward.5} parent=87 // pred_check
        %p1349 = pneg %p422
      $region98: #{kbblock_forward.5} parent=87 // pred_check_branch
        %1351 = sbr.rel (%p1349) target = $region100
      $region99: #{kbblock_forward.5} parent=87 // pred_region
        %s1352 = smul.u32 2, %s34
        %p1353 = scmp.lt.s32.totalorder %s33, 1
        %s1354 = scalar_select %p1353, %s33, 1
        %p1355 = scmp.lt.s32.totalorder %s1352, 1
        %s1356 = scalar_select %p1355, %s1352, 1
        %s1357 = smul.addr %s1354, 2
        %s1358 = sadd.s32 %s1356, %s1357
        %s1359 = smul.addr %s1358, 8
        %s1360 = scalar_lea.vmem %s15, %s1359
      $region100: #{kbblock_forward.5} parent=87 // pred_fallthru
        _
    $region88: #{kbblock_forward.5} parent=5 // pred_fallthru
      _
  $region6: #{kbblock_forward.5} parent=0 // loop_footer
    %s26 = sadd.s32 1, %s22
  $region7: #{kbblock_forward.5} parent=0 // loop_footer_branch
    %21 = sbr.rel target = $region3
  $region8: #{kbblock_forward.5} parent=0 // loop_exit
    _

// kernel: kbblock_forward.6
$region0: #{kbblock_forward.6}
  #allocation0 [shape = 'u32[]', space=smem, size = 0x4, offset = 0x4, fixed_abs, tag = 'smem constant byte address 0x4 - core index']
  #allocation1 [shape = 'u32[72,128]{1,0:T(1,128)}', space=vmem, size = 0x9000, scoped, tag = 'internal scratch']
  %s0 = inlined_call_operand.vmem [shape: f32[2,32,256], index: 0, kind: input, shape index: {}]
  %s1 = inlined_call_operand.vmem [shape: f32[2,72,256], index: 1, kind: input, shape index: {}]
  %s2 = inlined_call_operand.vmem [shape: f32[2,8,256], index: 2, kind: input, shape index: {}]
  %s3 = inlined_call_operand.vmem [shape: f32[288,32], index: 3, kind: input, shape index: {}]
  %s4 = inlined_call_operand.vmem [shape: f32[8,32], index: 4, kind: input, shape index: {}]
  %s5 = inlined_call_operand.vmem [shape: f32[8,1], index: 5, kind: input, shape index: {}]
  %s6 = inlined_call_operand.vmem [shape: f32[2,8,256], index: 6, kind: output, shape index: {}]
  %s7 = sld [smem:[#allocation0]]
  $region57: #{kbblock_forward.6} parent=0
    _
  %s9 = ssub.s32 1, %s7
  %s10 = scalar_select 0, %s9, %s7
  loop: start=0, step=1, limit=4
  $region2: #{kbblock_forward.6} parent=0 // loop_pre_header
    _
  $region3: #{kbblock_forward.6} parent=0 // loop_header
    %s12 = sphi 0, %s16
    %p13 = scmp.ge.s32.totalorder %s12, 4
    %s19 = sphi 0, %s31
    %s20 = sphi 0, %s27
    %s21 = sphi 0, %s19
    %s22 = sphi 0, %s20
    %s23 = sphi 0, %s21
    %s24 = sphi 0, %s22
    %s36 = sphi 0, %s38
    %s39 = sphi 0, %s36
    %s40 = sphi 0, %s39
    %s56 = sphi 0, %s40
    %s64 = sphi 0, %s66
    %s67 = sphi 0, %s64
    %s68 = sphi 0, %s67
    %s84 = sphi 0, %s68
    %s92 = sphi 0, %s94
    %s95 = sphi 0, %s92
    %s96 = sphi 0, %s95
    %s112 = sphi 0, %s96
    %s116 = sphi 0, %s116
    %s118 = sphi 0, %s116
    %s119 = sphi 0, %s118
    %s133 = sphi 0, %s119
    %s137 = sphi 0, %s137
    %s139 = sphi 0, %s137
    %s140 = sphi 0, %s139
    %s154 = sphi 0, %s140
    %s158 = sphi 0, %s158
    %s160 = sphi 0, %s158
    %s161 = sphi 0, %s160
    %s175 = sphi 0, %s161
    %s183 = sphi 0, %s185
    %s186 = sphi 0, %s183
    %s187 = sphi 0, %s186
    %s203 = sphi 0, %s187
  $region4: #{kbblock_forward.6} parent=0 // loop_header_branch
    %15 = sbr.rel (%p13) target = $region8
  $region5: #{kbblock_forward.6} parent=0 // loop_body
    %s17 = ssub.s32 %s12, 1
    %s18 = ssub.s32 %s12, 2
    %s25 = sadd.s32 1, %s20
    %p26 = scmp.ge.s32.totalorder %s25, 1
    %s27 = scalar_select %p26, 0, %s25
    %s28 = sadd.s32 1, %s19
    %s29 = scalar_select %p26, %s28, %s19
    %p30 = scmp.ge.s32.totalorder %s29, 2
    %s31 = scalar_select %p30, 0, %s29
    %s32 = ssub.s32 %s19, %s31
    %s33 = ssub.s32 %s20, %s27
    %s34 = sor.u32 %s32, %s33
    %p35 = scmp.eq.s32.totalorder %s34, 0
    %s37 = sadd.s32 %s36, 1
    %s38 = scalar_select %p35, %s36, %s37
    %p41 = pneg %p35
    %p42 = scmp.eq.s32.totalorder %s12, 1
    %p43 = por %p41, %p42
    %p44 = scmp.ne.s32.totalorder %s36, %s39
    %p45 = scmp.eq.s32.totalorder %s12, 0
    %p46 = por %p44, %p45
    %p47 = scmp.ne.s32.totalorder %s36, %s39
    %p48 = scmp.eq.s32.totalorder %s17, 1
    %p49 = por %p47, %p48
    %p50 = scmp.ne.s32.totalorder %s39, %s40
    %p51 = scmp.eq.s32.totalorder %s17, 0
    %p52 = por %p50, %p51
    %p53 = scmp.ne.s32.totalorder %s39, %s40
    %p54 = scmp.eq.s32.totalorder %s18, 1
    %p55 = por %p53, %p54
    %p57 = scmp.ne.s32.totalorder %s40, %s56
    %p58 = scmp.eq.s32.totalorder %s18, 0
    %p59 = por %p57, %p58
    %s60 = ssub.s32 %s19, %s31
    %s61 = ssub.s32 %s20, %s27
    %s62 = sor.u32 %s60, %s61
    %p63 = scmp.eq.s32.totalorder %s62, 0
    %s65 = sadd.s32 %s64, 1
    %s66 = scalar_select %p63, %s64, %s65
    %p69 = pneg %p63
    %p70 = scmp.eq.s32.totalorder %s12, 1
    %p71 = por %p69, %p70
    %p72 = scmp.ne.s32.totalorder %s64, %s67
    %p73 = scmp.eq.s32.totalorder %s12, 0
    %p74 = por %p72, %p73
    %p75 = scmp.ne.s32.totalorder %s64, %s67
    %p76 = scmp.eq.s32.totalorder %s17, 1
    %p77 = por %p75, %p76
    %p78 = scmp.ne.s32.totalorder %s67, %s68
    %p79 = scmp.eq.s32.totalorder %s17, 0
    %p80 = por %p78, %p79
    %p81 = scmp.ne.s32.totalorder %s67, %s68
    %p82 = scmp.eq.s32.totalorder %s18, 1
    %p83 = por %p81, %p82
    %p85 = scmp.ne.s32.totalorder %s68, %s84
    %p86 = scmp.eq.s32.totalorder %s18, 0
    %p87 = por %p85, %p86
    %s88 = ssub.s32 %s19, %s31
    %s89 = ssub.s32 %s20, %s27
    %s90 = sor.u32 %s88, %s89
    %p91 = scmp.eq.s32.totalorder %s90, 0
    %s93 = sadd.s32 %s92, 1
    %s94 = scalar_select %p91, %s92, %s93
    %p97 = pneg %p91
    %p98 = scmp.eq.s32.totalorder %s12, 1
    %p99 = por %p97, %p98
    %p100 = scmp.ne.s32.totalorder %s92, %s95
    %p101 = scmp.eq.s32.totalorder %s12, 0
    %p102 = por %p100, %p101
    %p103 = scmp.ne.s32.totalorder %s92, %s95
    %p104 = scmp.eq.s32.totalorder %s17, 1
    %p105 = por %p103, %p104
    %p106 = scmp.ne.s32.totalorder %s95, %s96
    %p107 = scmp.eq.s32.totalorder %s17, 0
    %p108 = por %p106, %p107
    %p109 = scmp.ne.s32.totalorder %s95, %s96
    %p110 = scmp.eq.s32.totalorder %s18, 1
    %p111 = por %p109, %p110
    %p113 = scmp.ne.s32.totalorder %s96, %s112
    %p114 = scmp.eq.s32.totalorder %s18, 0
    %p115 = por %p113, %p114
    %s117 = sadd.s32 %s116, 1
    %p120 = scmp.eq.s32.totalorder %s12, 1
    %p121 = scmp.ne.s32.totalorder %s116, %s118
    %p122 = scmp.eq.s32.totalorder %s12, 0
    %p123 = por %p121, %p122
    %p124 = scmp.ne.s32.totalorder %s116, %s118
    %p125 = scmp.eq.s32.totalorder %s17, 1
    %p126 = por %p124, %p125
    %p127 = scmp.ne.s32.totalorder %s118, %s119
    %p128 = scmp.eq.s32.totalorder %s17, 0
    %p129 = por %p127, %p128
    %p130 = scmp.ne.s32.totalorder %s118, %s119
    %p131 = scmp.eq.s32.totalorder %s18, 1
    %p132 = por %p130, %p131
    %p134 = scmp.ne.s32.totalorder %s119, %s133
    %p135 = scmp.eq.s32.totalorder %s18, 0
    %p136 = por %p134, %p135
    %s138 = sadd.s32 %s137, 1
    %p141 = scmp.eq.s32.totalorder %s12, 1
    %p142 = scmp.ne.s32.totalorder %s137, %s139
    %p143 = scmp.eq.s32.totalorder %s12, 0
    %p144 = por %p142, %p143
    %p145 = scmp.ne.s32.totalorder %s137, %s139
    %p146 = scmp.eq.s32.totalorder %s17, 1
    %p147 = por %p145, %p146
    %p148 = scmp.ne.s32.totalorder %s139, %s140
    %p149 = scmp.eq.s32.totalorder %s17, 0
    %p150 = por %p148, %p149
    %p151 = scmp.ne.s32.totalorder %s139, %s140
    %p152 = scmp.eq.s32.totalorder %s18, 1
    %p153 = por %p151, %p152
    %p155 = scmp.ne.s32.totalorder %s140, %s154
    %p156 = scmp.eq.s32.totalorder %s18, 0
    %p157 = por %p155, %p156
    %s159 = sadd.s32 %s158, 1
    %p162 = scmp.eq.s32.totalorder %s12, 1
    %p163 = scmp.ne.s32.totalorder %s158, %s160
    %p164 = scmp.eq.s32.totalorder %s12, 0
    %p165 = por %p163, %p164
    %p166 = scmp.ne.s32.totalorder %s158, %s160
    %p167 = scmp.eq.s32.totalorder %s17, 1
    %p168 = por %p166, %p167
    %p169 = scmp.ne.s32.totalorder %s160, %s161
    %p170 = scmp.eq.s32.totalorder %s17, 0
    %p171 = por %p169, %p170
    %p172 = scmp.ne.s32.totalorder %s160, %s161
    %p173 = scmp.eq.s32.totalorder %s18, 1
    %p174 = por %p172, %p173
    %p176 = scmp.ne.s32.totalorder %s161, %s175
    %p177 = scmp.eq.s32.totalorder %s18, 0
    %p178 = por %p176, %p177
    %s179 = ssub.s32 %s19, %s31
    %s180 = ssub.s32 %s20, %s27
    %s181 = sor.u32 %s179, %s180
    %p182 = scmp.eq.s32.totalorder %s181, 0
    %s184 = sadd.s32 %s183, 1
    %s185 = scalar_select %p182, %s183, %s184
    %p188 = pneg %p182
    %p189 = scmp.eq.s32.totalorder %s12, 1
    %p190 = por %p188, %p189
    %p191 = scmp.ne.s32.totalorder %s183, %s186
    %p192 = scmp.eq.s32.totalorder %s12, 0
    %p193 = por %p191, %p192
    %p194 = scmp.ne.s32.totalorder %s183, %s186
    %p195 = scmp.eq.s32.totalorder %s17, 1
    %p196 = por %p194, %p195
    %p197 = scmp.ne.s32.totalorder %s186, %s187
    %p198 = scmp.eq.s32.totalorder %s17, 0
    %p199 = por %p197, %p198
    %p200 = scmp.ne.s32.totalorder %s186, %s187
    %p201 = scmp.eq.s32.totalorder %s18, 1
    %p202 = por %p200, %p201
    %p204 = scmp.ne.s32.totalorder %s187, %s203
    %p205 = scmp.eq.s32.totalorder %s18, 0
    %p206 = por %p204, %p205
    %p207 = scmp.le.s32.totalorder 1, %s12
    %p208 = scmp.lt.s32.totalorder %s12, 3
    %p209 = pnand %p207, %p208
    %p210 = pneg %p209
    // Predicated region
    $region9: #{kbblock_forward.6} parent=5 // pred_check
      _
    $region10: #{kbblock_forward.6} parent=5 // pred_check_branch
      %212 = sbr.rel (%p209) target = $region12
    $region11: #{kbblock_forward.6} parent=5 // pred_region
      %s213 = ssub.s32 %s12, 1
      // Predicated region
      $region13: #{kbblock_forward.6} parent=11 // pred_check
        %p214 = pneg %p129
      $region14: #{kbblock_forward.6} parent=11 // pred_check_branch
        %216 = sbr.rel (%p214) target = $region16
      $region15: #{kbblock_forward.6} parent=11 // pred_region
        _
      $region16: #{kbblock_forward.6} parent=11 // pred_fallthru
        _
      // Predicated region
      $region17: #{kbblock_forward.6} parent=11 // pred_check
        %p217 = pneg %p150
      $region18: #{kbblock_forward.6} parent=11 // pred_check_branch
        %219 = sbr.rel (%p217) target = $region20
      $region19: #{kbblock_forward.6} parent=11 // pred_region
        _
      $region20: #{kbblock_forward.6} parent=11 // pred_fallthru
        _
      // Predicated region
      $region21: #{kbblock_forward.6} parent=11 // pred_check
        %p220 = pneg %p171
      $region22: #{kbblock_forward.6} parent=11 // pred_check_branch
        %222 = sbr.rel (%p220) target = $region24
      $region23: #{kbblock_forward.6} parent=11 // pred_region
        _
      $region24: #{kbblock_forward.6} parent=11 // pred_fallthru
        _
    $region12: #{kbblock_forward.6} parent=5 // pred_fallthru
      _
    %p223 = scmp.lt.s32.totalorder %s12, 2
    // Predicated region
    $region25: #{kbblock_forward.6} parent=5 // pred_check
      %p224 = pneg %p223
    $region26: #{kbblock_forward.6} parent=5 // pred_check_branch
      %226 = sbr.rel (%p224) target = $region28
    $region27: #{kbblock_forward.6} parent=5 // pred_region
      // Predicated region
      $region29: #{kbblock_forward.6} parent=27 // pred_check
        %p227 = pneg %p46
      $region30: #{kbblock_forward.6} parent=27 // pred_check_branch
        %229 = sbr.rel (%p227) target = $region32
      $region31: #{kbblock_forward.6} parent=27 // pred_region
        %s230 = smul.u32 2, %s20
        %p231 = scmp.lt.s32.totalorder %s19, 1
        %s232 = scalar_select %p231, %s19, 1
        %p233 = scmp.lt.s32.totalorder %s230, 1
        %s234 = scalar_select %p233, %s230, 1
        %s235 = smul.addr %s232, 8
        %s236 = sadd.s32 %s234, %s235
        %s237 = smul.addr %s236, 8
        %s238 = scalar_lea.vmem %s0, %s237
        %s239 = smul.u32 2, %s20
      $region32: #{kbblock_forward.6} parent=27 // pred_fallthru
        _
      // Predicated region
      $region33: #{kbblock_forward.6} parent=27 // pred_check
        %p240 = pneg %p74
      $region34: #{kbblock_forward.6} parent=27 // pred_check_branch
        %242 = sbr.rel (%p240) target = $region36
      $region35: #{kbblock_forward.6} parent=27 // pred_region
        %s243 = smul.u32 2, %s20
        %p244 = scmp.lt.s32.totalorder %s19, 1
        %s245 = scalar_select %p244, %s19, 1
        %p246 = scmp.lt.s32.totalorder %s243, 1
        %s247 = scalar_select %p246, %s243, 1
        %s248 = smul.addr %s245, 18
        %s249 = sadd.s32 %s247, %s248
        %s250 = smul.addr %s249, 8
        %s251 = scalar_lea.vmem %s1, %s250
        %s252 = smul.u32 2, %s20
      $region36: #{kbblock_forward.6} parent=27 // pred_fallthru
        _
      // Predicated region
      $region37: #{kbblock_forward.6} parent=27 // pred_check
        %p253 = pneg %p102
      $region38: #{kbblock_forward.6} parent=27 // pred_check_branch
        %255 = sbr.rel (%p253) target = $region40
      $region39: #{kbblock_forward.6} parent=27 // pred_region
        %s256 = smul.u32 2, %s20
        %p257 = scmp.lt.s32.totalorder %s19, 1
        %s258 = scalar_select %p257, %s19, 1
        %p259 = scmp.lt.s32.totalorder %s256, 1
        %s260 = scalar_select %p259, %s256, 1
        %s261 = smul.addr %s258, 2
        %s262 = sadd.s32 %s260, %s261
        %s263 = smul.addr %s262, 8
        %s264 = scalar_lea.vmem %s2, %s263
        %s265 = smul.u32 2, %s20
      $region40: #{kbblock_forward.6} parent=27 // pred_fallthru
        _
    $region28: #{kbblock_forward.6} parent=5 // pred_fallthru
      _
    %p266 = scmp.le.s32.totalorder 1, %s12
    %p267 = scmp.lt.s32.totalorder %s12, 3
    %p268 = pnand %p266, %p267
    %p269 = pneg %p268
    // Predicated region
    $region41: #{kbblock_forward.6} parent=5 // pred_check
      _
    $region42: #{kbblock_forward.6} parent=5 // pred_check_branch
      %271 = sbr.rel (%p268) target = $region44
    $region43: #{kbblock_forward.6} parent=5 // pred_region
      %s272 = ssub.s32 %s12, 1
      %s273 = smul.u32 2, %s22
      %p274 = scmp.lt.s32.totalorder %s21, 1
      %s275 = scalar_select %p274, %s21, 1
      %p276 = scmp.lt.s32.totalorder %s273, 1
      %s277 = scalar_select %p276, %s273, 1
      %s278 = smul.addr %s275, 8
      %s279 = sadd.s32 %s277, %s278
      %s280 = smul.addr %s279, 8
      %s281 = scalar_lea.vmem %s0, %s280
      %p282 = pneg %p52
      %p283 = pneg %p49
      %s284 = smul.u32 2, %s22
      %p285 = scmp.lt.s32.totalorder %s21, 1
      %s286 = scalar_select %p285, %s21, 1
      %p287 = scmp.lt.s32.totalorder %s284, 1
      %s288 = scalar_select %p287, %s284, 1
      %s289 = smul.addr %s286, 18
      %s290 = sadd.s32 %s288, %s289
      %s291 = smul.addr %s290, 8
      %s292 = scalar_lea.vmem %s1, %s291
      %p293 = pneg %p80
      %p294 = pneg %p77
      %s295 = smul.u32 2, %s22
      %p296 = scmp.lt.s32.totalorder %s21, 1
      %s297 = scalar_select %p296, %s21, 1
      %p298 = scmp.lt.s32.totalorder %s295, 1
      %s299 = scalar_select %p298, %s295, 1
      %s300 = smul.addr %s297, 2
      %s301 = sadd.s32 %s299, %s300
      %s302 = smul.addr %s301, 8
      %s303 = scalar_lea.vmem %s2, %s302
      %p304 = pneg %p108
      %p305 = pneg %p105
      %p306 = pneg %p129
      %p307 = pneg %p126
      %p308 = pneg %p150
      %p309 = pneg %p147
      %p310 = pneg %p171
      %p311 = pneg %p168
      %p312 = pneg %p199
      %p313 = pneg %p196
      %s314 = smul.u32 2, %s22
      %p315 = scmp.lt.s32.totalorder %s21, 1
      %s316 = scalar_select %p315, %s21, 1
      %p317 = scmp.lt.s32.totalorder %s314, 1
      %s318 = scalar_select %p317, %s314, 1
      %s319 = smul.addr %s316, 2
      %s320 = sadd.s32 %s318, %s319
      %s321 = smul.addr %s320, 8
      %s322 = scalar_lea.vmem %s6, %s321
      %s323 = smul.u32 2, %s22
      %p324 = scmp.lt.s32.totalorder %s21, 1
      %s325 = scalar_select %p324, %s21, 1
      %p326 = scmp.lt.s32.totalorder %s323, 1
      %s327 = scalar_select %p326, %s323, 1
      %s328 = smul.addr %s325, 8
      %s329 = sadd.s32 %s327, %s328
      %s330 = smul.addr %s329, 8
      %s331 = scalar_lea.vmem %s0, %s330
      %s332 = smul.u32 2, %s22
      %s333 = smul.u32 2, %s22
      %p334 = scmp.lt.s32.totalorder %s21, 1
      %s335 = scalar_select %p334, %s21, 1
      %p336 = scmp.lt.s32.totalorder %s333, 1
      %s337 = scalar_select %p336, %s333, 1
      %s338 = smul.addr %s335, 18
      %s339 = sadd.s32 %s337, %s338
      %s340 = smul.addr %s339, 8
      %s341 = scalar_lea.vmem %s1, %s340
      %s342 = smul.u32 2, %s22
      %s343 = smul.u32 2, %s22
      %p344 = scmp.lt.s32.totalorder %s21, 1
      %s345 = scalar_select %p344, %s21, 1
      %p346 = scmp.lt.s32.totalorder %s343, 1
      %s347 = scalar_select %p346, %s343, 1
      %s348 = smul.addr %s345, 2
      %s349 = sadd.s32 %s347, %s348
      %s350 = smul.addr %s349, 8
      %s351 = scalar_lea.vmem %s2, %s350
      %s352 = smul.u32 2, %s22
      %s353 = smul.u32 2, %s22
      %p354 = scmp.lt.s32.totalorder %s21, 1
      %s355 = scalar_select %p354, %s21, 1
      %p356 = scmp.lt.s32.totalorder %s353, 1
      %s357 = scalar_select %p356, %s353, 1
      %s358 = smul.addr %s355, 2
      %s359 = sadd.s32 %s357, %s358
      %s360 = smul.addr %s359, 8
      %s361 = scalar_lea.vmem %s6, %s360
      %s362 = smul.u32 2, %s22
      %v363 = vld [vmem:[%s331] sm:$0xff]
      %v364 = vld [vmem:[%s331 + $0x8] sm:$0xff]
      %v365 = vld [vmem:[%s331 + $0x10] sm:$0xff]
      %v366 = vld [vmem:[%s331 + $0x18] sm:$0xff]
      %v367 = vld [vmem:[%s331 + $0x20] sm:$0xff]
      %v368 = vld [vmem:[%s331 + $0x28] sm:$0xff]
      %v369 = vld [vmem:[%s331 + $0x30] sm:$0xff]
      %v370 = vld [vmem:[%s331 + $0x38] sm:$0xff]
      %v371 = vld [vmem:[%s341] sm:$0xff]
      %v372 = vld [vmem:[%s341 + $0x8] sm:$0xff]
      %v373 = vld [vmem:[%s341 + $0x10] sm:$0xff]
      %v374 = vld [vmem:[%s341 + $0x18] sm:$0xff]
      %v375 = vld [vmem:[%s341 + $0x20] sm:$0xff]
      %v376 = vld [vmem:[%s341 + $0x28] sm:$0xff]
      %v377 = vld [vmem:[%s341 + $0x30] sm:$0xff]
      %v378 = vld [vmem:[%s341 + $0x38] sm:$0xff]
      %v379 = vld [vmem:[%s341 + $0x40] sm:$0xff]
      %v380 = vld [vmem:[%s341 + $0x48] sm:$0xff]
      %v381 = vld [vmem:[%s341 + $0x50] sm:$0xff]
      %v382 = vld [vmem:[%s341 + $0x58] sm:$0xff]
      %v383 = vld [vmem:[%s341 + $0x60] sm:$0xff]
      %v384 = vld [vmem:[%s341 + $0x68] sm:$0xff]
      %v385 = vld [vmem:[%s341 + $0x70] sm:$0xff]
      %v386 = vld [vmem:[%s341 + $0x78] sm:$0xff]
      %v387 = vld [vmem:[%s341 + $0x80] sm:$0xff]
      %v388 = vld [vmem:[%s341 + $0x88] sm:$0xff]
      %v389 = vld [vmem:[%s3] sm:$0xff]
      %v390 = vld [vmem:[%s3 + $0x8] sm:$0xff]
      %v391 = vld [vmem:[%s3 + $0x10] sm:$0xff]
      %v392 = vld [vmem:[%s3 + $0x18] sm:$0xff]
      %v393 = vld [vmem:[%s3 + $0x20] sm:$0xff]
      %v394 = vld [vmem:[%s3 + $0x28] sm:$0xff]
      %v395 = vld [vmem:[%s3 + $0x30] sm:$0xff]
      %v396 = vld [vmem:[%s3 + $0x38] sm:$0xff]
      %v397 = vld [vmem:[%s3 + $0x40] sm:$0xff]
      %v398 = vld [vmem:[%s3 + $0x48] sm:$0xff]
      %v399 = vld [vmem:[%s3 + $0x50] sm:$0xff]
      %v400 = vld [vmem:[%s3 + $0x58] sm:$0xff]
      %v401 = vld [vmem:[%s3 + $0x60] sm:$0xff]
      %v402 = vld [vmem:[%s3 + $0x68] sm:$0xff]
      %v403 = vld [vmem:[%s3 + $0x70] sm:$0xff]
      %v404 = vld [vmem:[%s3 + $0x78] sm:$0xff]
      %v405 = vld [vmem:[%s3 + $0x80] sm:$0xff]
      %v406 = vld [vmem:[%s3 + $0x88] sm:$0xff]
      %v407 = vld [vmem:[%s3 + $0x90] sm:$0xff]
      %v408 = vld [vmem:[%s3 + $0x98] sm:$0xff]
      %v409 = vld [vmem:[%s3 + $0xa0] sm:$0xff]
      %v410 = vld [vmem:[%s3 + $0xa8] sm:$0xff]
      %v411 = vld [vmem:[%s3 + $0xb0] sm:$0xff]
      %v412 = vld [vmem:[%s3 + $0xb8] sm:$0xff]
      %v413 = vld [vmem:[%s3 + $0xc0] sm:$0xff]
      %v414 = vld [vmem:[%s3 + $0xc8] sm:$0xff]
      %v415 = vld [vmem:[%s3 + $0xd0] sm:$0xff]
      %v416 = vld [vmem:[%s3 + $0xd8] sm:$0xff]
      %v417 = vld [vmem:[%s3 + $0xe0] sm:$0xff]
      %v418 = vld [vmem:[%s3 + $0xe8] sm:$0xff]
      %v419 = vld [vmem:[%s3 + $0xf0] sm:$0xff]
      %v420 = vld [vmem:[%s3 + $0xf8] sm:$0xff]
      %v421 = vld [vmem:[%s3 + $0x100] sm:$0xff]
      %v422 = vld [vmem:[%s3 + $0x108] sm:$0xff]
      %v423 = vld [vmem:[%s3 + $0x110] sm:$0xff]
      %v424 = vld [vmem:[%s3 + $0x118] sm:$0xff]
      %v425 = vld [vmem:[%s4] sm:$0xff]
      %vm426 = vcmask 261120
      %v428 = vsel %vm426, %v425, 0
      %430 = vmatpush.msra.mxu0 0.0
      %431 = vmatpush.msra.mxu0 0.0
      %432 = vmatpush.msra.mxu0 0.0
      %433 = vmatpush.msra.mxu0 0.0
      %434 = vmatpush.msra.mxu0 0.0
      %435 = vmatpush.msra.mxu0 0.0
      %436 = vmatpush.msra.mxu0 0.0
      %437 = vmatpush.msra.mxu0 0.0
      %438 = vmatpush.msra.mxu0 0.0
      %439 = vmatpush.msra.mxu0 0.0
      %440 = vmatpush.msra.mxu0 0.0
      %441 = vmatpush.msra.mxu0 0.0
      %442 = vmatpush.msra.mxu0 %v369
      %443 = vmatpush.msra.mxu0 %v367
      %444 = vmatpush.msra.mxu0 %v365
      %445 = vmatpush.msra.mxu0 %v363
      %446 = vmatmul.f32.gmra.mxu0 %v428
      %v447 = vpop.f32.mrf.mxu0
      %v448 = vadd.f32 0.0, %v447
      %449 = vdwg.mxu0
      %450 = vmatpush.msra.mxu0 0.0
      %451 = vmatpush.msra.mxu0 0.0
      %452 = vmatpush.msra.mxu0 0.0
      %453 = vmatpush.msra.mxu0 0.0
      %454 = vmatpush.msra.mxu0 0.0
      %455 = vmatpush.msra.mxu0 0.0
      %456 = vmatpush.msra.mxu0 0.0
      %457 = vmatpush.msra.mxu0 0.0
      %458 = vmatpush.msra.mxu0 0.0
      %459 = vmatpush.msra.mxu0 0.0
      %460 = vmatpush.msra.mxu0 0.0
      %461 = vmatpush.msra.mxu0 0.0
      %462 = vmatpush.msra.mxu0 %v370
      %463 = vmatpush.msra.mxu0 %v368
      %464 = vmatpush.msra.mxu0 %v366
      %465 = vmatpush.msra.mxu0 %v364
      %466 = vmatmul.f32.gmra.mxu0 %v428
      %v467 = vpop.f32.mrf.mxu0
      %v468 = vadd.f32 0.0, %v467
      %469 = vdwg.mxu0
      %v471 = vsel %vm426, %v389, 0
      %v474 = vsel %vm426, %v390, 0
      %v477 = vsel %vm426, %v391, 0
      %v480 = vsel %vm426, %v392, 0
      %v483 = vsel %vm426, %v393, 0
      %485 = vmatpush.msra.mxu0 0.0
      %486 = vmatpush.msra.mxu0 0.0
      %487 = vmatpush.msra.mxu0 0.0
      %488 = vmatpush.msra.mxu0 0.0
      %489 = vmatpush.msra.mxu0 0.0
      %490 = vmatpush.msra.mxu0 0.0
      %491 = vmatpush.msra.mxu0 0.0
      %492 = vmatpush.msra.mxu0 0.0
      %493 = vmatpush.msra.mxu0 0.0
      %494 = vmatpush.msra.mxu0 0.0
      %495 = vmatpush.msra.mxu0 0.0
      %496 = vmatpush.msra.mxu0 0.0
      %497 = vmatpush.msra.mxu0 %v369
      %498 = vmatpush.msra.mxu0 %v367
      %499 = vmatpush.msra.mxu0 %v365
      %500 = vmatpush.msra.mxu0 %v363
      %501 = vmatmul.f32.gmra.mxu0 %v471
      %v502 = vpop.f32.mrf.mxu0
      %v503 = vadd.f32 0.0, %v502
      %504 = vmatmul.f32.gmra.mxu0 %v474
      %v505 = vpop.f32.mrf.mxu0
      %v506 = vadd.f32 0.0, %v505
      %507 = vmatmul.f32.gmra.mxu0 %v477
      %v508 = vpop.f32.mrf.mxu0
      %v509 = vadd.f32 0.0, %v508
      %510 = vmatmul.f32.gmra.mxu0 %v480
      %v511 = vpop.f32.mrf.mxu0
      %v512 = vadd.f32 0.0, %v511
      %513 = vmatmul.f32.gmra.mxu0 %v483
      %v514 = vpop.f32.mrf.mxu0
      %v515 = vadd.f32 0.0, %v514
      %516 = vdwg.mxu0
      %517 = vmatpush.msra.mxu0 0.0
      %518 = vmatpush.msra.mxu0 0.0
      %519 = vmatpush.msra.mxu0 0.0
      %520 = vmatpush.msra.mxu0 0.0
      %521 = vmatpush.msra.mxu0 0.0
      %522 = vmatpush.msra.mxu0 0.0
      %523 = vmatpush.msra.mxu0 0.0
      %524 = vmatpush.msra.mxu0 0.0
      %525 = vmatpush.msra.mxu0 0.0
      %526 = vmatpush.msra.mxu0 0.0
      %527 = vmatpush.msra.mxu0 0.0
      %528 = vmatpush.msra.mxu0 0.0
      %529 = vmatpush.msra.mxu0 %v370
      %530 = vmatpush.msra.mxu0 %v368
      %531 = vmatpush.msra.mxu0 %v366
      %532 = vmatpush.msra.mxu0 %v364
      %533 = vmatmul.f32.gmra.mxu0 %v471
      %v534 = vpop.f32.mrf.mxu0
      %v535 = vadd.f32 0.0, %v534
      %536 = vmatmul.f32.gmra.mxu0 %v474
      %v537 = vpop.f32.mrf.mxu0
      %v538 = vadd.f32 0.0, %v537
      %539 = vmatmul.f32.gmra.mxu0 %v477
      %v540 = vpop.f32.mrf.mxu0
      %v541 = vadd.f32 0.0, %v540
      %542 = vmatmul.f32.gmra.mxu0 %v480
      %v543 = vpop.f32.mrf.mxu0
      %v544 = vadd.f32 0.0, %v543
      %545 = vmatmul.f32.gmra.mxu0 %v483
      %v546 = vpop.f32.mrf.mxu0
      %v547 = vadd.f32 0.0, %v546
      %548 = vdwg.mxu0
      %v549 = vmul.f32 %v503, %v371
      %v550 = vmul.f32 %v535, %v372
      %v551 = vmul.f32 %v506, %v373
      %v552 = vmul.f32 %v538, %v374
      %v553 = vmul.f32 %v509, %v375
      %v554 = vmul.f32 %v541, %v376
      %v555 = vmul.f32 %v512, %v377
      %v556 = vmul.f32 %v544, %v378
      %v557 = vmul.f32 %v515, %v379
      %v558 = vmul.f32 %v547, %v380
      %v559 = vadd.f32 %v549, %v551
      %v560 = vadd.f32 %v559, %v553
      %v561 = vadd.f32 %v560, %v555
      %vm562 = vcmask 1043456
      %v563 = vsel %vm562, %v557, 0.0
      %v564 = vadd.f32 %v561, %v563
      %v565 = vrot.slane %v564, 4
      %v566 = vadd.f32 %v564, %v565
      %v567 = vrot.slane %v566, 2
      %v568 = vadd.f32 %v566, %v567
      %v569 = vrot.slane %v568, 1
      %v570 = vadd.f32 %v568, %v569
      %v571 = vadd.f32 %v550, %v552
      %v572 = vadd.f32 %v571, %v554
      %v573 = vadd.f32 %v572, %v556
      %v574 = vsel %vm562, %v558, 0.0
      %v575 = vadd.f32 %v573, %v574
      %v576 = vrot.slane %v575, 4
      %v577 = vadd.f32 %v575, %v576
      %v578 = vrot.slane %v577, 2
      %v579 = vadd.f32 %v577, %v578
      %v580 = vrot.slane %v579, 1
      %v581 = vadd.f32 %v579, %v580
      %v586 = vrot.slane %v393, 4
      %v587 = vrot.slane %v394, 4
      %v588 = vsel %vm562, %v586, %v587
      %v589 = vrot.slane %v395, 4
      %v590 = vsel %vm562, %v587, %v589
      %v591 = vrot.slane %v396, 4
      %v592 = vsel %vm562, %v589, %v591
      %v593 = vrot.slane %v397, 4
      %v594 = vsel %vm562, %v591, %v593
      %v595 = vsel %vm426, %v588, 0
      %v597 = vsel %vm426, %v590, 0
      %v599 = vsel %vm426, %v592, 0
      %v601 = vsel %vm426, %v594, 0
      %v603 = vsel %vm426, %v593, 0
      %605 = vmatpush.msra.mxu0 0.0
      %606 = vmatpush.msra.mxu0 0.0
      %607 = vmatpush.msra.mxu0 0.0
      %608 = vmatpush.msra.mxu0 0.0
      %609 = vmatpush.msra.mxu0 0.0
      %610 = vmatpush.msra.mxu0 0.0
      %611 = vmatpush.msra.mxu0 0.0
      %612 = vmatpush.msra.mxu0 0.0
      %613 = vmatpush.msra.mxu0 0.0
      %614 = vmatpush.msra.mxu0 0.0
      %615 = vmatpush.msra.mxu0 0.0
      %616 = vmatpush.msra.mxu0 0.0
      %617 = vmatpush.msra.mxu0 %v369
      %618 = vmatpush.msra.mxu0 %v367
      %619 = vmatpush.msra.mxu0 %v365
      %620 = vmatpush.msra.mxu0 %v363
      %621 = vmatmul.f32.gmra.mxu0 %v595
      %v622 = vpop.f32.mrf.mxu0
      %v623 = vadd.f32 0.0, %v622
      %624 = vmatmul.f32.gmra.mxu0 %v597
      %v625 = vpop.f32.mrf.mxu0
      %v626 = vadd.f32 0.0, %v625
      %627 = vmatmul.f32.gmra.mxu0 %v599
      %v628 = vpop.f32.mrf.mxu0
      %v629 = vadd.f32 0.0, %v628
      %630 = vmatmul.f32.gmra.mxu0 %v601
      %v631 = vpop.f32.mrf.mxu0
      %v632 = vadd.f32 0.0, %v631
      %633 = vmatmul.f32.gmra.mxu0 %v603
      %v634 = vpop.f32.mrf.mxu0
      %v635 = vadd.f32 0.0, %v634
      %636 = vdwg.mxu0
      %637 = vmatpush.msra.mxu0 0.0
      %638 = vmatpush.msra.mxu0 0.0
      %639 = vmatpush.msra.mxu0 0.0
      %640 = vmatpush.msra.mxu0 0.0
      %641 = vmatpush.msra.mxu0 0.0
      %642 = vmatpush.msra.mxu0 0.0
      %643 = vmatpush.msra.mxu0 0.0
      %644 = vmatpush.msra.mxu0 0.0
      %645 = vmatpush.msra.mxu0 0.0
      %646 = vmatpush.msra.mxu0 0.0
      %647 = vmatpush.msra.mxu0 0.0
      %648 = vmatpush.msra.mxu0 0.0
      %649 = vmatpush.msra.mxu0 %v370
      %650 = vmatpush.msra.mxu0 %v368
      %651 = vmatpush.msra.mxu0 %v366
      %652 = vmatpush.msra.mxu0 %v364
      %653 = vmatmul.f32.gmra.mxu0 %v595
      %v654 = vpop.f32.mrf.mxu0
      %v655 = vadd.f32 0.0, %v654
      %656 = vmatmul.f32.gmra.mxu0 %v597
      %v657 = vpop.f32.mrf.mxu0
      %v658 = vadd.f32 0.0, %v657
      %659 = vmatmul.f32.gmra.mxu0 %v599
      %v660 = vpop.f32.mrf.mxu0
      %v661 = vadd.f32 0.0, %v660
      %662 = vmatmul.f32.gmra.mxu0 %v601
      %v663 = vpop.f32.mrf.mxu0
      %v664 = vadd.f32 0.0, %v663
      %665 = vmatmul.f32.gmra.mxu0 %v603
      %v666 = vpop.f32.mrf.mxu0
      %v667 = vadd.f32 0.0, %v666
      %668 = vdwg.mxu0
      %v669 = vmul.f32 %v623, %v371
      %v670 = vmul.f32 %v655, %v372
      %v671 = vmul.f32 %v626, %v373
      %v672 = vmul.f32 %v658, %v374
      %v673 = vmul.f32 %v629, %v375
      %v674 = vmul.f32 %v661, %v376
      %v675 = vmul.f32 %v632, %v377
      %v676 = vmul.f32 %v664, %v378
      %v677 = vmul.f32 %v635, %v379
      %v678 = vmul.f32 %v667, %v380
      %v679 = vadd.f32 %v669, %v671
      %v680 = vadd.f32 %v679, %v673
      %v681 = vadd.f32 %v680, %v675
      %v682 = vsel %vm562, %v677, 0.0
      %v683 = vadd.f32 %v681, %v682
      %v684 = vrot.slane %v683, 4
      %v685 = vadd.f32 %v683, %v684
      %v686 = vrot.slane %v685, 2
      %v687 = vadd.f32 %v685, %v686
      %v688 = vrot.slane %v687, 1
      %v689 = vadd.f32 %v687, %v688
      %v690 = vadd.f32 %v670, %v672
      %v691 = vadd.f32 %v690, %v674
      %v692 = vadd.f32 %v691, %v676
      %v693 = vsel %vm562, %v678, 0.0
      %v694 = vadd.f32 %v692, %v693
      %v695 = vrot.slane %v694, 4
      %v696 = vadd.f32 %v694, %v695
      %v697 = vrot.slane %v696, 2
      %v698 = vadd.f32 %v696, %v697
      %v699 = vrot.slane %v698, 1
      %v700 = vadd.f32 %v698, %v699
      %v702 = vsel %vm426, %v398, 0
      %v705 = vsel %vm426, %v399, 0
      %v708 = vsel %vm426, %v400, 0
      %v711 = vsel %vm426, %v401, 0
      %v714 = vsel %vm426, %v402, 0
      %716 = vmatpush.msra.mxu0 0.0
      %717 = vmatpush.msra.mxu0 0.0
      %718 = vmatpush.msra.mxu0 0.0
      %719 = vmatpush.msra.mxu0 0.0
      %720 = vmatpush.msra.mxu0 0.0
      %721 = vmatpush.msra.mxu0 0.0
      %722 = vmatpush.msra.mxu0 0.0
      %723 = vmatpush.msra.mxu0 0.0
      %724 = vmatpush.msra.mxu0 0.0
      %725 = vmatpush.msra.mxu0 0.0
      %726 = vmatpush.msra.mxu0 0.0
      %727 = vmatpush.msra.mxu0 0.0
      %728 = vmatpush.msra.mxu0 %v369
      %729 = vmatpush.msra.mxu0 %v367
      %730 = vmatpush.msra.mxu0 %v365
      %731 = vmatpush.msra.mxu0 %v363
      %732 = vmatmul.f32.gmra.mxu0 %v702
      %v733 = vpop.f32.mrf.mxu0
      %v734 = vadd.f32 0.0, %v733
      %735 = vmatmul.f32.gmra.mxu0 %v705
      %v736 = vpop.f32.mrf.mxu0
      %v737 = vadd.f32 0.0, %v736
      %738 = vmatmul.f32.gmra.mxu0 %v708
      %v739 = vpop.f32.mrf.mxu0
      %v740 = vadd.f32 0.0, %v739
      %741 = vmatmul.f32.gmra.mxu0 %v711
      %v742 = vpop.f32.mrf.mxu0
      %v743 = vadd.f32 0.0, %v742
      %744 = vmatmul.f32.gmra.mxu0 %v714
      %v745 = vpop.f32.mrf.mxu0
      %v746 = vadd.f32 0.0, %v745
      %747 = vdwg.mxu0
      %748 = vmatpush.msra.mxu0 0.0
      %749 = vmatpush.msra.mxu0 0.0
      %750 = vmatpush.msra.mxu0 0.0
      %751 = vmatpush.msra.mxu0 0.0
      %752 = vmatpush.msra.mxu0 0.0
      %753 = vmatpush.msra.mxu0 0.0
      %754 = vmatpush.msra.mxu0 0.0
      %755 = vmatpush.msra.mxu0 0.0
      %756 = vmatpush.msra.mxu0 0.0
      %757 = vmatpush.msra.mxu0 0.0
      %758 = vmatpush.msra.mxu0 0.0
      %759 = vmatpush.msra.mxu0 0.0
      %760 = vmatpush.msra.mxu0 %v370
      %761 = vmatpush.msra.mxu0 %v368
      %762 = vmatpush.msra.mxu0 %v366
      %763 = vmatpush.msra.mxu0 %v364
      %764 = vmatmul.f32.gmra.mxu0 %v702
      %v765 = vpop.f32.mrf.mxu0
      %v766 = vadd.f32 0.0, %v765
      %767 = vmatmul.f32.gmra.mxu0 %v705
      %v768 = vpop.f32.mrf.mxu0
      %v769 = vadd.f32 0.0, %v768
      %770 = vmatmul.f32.gmra.mxu0 %v708
      %v771 = vpop.f32.mrf.mxu0
      %v772 = vadd.f32 0.0, %v771
      %773 = vmatmul.f32.gmra.mxu0 %v711
      %v774 = vpop.f32.mrf.mxu0
      %v775 = vadd.f32 0.0, %v774
      %776 = vmatmul.f32.gmra.mxu0 %v714
      %v777 = vpop.f32.mrf.mxu0
      %v778 = vadd.f32 0.0, %v777
      %779 = vdwg.mxu0
      %v780 = vmul.f32 %v734, %v371
      %v781 = vmul.f32 %v766, %v372
      %v782 = vmul.f32 %v737, %v373
      %v783 = vmul.f32 %v769, %v374
      %v784 = vmul.f32 %v740, %v375
      %v785 = vmul.f32 %v772, %v376
      %v786 = vmul.f32 %v743, %v377
      %v787 = vmul.f32 %v775, %v378
      %v788 = vmul.f32 %v746, %v379
      %v789 = vmul.f32 %v778, %v380
      %v790 = vadd.f32 %v780, %v782
      %v791 = vadd.f32 %v790, %v784
      %v792 = vadd.f32 %v791, %v786
      %v793 = vsel %vm562, %v788, 0.0
      %v794 = vadd.f32 %v792, %v793
      %v795 = vrot.slane %v794, 4
      %v796 = vadd.f32 %v794, %v795
      %v797 = vrot.slane %v796, 2
      %v798 = vadd.f32 %v796, %v797
      %v799 = vrot.slane %v798, 1
      %v800 = vadd.f32 %v798, %v799
      %v801 = vadd.f32 %v781, %v783
      %v802 = vadd.f32 %v801, %v785
      %v803 = vadd.f32 %v802, %v787
      %v804 = vsel %vm562, %v789, 0.0
      %v805 = vadd.f32 %v803, %v804
      %v806 = vrot.slane %v805, 4
      %v807 = vadd.f32 %v805, %v806
      %v808 = vrot.slane %v807, 2
      %v809 = vadd.f32 %v807, %v808
      %v810 = vrot.slane %v809, 1
      %v811 = vadd.f32 %v809, %v810
      %v816 = vrot.slane %v402, 4
      %v817 = vrot.slane %v403, 4
      %v818 = vsel %vm562, %v816, %v817
      %v819 = vrot.slane %v404, 4
      %v820 = vsel %vm562, %v817, %v819
      %v821 = vrot.slane %v405, 4
      %v822 = vsel %vm562, %v819, %v821
      %v823 = vrot.slane %v406, 4
      %v824 = vsel %vm562, %v821, %v823
      %v825 = vsel %vm426, %v818, 0
      %v827 = vsel %vm426, %v820, 0
      %v829 = vsel %vm426, %v822, 0
      %v831 = vsel %vm426, %v824, 0
      %v833 = vsel %vm426, %v823, 0
      %835 = vmatpush.msra.mxu0 0.0
      %836 = vmatpush.msra.mxu0 0.0
      %837 = vmatpush.msra.mxu0 0.0
      %838 = vmatpush.msra.mxu0 0.0
      %839 = vmatpush.msra.mxu0 0.0
      %840 = vmatpush.msra.mxu0 0.0
      %841 = vmatpush.msra.mxu0 0.0
      %842 = vmatpush.msra.mxu0 0.0
      %843 = vmatpush.msra.mxu0 0.0
      %844 = vmatpush.msra.mxu0 0.0
      %845 = vmatpush.msra.mxu0 0.0
      %846 = vmatpush.msra.mxu0 0.0
      %847 = vmatpush.msra.mxu0 %v369
      %848 = vmatpush.msra.mxu0 %v367
      %849 = vmatpush.msra.mxu0 %v365
      %850 = vmatpush.msra.mxu0 %v363
      %851 = vmatmul.f32.gmra.mxu0 %v825
      %v852 = vpop.f32.mrf.mxu0
      %v853 = vadd.f32 0.0, %v852
      %854 = vmatmul.f32.gmra.mxu0 %v827
      %v855 = vpop.f32.mrf.mxu0
      %v856 = vadd.f32 0.0, %v855
      %857 = vmatmul.f32.gmra.mxu0 %v829
      %v858 = vpop.f32.mrf.mxu0
      %v859 = vadd.f32 0.0, %v858
      %860 = vmatmul.f32.gmra.mxu0 %v831
      %v861 = vpop.f32.mrf.mxu0
      %v862 = vadd.f32 0.0, %v861
      %863 = vmatmul.f32.gmra.mxu0 %v833
      %v864 = vpop.f32.mrf.mxu0
      %v865 = vadd.f32 0.0, %v864
      %866 = vdwg.mxu0
      %867 = vmatpush.msra.mxu0 0.0
      %868 = vmatpush.msra.mxu0 0.0
      %869 = vmatpush.msra.mxu0 0.0
      %870 = vmatpush.msra.mxu0 0.0
      %871 = vmatpush.msra.mxu0 0.0
      %872 = vmatpush.msra.mxu0 0.0
      %873 = vmatpush.msra.mxu0 0.0
      %874 = vmatpush.msra.mxu0 0.0
      %875 = vmatpush.msra.mxu0 0.0
      %876 = vmatpush.msra.mxu0 0.0
      %877 = vmatpush.msra.mxu0 0.0
      %878 = vmatpush.msra.mxu0 0.0
      %879 = vmatpush.msra.mxu0 %v370
      %880 = vmatpush.msra.mxu0 %v368
      %881 = vmatpush.msra.mxu0 %v366
      %882 = vmatpush.msra.mxu0 %v364
      %883 = vmatmul.f32.gmra.mxu0 %v825
      %v884 = vpop.f32.mrf.mxu0
      %v885 = vadd.f32 0.0, %v884
      %886 = vmatmul.f32.gmra.mxu0 %v827
      %v887 = vpop.f32.mrf.mxu0
      %v888 = vadd.f32 0.0, %v887
      %889 = vmatmul.f32.gmra.mxu0 %v829
      %v890 = vpop.f32.mrf.mxu0
      %v891 = vadd.f32 0.0, %v890
      %892 = vmatmul.f32.gmra.mxu0 %v831
      %v893 = vpop.f32.mrf.mxu0
      %v894 = vadd.f32 0.0, %v893
      %895 = vmatmul.f32.gmra.mxu0 %v833
      %v896 = vpop.f32.mrf.mxu0
      %v897 = vadd.f32 0.0, %v896
      %898 = vdwg.mxu0
      %v899 = vmul.f32 %v853, %v371
      %v900 = vmul.f32 %v885, %v372
      %v901 = vmul.f32 %v856, %v373
      %v902 = vmul.f32 %v888, %v374
      %v903 = vmul.f32 %v859, %v375
      %v904 = vmul.f32 %v891, %v376
      %v905 = vmul.f32 %v862, %v377
      %v906 = vmul.f32 %v894, %v378
      %v907 = vmul.f32 %v865, %v379
      %v908 = vmul.f32 %v897, %v380
      %v909 = vadd.f32 %v899, %v901
      %v910 = vadd.f32 %v909, %v903
      %v911 = vadd.f32 %v910, %v905
      %v912 = vsel %vm562, %v907, 0.0
      %v913 = vadd.f32 %v911, %v912
      %v914 = vrot.slane %v913, 4
      %v915 = vadd.f32 %v913, %v914
      %v916 = vrot.slane %v915, 2
      %v917 = vadd.f32 %v915, %v916
      %v918 = vrot.slane %v917, 1
      %v919 = vadd.f32 %v917, %v918
      %v920 = vadd.f32 %v900, %v902
      %v921 = vadd.f32 %v920, %v904
      %v922 = vadd.f32 %v921, %v906
      %v923 = vsel %vm562, %v908, 0.0
      %v924 = vadd.f32 %v922, %v923
      %v925 = vrot.slane %v924, 4
      %v926 = vadd.f32 %v924, %v925
      %v927 = vrot.slane %v926, 2
      %v928 = vadd.f32 %v926, %v927
      %v929 = vrot.slane %v928, 1
      %v930 = vadd.f32 %v928, %v929
      %v932 = vsel %vm426, %v407, 0
      %v935 = vsel %vm426, %v408, 0
      %v938 = vsel %vm426, %v409, 0
      %v941 = vsel %vm426, %v410, 0
      %v944 = vsel %vm426, %v411, 0
      %946 = vmatpush.msra.mxu0 0.0
      %947 = vmatpush.msra.mxu0 0.0
      %948 = vmatpush.msra.mxu0 0.0
      %949 = vmatpush.msra.mxu0 0.0
      %950 = vmatpush.msra.mxu0 0.0
      %951 = vmatpush.msra.mxu0 0.0
      %952 = vmatpush.msra.mxu0 0.0
      %953 = vmatpush.msra.mxu0 0.0
      %954 = vmatpush.msra.mxu0 0.0
      %955 = vmatpush.msra.mxu0 0.0
      %956 = vmatpush.msra.mxu0 0.0
      %957 = vmatpush.msra.mxu0 0.0
      %958 = vmatpush.msra.mxu0 %v369
      %959 = vmatpush.msra.mxu0 %v367
      %960 = vmatpush.msra.mxu0 %v365
      %961 = vmatpush.msra.mxu0 %v363
      %962 = vmatmul.f32.gmra.mxu0 %v932
      %v963 = vpop.f32.mrf.mxu0
      %v964 = vadd.f32 0.0, %v963
      %965 = vmatmul.f32.gmra.mxu0 %v935
      %v966 = vpop.f32.mrf.mxu0
      %v967 = vadd.f32 0.0, %v966
      %968 = vmatmul.f32.gmra.mxu0 %v938
      %v969 = vpop.f32.mrf.mxu0
      %v970 = vadd.f32 0.0, %v969
      %971 = vmatmul.f32.gmra.mxu0 %v941
      %v972 = vpop.f32.mrf.mxu0
      %v973 = vadd.f32 0.0, %v972
      %974 = vmatmul.f32.gmra.mxu0 %v944
      %v975 = vpop.f32.mrf.mxu0
      %v976 = vadd.f32 0.0, %v975
      %977 = vdwg.mxu0
      %978 = vmatpush.msra.mxu0 0.0
      %979 = vmatpush.msra.mxu0 0.0
      %980 = vmatpush.msra.mxu0 0.0
      %981 = vmatpush.msra.mxu0 0.0
      %982 = vmatpush.msra.mxu0 0.0
      %983 = vmatpush.msra.mxu0 0.0
      %984 = vmatpush.msra.mxu0 0.0
      %985 = vmatpush.msra.mxu0 0.0
      %986 = vmatpush.msra.mxu0 0.0
      %987 = vmatpush.msra.mxu0 0.0
      %988 = vmatpush.msra.mxu0 0.0
      %989 = vmatpush.msra.mxu0 0.0
      %990 = vmatpush.msra.mxu0 %v370
      %991 = vmatpush.msra.mxu0 %v368
      %992 = vmatpush.msra.mxu0 %v366
      %993 = vmatpush.msra.mxu0 %v364
      %994 = vmatmul.f32.gmra.mxu0 %v932
      %v995 = vpop.f32.mrf.mxu0
      %v996 = vadd.f32 0.0, %v995
      %997 = vmatmul.f32.gmra.mxu0 %v935
      %v998 = vpop.f32.mrf.mxu0
      %v999 = vadd.f32 0.0, %v998
      %1000 = vmatmul.f32.gmra.mxu0 %v938
      %v1001 = vpop.f32.mrf.mxu0
      %v1002 = vadd.f32 0.0, %v1001
      %1003 = vmatmul.f32.gmra.mxu0 %v941
      %v1004 = vpop.f32.mrf.mxu0
      %v1005 = vadd.f32 0.0, %v1004
      %1006 = vmatmul.f32.gmra.mxu0 %v944
      %v1007 = vpop.f32.mrf.mxu0
      %v1008 = vadd.f32 0.0, %v1007
      %1009 = vdwg.mxu0
      %v1020 = vrot.slane %v379, 4
      %v1021 = vrot.slane %v381, 4
      %v1022 = vsel %vm562, %v1020, %v1021
      %v1023 = vrot.slane %v380, 4
      %v1024 = vrot.slane %v382, 4
      %v1025 = vsel %vm562, %v1023, %v1024
      %v1026 = vrot.slane %v383, 4
      %v1027 = vsel %vm562, %v1021, %v1026
      %v1028 = vrot.slane %v384, 4
      %v1029 = vsel %vm562, %v1024, %v1028
      %v1030 = vrot.slane %v385, 4
      %v1031 = vsel %vm562, %v1026, %v1030
      %v1032 = vrot.slane %v386, 4
      %v1033 = vsel %vm562, %v1028, %v1032
      %v1034 = vrot.slane %v387, 4
      %v1035 = vsel %vm562, %v1030, %v1034
      %v1036 = vrot.slane %v388, 4
      %v1037 = vsel %vm562, %v1032, %v1036
      %v1048 = vmul.f32 %v964, %v1022
      %v1049 = vmul.f32 %v996, %v1025
      %v1050 = vmul.f32 %v967, %v1027
      %v1051 = vmul.f32 %v999, %v1029
      %v1052 = vmul.f32 %v970, %v1031
      %v1053 = vmul.f32 %v1002, %v1033
      %v1054 = vmul.f32 %v973, %v1035
      %v1055 = vmul.f32 %v1005, %v1037
      %v1056 = vmul.f32 %v976, %v1034
      %v1057 = vmul.f32 %v1008, %v1036
      %v1058 = vadd.f32 %v1048, %v1050
      %v1059 = vadd.f32 %v1058, %v1052
      %v1060 = vadd.f32 %v1059, %v1054
      %v1061 = vsel %vm562, %v1056, 0.0
      %v1062 = vadd.f32 %v1060, %v1061
      %v1063 = vrot.slane %v1062, 4
      %v1064 = vadd.f32 %v1062, %v1063
      %v1065 = vrot.slane %v1064, 2
      %v1066 = vadd.f32 %v1064, %v1065
      %v1067 = vrot.slane %v1066, 1
      %v1068 = vadd.f32 %v1066, %v1067
      %v1069 = vadd.f32 %v1049, %v1051
      %v1070 = vadd.f32 %v1069, %v1053
      %v1071 = vadd.f32 %v1070, %v1055
      %v1072 = vsel %vm562, %v1057, 0.0
      %v1073 = vadd.f32 %v1071, %v1072
      %v1074 = vrot.slane %v1073, 4
      %v1075 = vadd.f32 %v1073, %v1074
      %v1076 = vrot.slane %v1075, 2
      %v1077 = vadd.f32 %v1075, %v1076
      %v1078 = vrot.slane %v1077, 1
      %v1079 = vadd.f32 %v1077, %v1078
      %v1084 = vrot.slane %v411, 4
      %v1085 = vrot.slane %v412, 4
      %v1086 = vsel %vm562, %v1084, %v1085
      %v1087 = vrot.slane %v413, 4
      %v1088 = vsel %vm562, %v1085, %v1087
      %v1089 = vrot.slane %v414, 4
      %v1090 = vsel %vm562, %v1087, %v1089
      %v1091 = vrot.slane %v415, 4
      %v1092 = vsel %vm562, %v1089, %v1091
      %v1093 = vsel %vm426, %v1086, 0
      %v1095 = vsel %vm426, %v1088, 0
      %v1097 = vsel %vm426, %v1090, 0
      %v1099 = vsel %vm426, %v1092, 0
      %v1101 = vsel %vm426, %v1091, 0
      %1103 = vmatpush.msra.mxu0 0.0
      %1104 = vmatpush.msra.mxu0 0.0
      %1105 = vmatpush.msra.mxu0 0.0
      %1106 = vmatpush.msra.mxu0 0.0
      %1107 = vmatpush.msra.mxu0 0.0
      %1108 = vmatpush.msra.mxu0 0.0
      %1109 = vmatpush.msra.mxu0 0.0
      %1110 = vmatpush.msra.mxu0 0.0
      %1111 = vmatpush.msra.mxu0 0.0
      %1112 = vmatpush.msra.mxu0 0.0
      %1113 = vmatpush.msra.mxu0 0.0
      %1114 = vmatpush.msra.mxu0 0.0
      %1115 = vmatpush.msra.mxu0 %v369
      %1116 = vmatpush.msra.mxu0 %v367
      %1117 = vmatpush.msra.mxu0 %v365
      %1118 = vmatpush.msra.mxu0 %v363
      %1119 = vmatmul.f32.gmra.mxu0 %v1093
      %v1120 = vpop.f32.mrf.mxu0
      %v1121 = vadd.f32 0.0, %v1120
      %1122 = vmatmul.f32.gmra.mxu0 %v1095
      %v1123 = vpop.f32.mrf.mxu0
      %v1124 = vadd.f32 0.0, %v1123
      %1125 = vmatmul.f32.gmra.mxu0 %v1097
      %v1126 = vpop.f32.mrf.mxu0
      %v1127 = vadd.f32 0.0, %v1126
      %1128 = vmatmul.f32.gmra.mxu0 %v1099
      %v1129 = vpop.f32.mrf.mxu0
      %v1130 = vadd.f32 0.0, %v1129
      %1131 = vmatmul.f32.gmra.mxu0 %v1101
      %v1132 = vpop.f32.mrf.mxu0
      %v1133 = vadd.f32 0.0, %v1132
      %1134 = vdwg.mxu0
      %1135 = vmatpush.msra.mxu0 0.0
      %1136 = vmatpush.msra.mxu0 0.0
      %1137 = vmatpush.msra.mxu0 0.0
      %1138 = vmatpush.msra.mxu0 0.0
      %1139 = vmatpush.msra.mxu0 0.0
      %1140 = vmatpush.msra.mxu0 0.0
      %1141 = vmatpush.msra.mxu0 0.0
      %1142 = vmatpush.msra.mxu0 0.0
      %1143 = vmatpush.msra.mxu0 0.0
      %1144 = vmatpush.msra.mxu0 0.0
      %1145 = vmatpush.msra.mxu0 0.0
      %1146 = vmatpush.msra.mxu0 0.0
      %1147 = vmatpush.msra.mxu0 %v370
      %1148 = vmatpush.msra.mxu0 %v368
      %1149 = vmatpush.msra.mxu0 %v366
      %1150 = vmatpush.msra.mxu0 %v364
      %1151 = vmatmul.f32.gmra.mxu0 %v1093
      %v1152 = vpop.f32.mrf.mxu0
      %v1153 = vadd.f32 0.0, %v1152
      %1154 = vmatmul.f32.gmra.mxu0 %v1095
      %v1155 = vpop.f32.mrf.mxu0
      %v1156 = vadd.f32 0.0, %v1155
      %1157 = vmatmul.f32.gmra.mxu0 %v1097
      %v1158 = vpop.f32.mrf.mxu0
      %v1159 = vadd.f32 0.0, %v1158
      %1160 = vmatmul.f32.gmra.mxu0 %v1099
      %v1161 = vpop.f32.mrf.mxu0
      %v1162 = vadd.f32 0.0, %v1161
      %1163 = vmatmul.f32.gmra.mxu0 %v1101
      %v1164 = vpop.f32.mrf.mxu0
      %v1165 = vadd.f32 0.0, %v1164
      %1166 = vdwg.mxu0
      %v1167 = vmul.f32 %v1121, %v1022
      %v1168 = vmul.f32 %v1153, %v1025
      %v1169 = vmul.f32 %v1124, %v1027
      %v1170 = vmul.f32 %v1156, %v1029
      %v1171 = vmul.f32 %v1127, %v1031
      %v1172 = vmul.f32 %v1159, %v1033
      %v1173 = vmul.f32 %v1130, %v1035
      %v1174 = vmul.f32 %v1162, %v1037
      %v1175 = vmul.f32 %v1133, %v1034
      %v1176 = vmul.f32 %v1165, %v1036
      %v1177 = vadd.f32 %v1167, %v1169
      %v1178 = vadd.f32 %v1177, %v1171
      %v1179 = vadd.f32 %v1178, %v1173
      %v1180 = vsel %vm562, %v1175, 0.0
      %v1181 = vadd.f32 %v1179, %v1180
      %v1182 = vrot.slane %v1181, 4
      %v1183 = vadd.f32 %v1181, %v1182
      %v1184 = vrot.slane %v1183, 2
      %v1185 = vadd.f32 %v1183, %v1184
      %v1186 = vrot.slane %v1185, 1
      %v1187 = vadd.f32 %v1185, %v1186
      %v1188 = vadd.f32 %v1168, %v1170
      %v1189 = vadd.f32 %v1188, %v1172
      %v1190 = vadd.f32 %v1189, %v1174
      %v1191 = vsel %vm562, %v1176, 0.0
      %v1192 = vadd.f32 %v1190, %v1191
      %v1193 = vrot.slane %v1192, 4
      %v1194 = vadd.f32 %v1192, %v1193
      %v1195 = vrot.slane %v1194, 2
      %v1196 = vadd.f32 %v1194, %v1195
      %v1197 = vrot.slane %v1196, 1
      %v1198 = vadd.f32 %v1196, %v1197
      %v1200 = vsel %vm426, %v416, 0
      %v1203 = vsel %vm426, %v417, 0
      %v1206 = vsel %vm426, %v418, 0
      %v1209 = vsel %vm426, %v419, 0
      %v1212 = vsel %vm426, %v420, 0
      %1214 = vmatpush.msra.mxu0 0.0
      %1215 = vmatpush.msra.mxu0 0.0
      %1216 = vmatpush.msra.mxu0 0.0
      %1217 = vmatpush.msra.mxu0 0.0
      %1218 = vmatpush.msra.mxu0 0.0
      %1219 = vmatpush.msra.mxu0 0.0
      %1220 = vmatpush.msra.mxu0 0.0
      %1221 = vmatpush.msra.mxu0 0.0
      %1222 = vmatpush.msra.mxu0 0.0
      %1223 = vmatpush.msra.mxu0 0.0
      %1224 = vmatpush.msra.mxu0 0.0
      %1225 = vmatpush.msra.mxu0 0.0
      %1226 = vmatpush.msra.mxu0 %v369
      %1227 = vmatpush.msra.mxu0 %v367
      %1228 = vmatpush.msra.mxu0 %v365
      %1229 = vmatpush.msra.mxu0 %v363
      %1230 = vmatmul.f32.gmra.mxu0 %v1200
      %v1231 = vpop.f32.mrf.mxu0
      %v1232 = vadd.f32 0.0, %v1231
      %1233 = vmatmul.f32.gmra.mxu0 %v1203
      %v1234 = vpop.f32.mrf.mxu0
      %v1235 = vadd.f32 0.0, %v1234
      %1236 = vmatmul.f32.gmra.mxu0 %v1206
      %v1237 = vpop.f32.mrf.mxu0
      %v1238 = vadd.f32 0.0, %v1237
      %1239 = vmatmul.f32.gmra.mxu0 %v1209
      %v1240 = vpop.f32.mrf.mxu0
      %v1241 = vadd.f32 0.0, %v1240
      %1242 = vmatmul.f32.gmra.mxu0 %v1212
      %v1243 = vpop.f32.mrf.mxu0
      %v1244 = vadd.f32 0.0, %v1243
      %1245 = vdwg.mxu0
      %1246 = vmatpush.msra.mxu0 0.0
      %1247 = vmatpush.msra.mxu0 0.0
      %1248 = vmatpush.msra.mxu0 0.0
      %1249 = vmatpush.msra.mxu0 0.0
      %1250 = vmatpush.msra.mxu0 0.0
      %1251 = vmatpush.msra.mxu0 0.0
      %1252 = vmatpush.msra.mxu0 0.0
      %1253 = vmatpush.msra.mxu0 0.0
      %1254 = vmatpush.msra.mxu0 0.0
      %1255 = vmatpush.msra.mxu0 0.0
      %1256 = vmatpush.msra.mxu0 0.0
      %1257 = vmatpush.msra.mxu0 0.0
      %1258 = vmatpush.msra.mxu0 %v370
      %1259 = vmatpush.msra.mxu0 %v368
      %1260 = vmatpush.msra.mxu0 %v366
      %1261 = vmatpush.msra.mxu0 %v364
      %1262 = vmatmul.f32.gmra.mxu0 %v1200
      %v1263 = vpop.f32.mrf.mxu0
      %v1264 = vadd.f32 0.0, %v1263
      %1265 = vmatmul.f32.gmra.mxu0 %v1203
      %v1266 = vpop.f32.mrf.mxu0
      %v1267 = vadd.f32 0.0, %v1266
      %1268 = vmatmul.f32.gmra.mxu0 %v1206
      %v1269 = vpop.f32.mrf.mxu0
      %v1270 = vadd.f32 0.0, %v1269
      %1271 = vmatmul.f32.gmra.mxu0 %v1209
      %v1272 = vpop.f32.mrf.mxu0
      %v1273 = vadd.f32 0.0, %v1272
      %1274 = vmatmul.f32.gmra.mxu0 %v1212
      %v1275 = vpop.f32.mrf.mxu0
      %v1276 = vadd.f32 0.0, %v1275
      %1277 = vdwg.mxu0
      %v1278 = vmul.f32 %v1232, %v1022
      %v1279 = vmul.f32 %v1264, %v1025
      %v1280 = vmul.f32 %v1235, %v1027
      %v1281 = vmul.f32 %v1267, %v1029
      %v1282 = vmul.f32 %v1238, %v1031
      %v1283 = vmul.f32 %v1270, %v1033
      %v1284 = vmul.f32 %v1241, %v1035
      %v1285 = vmul.f32 %v1273, %v1037
      %v1286 = vmul.f32 %v1244, %v1034
      %v1287 = vmul.f32 %v1276, %v1036
      %v1288 = vadd.f32 %v1278, %v1280
      %v1289 = vadd.f32 %v1288, %v1282
      %v1290 = vadd.f32 %v1289, %v1284
      %v1291 = vsel %vm562, %v1286, 0.0
      %v1292 = vadd.f32 %v1290, %v1291
      %v1293 = vrot.slane %v1292, 4
      %v1294 = vadd.f32 %v1292, %v1293
      %v1295 = vrot.slane %v1294, 2
      %v1296 = vadd.f32 %v1294, %v1295
      %v1297 = vrot.slane %v1296, 1
      %v1298 = vadd.f32 %v1296, %v1297
      %v1299 = vadd.f32 %v1279, %v1281
      %v1300 = vadd.f32 %v1299, %v1283
      %v1301 = vadd.f32 %v1300, %v1285
      %v1302 = vsel %vm562, %v1287, 0.0
      %v1303 = vadd.f32 %v1301, %v1302
      %v1304 = vrot.slane %v1303, 4
      %v1305 = vadd.f32 %v1303, %v1304
      %v1306 = vrot.slane %v1305, 2
      %v1307 = vadd.f32 %v1305, %v1306
      %v1308 = vrot.slane %v1307, 1
      %v1309 = vadd.f32 %v1307, %v1308
      %v1314 = vrot.slane %v420, 4
      %v1315 = vrot.slane %v421, 4
      %v1316 = vsel %vm562, %v1314, %v1315
      %v1317 = vrot.slane %v422, 4
      %v1318 = vsel %vm562, %v1315, %v1317
      %v1319 = vrot.slane %v423, 4
      %v1320 = vsel %vm562, %v1317, %v1319
      %v1321 = vrot.slane %v424, 4
      %v1322 = vsel %vm562, %v1319, %v1321
      %v1323 = vsel %vm426, %v1316, 0
      %v1325 = vsel %vm426, %v1318, 0
      %v1327 = vsel %vm426, %v1320, 0
      %v1329 = vsel %vm426, %v1322, 0
      %v1331 = vsel %vm426, %v1321, 0
      %1333 = vmatpush.msra.mxu0 0.0
      %1334 = vmatpush.msra.mxu0 0.0
      %1335 = vmatpush.msra.mxu0 0.0
      %1336 = vmatpush.msra.mxu0 0.0
      %1337 = vmatpush.msra.mxu0 0.0
      %1338 = vmatpush.msra.mxu0 0.0
      %1339 = vmatpush.msra.mxu0 0.0
      %1340 = vmatpush.msra.mxu0 0.0
      %1341 = vmatpush.msra.mxu0 0.0
      %1342 = vmatpush.msra.mxu0 0.0
      %1343 = vmatpush.msra.mxu0 0.0
      %1344 = vmatpush.msra.mxu0 0.0
      %1345 = vmatpush.msra.mxu0 %v369
      %1346 = vmatpush.msra.mxu0 %v367
      %1347 = vmatpush.msra.mxu0 %v365
      %1348 = vmatpush.msra.mxu0 %v363
      %1349 = vmatmul.f32.gmra.mxu0 %v1323
      %v1350 = vpop.f32.mrf.mxu0
      %v1351 = vadd.f32 0.0, %v1350
      %1352 = vmatmul.f32.gmra.mxu0 %v1325
      %v1353 = vpop.f32.mrf.mxu0
      %v1354 = vadd.f32 0.0, %v1353
      %1355 = vmatmul.f32.gmra.mxu0 %v1327
      %v1356 = vpop.f32.mrf.mxu0
      %v1357 = vadd.f32 0.0, %v1356
      %1358 = vmatmul.f32.gmra.mxu0 %v1329
      %v1359 = vpop.f32.mrf.mxu0
      %v1360 = vadd.f32 0.0, %v1359
      %1361 = vmatmul.f32.gmra.mxu0 %v1331
      %v1362 = vpop.f32.mrf.mxu0
      %v1363 = vadd.f32 0.0, %v1362
      %1364 = vdwg.mxu0
      %1365 = vmatpush.msra.mxu0 0.0
      %1366 = vmatpush.msra.mxu0 0.0
      %1367 = vmatpush.msra.mxu0 0.0
      %1368 = vmatpush.msra.mxu0 0.0
      %1369 = vmatpush.msra.mxu0 0.0
      %1370 = vmatpush.msra.mxu0 0.0
      %1371 = vmatpush.msra.mxu0 0.0
      %1372 = vmatpush.msra.mxu0 0.0
      %1373 = vmatpush.msra.mxu0 0.0
      %1374 = vmatpush.msra.mxu0 0.0
      %1375 = vmatpush.msra.mxu0 0.0
      %1376 = vmatpush.msra.mxu0 0.0
      %1377 = vmatpush.msra.mxu0 %v370
      %1378 = vmatpush.msra.mxu0 %v368
      %1379 = vmatpush.msra.mxu0 %v366
      %1380 = vmatpush.msra.mxu0 %v364
      %1381 = vmatmul.f32.gmra.mxu0 %v1323
      %v1382 = vpop.f32.mrf.mxu0
      %v1383 = vadd.f32 0.0, %v1382
      %1384 = vmatmul.f32.gmra.mxu0 %v1325
      %v1385 = vpop.f32.mrf.mxu0
      %v1386 = vadd.f32 0.0, %v1385
      %1387 = vmatmul.f32.gmra.mxu0 %v1327
      %v1388 = vpop.f32.mrf.mxu0
      %v1389 = vadd.f32 0.0, %v1388
      %1390 = vmatmul.f32.gmra.mxu0 %v1329
      %v1391 = vpop.f32.mrf.mxu0
      %v1392 = vadd.f32 0.0, %v1391
      %1393 = vmatmul.f32.gmra.mxu0 %v1331
      %v1394 = vpop.f32.mrf.mxu0
      %v1395 = vadd.f32 0.0, %v1394
      %1396 = vdwg.mxu0
      %v1397 = vmul.f32 %v1351, %v1022
      %v1398 = vmul.f32 %v1383, %v1025
      %v1399 = vmul.f32 %v1354, %v1027
      %v1400 = vmul.f32 %v1386, %v1029
      %v1401 = vmul.f32 %v1357, %v1031
      %v1402 = vmul.f32 %v1389, %v1033
      %v1403 = vmul.f32 %v1360, %v1035
      %v1404 = vmul.f32 %v1392, %v1037
      %v1405 = vmul.f32 %v1363, %v1034
      %v1406 = vmul.f32 %v1395, %v1036
      %v1407 = vadd.f32 %v1397, %v1399
      %v1408 = vadd.f32 %v1407, %v1401
      %v1409 = vadd.f32 %v1408, %v1403
      %v1410 = vsel %vm562, %v1405, 0.0
      %v1411 = vadd.f32 %v1409, %v1410
      %v1412 = vrot.slane %v1411, 4
      %v1413 = vadd.f32 %v1411, %v1412
      %v1414 = vrot.slane %v1413, 2
      %v1415 = vadd.f32 %v1413, %v1414
      %v1416 = vrot.slane %v1415, 1
      %v1417 = vadd.f32 %v1415, %v1416
      %v1418 = vadd.f32 %v1398, %v1400
      %v1419 = vadd.f32 %v1418, %v1402
      %v1420 = vadd.f32 %v1419, %v1404
      %v1421 = vsel %vm562, %v1406, 0.0
      %v1422 = vadd.f32 %v1420, %v1421
      %v1423 = vrot.slane %v1422, 4
      %v1424 = vadd.f32 %v1422, %v1423
      %v1425 = vrot.slane %v1424, 2
      %v1426 = vadd.f32 %v1424, %v1425
      %v1427 = vrot.slane %v1426, 1
      %v1428 = vadd.f32 %v1426, %v1427
      %vm1429 = vcmask 1040384
      %v1430 = vsel %vm1429, %v570, %v689
      %v1431 = vsel %vm1429, %v581, %v700
      %vm1432 = vcmask 1041408
      %v1433 = vsel %vm1432, %v1430, %v800
      %v1434 = vsel %vm1432, %v1431, %v811
      %vm1435 = vcmask 1042432
      %v1436 = vsel %vm1435, %v1433, %v919
      %v1437 = vsel %vm1435, %v1434, %v930
      %v1438 = vsel %vm562, %v1436, %v1068
      %v1439 = vsel %vm562, %v1437, %v1079
      %vm1440 = vcmask 1044480
      %v1441 = vsel %vm1440, %v1438, %v1187
      %v1442 = vsel %vm1440, %v1439, %v1198
      %vm1443 = vcmask 1045504
      %v1444 = vsel %vm1443, %v1441, %v1298
      %v1445 = vsel %vm1443, %v1442, %v1309
      %vm1446 = vcmask 1046528
      %v1447 = vsel %vm1446, %v1444, %v1417
      %v1448 = vsel %vm1446, %v1445, %v1428
      %v1449 = vadd.f32 %v1447, %v448
      %v1450 = vadd.f32 %v1448, %v468
      %v1451 = vld [vmem:[%s5] sm:$0xff]
      %1453 = vset.pattern.permute.xlu0 0
      %1454 = vperm.xlu0 %1453, %v1451
      %v1455 = vpop.permute.xlu0 %1454
      %v1457 = vmul.f32 %v1449, %v1455
      %v1458 = vmul.f32 %v1450, %v1455
      %v1459 = vld [vmem:[%s351] sm:$0xff]
      %v1460 = vld [vmem:[%s351 + $0x8] sm:$0xff]
      %v1461 = vadd.f32 %v1457, %v1459
      %v1462 = vadd.f32 %v1458, %v1460
      %1463 = vst [vmem:[%s361] sm:$0xff] %v1461
      %1464 = vst [vmem:[%s361 + $0x8] sm:$0xff] %v1462
      %s1465 = smul.u32 2, %s22
      %p1466 = scmp.lt.s32.totalorder %s21, 1
      %s1467 = scalar_select %p1466, %s21, 1
      %p1468 = scmp.lt.s32.totalorder %s1465, 1
      %s1469 = scalar_select %p1468, %s1465, 1
      %s1470 = smul.addr %s1467, 2
      %s1471 = sadd.s32 %s1469, %s1470
      %s1472 = smul.addr %s1471, 8
      %s1473 = scalar_lea.vmem %s6, %s1472
      // Predicated region
      $region45: #{kbblock_forward.6} parent=43 // pred_check
        %p1474 = pneg %p196
      $region46: #{kbblock_forward.6} parent=43 // pred_check_branch
        %1476 = sbr.rel (%p1474) target = $region48
      $region47: #{kbblock_forward.6} parent=43 // pred_region
        %s1477 = smul.u32 2, %s22
      $region48: #{kbblock_forward.6} parent=43 // pred_fallthru
        _
    $region44: #{kbblock_forward.6} parent=5 // pred_fallthru
      _
    %p1478 = scmp.le.s32.totalorder 2, %s12
    // Predicated region
    $region49: #{kbblock_forward.6} parent=5 // pred_check
      %p1479 = pneg %p1478
    $region50: #{kbblock_forward.6} parent=5 // pred_check_branch
      %1481 = sbr.rel (%p1479) target = $region52
    $region51: #{kbblock_forward.6} parent=5 // pred_region
      %s1482 = ssub.s32 %s12, 2
      // Predicated region
      $region53: #{kbblock_forward.6} parent=51 // pred_check
        %p1483 = pneg %p202
      $region54: #{kbblock_forward.6} parent=51 // pred_check_branch
        %1485 = sbr.rel (%p1483) target = $region56
      $region55: #{kbblock_forward.6} parent=51 // pred_region
        %s1486 = smul.u32 2, %s24
        %p1487 = scmp.lt.s32.totalorder %s23, 1
        %s1488 = scalar_select %p1487, %s23, 1
        %p1489 = scmp.lt.s32.totalorder %s1486, 1
        %s1490 = scalar_select %p1489, %s1486, 1
        %s1491 = smul.addr %s1488, 2
        %s1492 = sadd.s32 %s1490, %s1491
        %s1493 = smul.addr %s1492, 8
        %s1494 = scalar_lea.vmem %s6, %s1493
      $region56: #{kbblock_forward.6} parent=51 // pred_fallthru
        _
    $region52: #{kbblock_forward.6} parent=5 // pred_fallthru
      _
  $region6: #{kbblock_forward.6} parent=0 // loop_footer
    %s16 = sadd.s32 1, %s12
  $region7: #{kbblock_forward.6} parent=0 // loop_footer_branch
    %11 = sbr.rel target = $region3
  $region8: #{kbblock_forward.6} parent=0 // loop_exit
    _

// kernel: kbblock_forward.7
$region0: #{kbblock_forward.7}
  #allocation0 [shape = 'u32[]', space=smem, size = 0x4, offset = 0x4, fixed_abs, tag = 'smem constant byte address 0x4 - core index']
  #allocation1 [shape = 'u32[72,128]{1,0:T(1,128)}', space=vmem, size = 0x9000, scoped, tag = 'internal scratch']
  %s0 = inlined_call_operand.vmem [shape: f32[2,8,256], index: 0, kind: input, shape index: {}]
  %s1 = inlined_call_operand.vmem [shape: f32[2,8,256], index: 1, kind: input, shape index: {}]
  %s2 = inlined_call_operand.vmem [shape: f32[2,8,1], index: 2, kind: input, shape index: {}]
  %s3 = inlined_call_operand.vmem [shape: f32[2,8,1], index: 3, kind: input, shape index: {}]
  %s4 = inlined_call_operand.vmem [shape: f32[2,8,256], index: 4, kind: input, shape index: {}]
  %s5 = inlined_call_operand.vmem [shape: f32[8,8], index: 5, kind: input, shape index: {}]
  %s6 = inlined_call_operand.vmem [shape: f32[8,1], index: 6, kind: input, shape index: {}]
  %s7 = inlined_call_operand.vmem [shape: f32[8,1], index: 7, kind: input, shape index: {}, may-alias: {7,14}]
  %s8 = inlined_call_operand.vmem [shape: f32[8,1], index: 8, kind: input, shape index: {}]
  %s9 = inlined_call_operand.vmem [shape: f32[8,1], index: 9, kind: input, shape index: {}]
  %s10 = inlined_call_operand.vmem [shape: f32[16,8], index: 10, kind: input, shape index: {}]
  %s11 = inlined_call_operand.vmem [shape: f32[16,1], index: 11, kind: input, shape index: {}]
  %s12 = inlined_call_operand.vmem [shape: f32[8,8], index: 12, kind: input, shape index: {}]
  %s13 = inlined_call_operand.vmem [shape: f32[8,1], index: 13, kind: input, shape index: {}]
  %s14 = inlined_call_operand.vmem [shape: f32[8,1], index: 14, kind: input, shape index: {}, may-alias: {7,14}]
  %s15 = inlined_call_operand.vmem [shape: f32[2,8,256], index: 15, kind: output, shape index: {}]
  %s16 = sld [smem:[#allocation0]]
  $region93: #{kbblock_forward.7} parent=0
    _
  %s18 = ssub.s32 1, %s16
  %s19 = scalar_select 0, %s18, %s16
  loop: start=0, step=1, limit=4
  $region2: #{kbblock_forward.7} parent=0 // loop_pre_header
    _
  $region3: #{kbblock_forward.7} parent=0 // loop_header
    %s21 = sphi 0, %s25
    %p22 = scmp.ge.s32.totalorder %s21, 4
    %s28 = sphi 0, %s40
    %s29 = sphi 0, %s36
    %s30 = sphi 0, %s28
    %s31 = sphi 0, %s29
    %s32 = sphi 0, %s30
    %s33 = sphi 0, %s31
    %s45 = sphi 0, %s47
    %s48 = sphi 0, %s45
    %s49 = sphi 0, %s48
    %s65 = sphi 0, %s49
    %s73 = sphi 0, %s75
    %s76 = sphi 0, %s73
    %s77 = sphi 0, %s76
    %s93 = sphi 0, %s77
    %s99 = sphi 0, %s101
    %s102 = sphi 0, %s99
    %s103 = sphi 0, %s102
    %s119 = sphi 0, %s103
    %s125 = sphi 0, %s127
    %s128 = sphi 0, %s125
    %s129 = sphi 0, %s128
    %s145 = sphi 0, %s129
    %s153 = sphi 0, %s155
    %s156 = sphi 0, %s153
    %s157 = sphi 0, %s156
    %s173 = sphi 0, %s157
    %s177 = sphi 0, %s177
    %s179 = sphi 0, %s177
    %s180 = sphi 0, %s179
    %s194 = sphi 0, %s180
    %s198 = sphi 0, %s198
    %s200 = sphi 0, %s198
    %s201 = sphi 0, %s200
    %s215 = sphi 0, %s201
    %s219 = sphi 0, %s219
    %s221 = sphi 0, %s219
    %s222 = sphi 0, %s221
    %s236 = sphi 0, %s222
    %s240 = sphi 0, %s240
    %s242 = sphi 0, %s240
    %s243 = sphi 0, %s242
    %s257 = sphi 0, %s243
    %s261 = sphi 0, %s261
    %s263 = sphi 0, %s261
    %s264 = sphi 0, %s263
    %s278 = sphi 0, %s264
    %s282 = sphi 0, %s282
    %s284 = sphi 0, %s282
    %s285 = sphi 0, %s284
    %s299 = sphi 0, %s285
    %s303 = sphi 0, %s303
    %s305 = sphi 0, %s303
    %s306 = sphi 0, %s305
    %s320 = sphi 0, %s306
    %s324 = sphi 0, %s324
    %s326 = sphi 0, %s324
    %s327 = sphi 0, %s326
    %s341 = sphi 0, %s327
    %s345 = sphi 0, %s345
    %s347 = sphi 0, %s345
    %s348 = sphi 0, %s347
    %s362 = sphi 0, %s348
    %s366 = sphi 0, %s366
    %s368 = sphi 0, %s366
    %s369 = sphi 0, %s368
    %s383 = sphi 0, %s369
    %s391 = sphi 0, %s393
    %s394 = sphi 0, %s391
    %s395 = sphi 0, %s394
    %s411 = sphi 0, %s395
  $region4: #{kbblock_forward.7} parent=0 // loop_header_branch
    %24 = sbr.rel (%p22) target = $region8
  $region5: #{kbblock_forward.7} parent=0 // loop_body
    %s26 = ssub.s32 %s21, 1
    %s27 = ssub.s32 %s21, 2
    %s34 = sadd.s32 1, %s29
    %p35 = scmp.ge.s32.totalorder %s34, 1
    %s36 = scalar_select %p35, 0, %s34
    %s37 = sadd.s32 1, %s28
    %s38 = scalar_select %p35, %s37, %s28
    %p39 = scmp.ge.s32.totalorder %s38, 2
    %s40 = scalar_select %p39, 0, %s38
    %s41 = ssub.s32 %s28, %s40
    %s42 = ssub.s32 %s29, %s36
    %s43 = sor.u32 %s41, %s42
    %p44 = scmp.eq.s32.totalorder %s43, 0
    %s46 = sadd.s32 %s45, 1
    %s47 = scalar_select %p44, %s45, %s46
    %p50 = pneg %p44
    %p51 = scmp.eq.s32.totalorder %s21, 1
    %p52 = por %p50, %p51
    %p53 = scmp.ne.s32.totalorder %s45, %s48
    %p54 = scmp.eq.s32.totalorder %s21, 0
    %p55 = por %p53, %p54
    %p56 = scmp.ne.s32.totalorder %s45, %s48
    %p57 = scmp.eq.s32.totalorder %s26, 1
    %p58 = por %p56, %p57
    %p59 = scmp.ne.s32.totalorder %s48, %s49
    %p60 = scmp.eq.s32.totalorder %s26, 0
    %p61 = por %p59, %p60
    %p62 = scmp.ne.s32.totalorder %s48, %s49
    %p63 = scmp.eq.s32.totalorder %s27, 1
    %p64 = por %p62, %p63
    %p66 = scmp.ne.s32.totalorder %s49, %s65
    %p67 = scmp.eq.s32.totalorder %s27, 0
    %p68 = por %p66, %p67
    %s69 = ssub.s32 %s28, %s40
    %s70 = ssub.s32 %s29, %s36
    %s71 = sor.u32 %s69, %s70
    %p72 = scmp.eq.s32.totalorder %s71, 0
    %s74 = sadd.s32 %s73, 1
    %s75 = scalar_select %p72, %s73, %s74
    %p78 = pneg %p72
    %p79 = scmp.eq.s32.totalorder %s21, 1
    %p80 = por %p78, %p79
    %p81 = scmp.ne.s32.totalorder %s73, %s76
    %p82 = scmp.eq.s32.totalorder %s21, 0
    %p83 = por %p81, %p82
    %p84 = scmp.ne.s32.totalorder %s73, %s76
    %p85 = scmp.eq.s32.totalorder %s26, 1
    %p86 = por %p84, %p85
    %p87 = scmp.ne.s32.totalorder %s76, %s77
    %p88 = scmp.eq.s32.totalorder %s26, 0
    %p89 = por %p87, %p88
    %p90 = scmp.ne.s32.totalorder %s76, %s77
    %p91 = scmp.eq.s32.totalorder %s27, 1
    %p92 = por %p90, %p91
    %p94 = scmp.ne.s32.totalorder %s77, %s93
    %p95 = scmp.eq.s32.totalorder %s27, 0
    %p96 = por %p94, %p95
    %s97 = ssub.s32 %s28, %s40
    %p98 = scmp.eq.s32.totalorder %s97, 0
    %s100 = sadd.s32 %s99, 1
    %s101 = scalar_select %p98, %s99, %s100
    %p104 = pneg %p98
    %p105 = scmp.eq.s32.totalorder %s21, 1
    %p106 = por %p104, %p105
    %p107 = scmp.ne.s32.totalorder %s99, %s102
    %p108 = scmp.eq.s32.totalorder %s21, 0
    %p109 = por %p107, %p108
    %p110 = scmp.ne.s32.totalorder %s99, %s102
    %p111 = scmp.eq.s32.totalorder %s26, 1
    %p112 = por %p110, %p111
    %p113 = scmp.ne.s32.totalorder %s102, %s103
    %p114 = scmp.eq.s32.totalorder %s26, 0
    %p115 = por %p113, %p114
    %p116 = scmp.ne.s32.totalorder %s102, %s103
    %p117 = scmp.eq.s32.totalorder %s27, 1
    %p118 = por %p116, %p117
    %p120 = scmp.ne.s32.totalorder %s103, %s119
    %p121 = scmp.eq.s32.totalorder %s27, 0
    %p122 = por %p120, %p121
    %s123 = ssub.s32 %s28, %s40
    %p124 = scmp.eq.s32.totalorder %s123, 0
    %s126 = sadd.s32 %s125, 1
    %s127 = scalar_select %p124, %s125, %s126
    %p130 = pneg %p124
    %p131 = scmp.eq.s32.totalorder %s21, 1
    %p132 = por %p130, %p131
    %p133 = scmp.ne.s32.totalorder %s125, %s128
    %p134 = scmp.eq.s32.totalorder %s21, 0
    %p135 = por %p133, %p134
    %p136 = scmp.ne.s32.totalorder %s125, %s128
    %p137 = scmp.eq.s32.totalorder %s26, 1
    %p138 = por %p136, %p137
    %p139 = scmp.ne.s32.totalorder %s128, %s129
    %p140 = scmp.eq.s32.totalorder %s26, 0
    %p141 = por %p139, %p140
    %p142 = scmp.ne.s32.totalorder %s128, %s129
    %p143 = scmp.eq.s32.totalorder %s27, 1
    %p144 = por %p142, %p143
    %p146 = scmp.ne.s32.totalorder %s129, %s145
    %p147 = scmp.eq.s32.totalorder %s27, 0
    %p148 = por %p146, %p147
    %s149 = ssub.s32 %s28, %s40
    %s150 = ssub.s32 %s29, %s36
    %s151 = sor.u32 %s149, %s150
    %p152 = scmp.eq.s32.totalorder %s151, 0
    %s154 = sadd.s32 %s153, 1
    %s155 = scalar_select %p152, %s153, %s154
    %p158 = pneg %p152
    %p159 = scmp.eq.s32.totalorder %s21, 1
    %p160 = por %p158, %p159
    %p161 = scmp.ne.s32.totalorder %s153, %s156
    %p162 = scmp.eq.s32.totalorder %s21, 0
    %p163 = por %p161, %p162
    %p164 = scmp.ne.s32.totalorder %s153, %s156
    %p165 = scmp.eq.s32.totalorder %s26, 1
    %p166 = por %p164, %p165
    %p167 = scmp.ne.s32.totalorder %s156, %s157
    %p168 = scmp.eq.s32.totalorder %s26, 0
    %p169 = por %p167, %p168
    %p170 = scmp.ne.s32.totalorder %s156, %s157
    %p171 = scmp.eq.s32.totalorder %s27, 1
    %p172 = por %p170, %p171
    %p174 = scmp.ne.s32.totalorder %s157, %s173
    %p175 = scmp.eq.s32.totalorder %s27, 0
    %p176 = por %p174, %p175
    %s178 = sadd.s32 %s177, 1
    %p181 = scmp.eq.s32.totalorder %s21, 1
    %p182 = scmp.ne.s32.totalorder %s177, %s179
    %p183 = scmp.eq.s32.totalorder %s21, 0
    %p184 = por %p182, %p183
    %p185 = scmp.ne.s32.totalorder %s177, %s179
    %p186 = scmp.eq.s32.totalorder %s26, 1
    %p187 = por %p185, %p186
    %p188 = scmp.ne.s32.totalorder %s179, %s180
    %p189 = scmp.eq.s32.totalorder %s26, 0
    %p190 = por %p188, %p189
    %p191 = scmp.ne.s32.totalorder %s179, %s180
    %p192 = scmp.eq.s32.totalorder %s27, 1
    %p193 = por %p191, %p192
    %p195 = scmp.ne.s32.totalorder %s180, %s194
    %p196 = scmp.eq.s32.totalorder %s27, 0
    %p197 = por %p195, %p196
    %s199 = sadd.s32 %s198, 1
    %p202 = scmp.eq.s32.totalorder %s21, 1
    %p203 = scmp.ne.s32.totalorder %s198, %s200
    %p204 = scmp.eq.s32.totalorder %s21, 0
    %p205 = por %p203, %p204
    %p206 = scmp.ne.s32.totalorder %s198, %s200
    %p207 = scmp.eq.s32.totalorder %s26, 1
    %p208 = por %p206, %p207
    %p209 = scmp.ne.s32.totalorder %s200, %s201
    %p210 = scmp.eq.s32.totalorder %s26, 0
    %p211 = por %p209, %p210
    %p212 = scmp.ne.s32.totalorder %s200, %s201
    %p213 = scmp.eq.s32.totalorder %s27, 1
    %p214 = por %p212, %p213
    %p216 = scmp.ne.s32.totalorder %s201, %s215
    %p217 = scmp.eq.s32.totalorder %s27, 0
    %p218 = por %p216, %p217
    %s220 = sadd.s32 %s219, 1
    %p223 = scmp.eq.s32.totalorder %s21, 1
    %p224 = scmp.ne.s32.totalorder %s219, %s221
    %p225 = scmp.eq.s32.totalorder %s21, 0
    %p226 = por %p224, %p225
    %p227 = scmp.ne.s32.totalorder %s219, %s221
    %p228 = scmp.eq.s32.totalorder %s26, 1
    %p229 = por %p227, %p228
    %p230 = scmp.ne.s32.totalorder %s221, %s222
    %p231 = scmp.eq.s32.totalorder %s26, 0
    %p232 = por %p230, %p231
    %p233 = scmp.ne.s32.totalorder %s221, %s222
    %p234 = scmp.eq.s32.totalorder %s27, 1
    %p235 = por %p233, %p234
    %p237 = scmp.ne.s32.totalorder %s222, %s236
    %p238 = scmp.eq.s32.totalorder %s27, 0
    %p239 = por %p237, %p238
    %s241 = sadd.s32 %s240, 1
    %p244 = scmp.eq.s32.totalorder %s21, 1
    %p245 = scmp.ne.s32.totalorder %s240, %s242
    %p246 = scmp.eq.s32.totalorder %s21, 0
    %p247 = por %p245, %p246
    %p248 = scmp.ne.s32.totalorder %s240, %s242
    %p249 = scmp.eq.s32.totalorder %s26, 1
    %p250 = por %p248, %p249
    %p251 = scmp.ne.s32.totalorder %s242, %s243
    %p252 = scmp.eq.s32.totalorder %s26, 0
    %p253 = por %p251, %p252
    %p254 = scmp.ne.s32.totalorder %s242, %s243
    %p255 = scmp.eq.s32.totalorder %s27, 1
    %p256 = por %p254, %p255
    %p258 = scmp.ne.s32.totalorder %s243, %s257
    %p259 = scmp.eq.s32.totalorder %s27, 0
    %p260 = por %p258, %p259
    %s262 = sadd.s32 %s261, 1
    %p265 = scmp.eq.s32.totalorder %s21, 1
    %p266 = scmp.ne.s32.totalorder %s261, %s263
    %p267 = scmp.eq.s32.totalorder %s21, 0
    %p268 = por %p266, %p267
    %p269 = scmp.ne.s32.totalorder %s261, %s263
    %p270 = scmp.eq.s32.totalorder %s26, 1
    %p271 = por %p269, %p270
    %p272 = scmp.ne.s32.totalorder %s263, %s264
    %p273 = scmp.eq.s32.totalorder %s26, 0
    %p274 = por %p272, %p273
    %p275 = scmp.ne.s32.totalorder %s263, %s264
    %p276 = scmp.eq.s32.totalorder %s27, 1
    %p277 = por %p275, %p276
    %p279 = scmp.ne.s32.totalorder %s264, %s278
    %p280 = scmp.eq.s32.totalorder %s27, 0
    %p281 = por %p279, %p280
    %s283 = sadd.s32 %s282, 1
    %p286 = scmp.eq.s32.totalorder %s21, 1
    %p287 = scmp.ne.s32.totalorder %s282, %s284
    %p288 = scmp.eq.s32.totalorder %s21, 0
    %p289 = por %p287, %p288
    %p290 = scmp.ne.s32.totalorder %s282, %s284
    %p291 = scmp.eq.s32.totalorder %s26, 1
    %p292 = por %p290, %p291
    %p293 = scmp.ne.s32.totalorder %s284, %s285
    %p294 = scmp.eq.s32.totalorder %s26, 0
    %p295 = por %p293, %p294
    %p296 = scmp.ne.s32.totalorder %s284, %s285
    %p297 = scmp.eq.s32.totalorder %s27, 1
    %p298 = por %p296, %p297
    %p300 = scmp.ne.s32.totalorder %s285, %s299
    %p301 = scmp.eq.s32.totalorder %s27, 0
    %p302 = por %p300, %p301
    %s304 = sadd.s32 %s303, 1
    %p307 = scmp.eq.s32.totalorder %s21, 1
    %p308 = scmp.ne.s32.totalorder %s303, %s305
    %p309 = scmp.eq.s32.totalorder %s21, 0
    %p310 = por %p308, %p309
    %p311 = scmp.ne.s32.totalorder %s303, %s305
    %p312 = scmp.eq.s32.totalorder %s26, 1
    %p313 = por %p311, %p312
    %p314 = scmp.ne.s32.totalorder %s305, %s306
    %p315 = scmp.eq.s32.totalorder %s26, 0
    %p316 = por %p314, %p315
    %p317 = scmp.ne.s32.totalorder %s305, %s306
    %p318 = scmp.eq.s32.totalorder %s27, 1
    %p319 = por %p317, %p318
    %p321 = scmp.ne.s32.totalorder %s306, %s320
    %p322 = scmp.eq.s32.totalorder %s27, 0
    %p323 = por %p321, %p322
    %s325 = sadd.s32 %s324, 1
    %p328 = scmp.eq.s32.totalorder %s21, 1
    %p329 = scmp.ne.s32.totalorder %s324, %s326
    %p330 = scmp.eq.s32.totalorder %s21, 0
    %p331 = por %p329, %p330
    %p332 = scmp.ne.s32.totalorder %s324, %s326
    %p333 = scmp.eq.s32.totalorder %s26, 1
    %p334 = por %p332, %p333
    %p335 = scmp.ne.s32.totalorder %s326, %s327
    %p336 = scmp.eq.s32.totalorder %s26, 0
    %p337 = por %p335, %p336
    %p338 = scmp.ne.s32.totalorder %s326, %s327
    %p339 = scmp.eq.s32.totalorder %s27, 1
    %p340 = por %p338, %p339
    %p342 = scmp.ne.s32.totalorder %s327, %s341
    %p343 = scmp.eq.s32.totalorder %s27, 0
    %p344 = por %p342, %p343
    %s346 = sadd.s32 %s345, 1
    %p349 = scmp.eq.s32.totalorder %s21, 1
    %p350 = scmp.ne.s32.totalorder %s345, %s347
    %p351 = scmp.eq.s32.totalorder %s21, 0
    %p352 = por %p350, %p351
    %p353 = scmp.ne.s32.totalorder %s345, %s347
    %p354 = scmp.eq.s32.totalorder %s26, 1
    %p355 = por %p353, %p354
    %p356 = scmp.ne.s32.totalorder %s347, %s348
    %p357 = scmp.eq.s32.totalorder %s26, 0
    %p358 = por %p356, %p357
    %p359 = scmp.ne.s32.totalorder %s347, %s348
    %p360 = scmp.eq.s32.totalorder %s27, 1
    %p361 = por %p359, %p360
    %p363 = scmp.ne.s32.totalorder %s348, %s362
    %p364 = scmp.eq.s32.totalorder %s27, 0
    %p365 = por %p363, %p364
    %s367 = sadd.s32 %s366, 1
    %p370 = scmp.eq.s32.totalorder %s21, 1
    %p371 = scmp.ne.s32.totalorder %s366, %s368
    %p372 = scmp.eq.s32.totalorder %s21, 0
    %p373 = por %p371, %p372
    %p374 = scmp.ne.s32.totalorder %s366, %s368
    %p375 = scmp.eq.s32.totalorder %s26, 1
    %p376 = por %p374, %p375
    %p377 = scmp.ne.s32.totalorder %s368, %s369
    %p378 = scmp.eq.s32.totalorder %s26, 0
    %p379 = por %p377, %p378
    %p380 = scmp.ne.s32.totalorder %s368, %s369
    %p381 = scmp.eq.s32.totalorder %s27, 1
    %p382 = por %p380, %p381
    %p384 = scmp.ne.s32.totalorder %s369, %s383
    %p385 = scmp.eq.s32.totalorder %s27, 0
    %p386 = por %p384, %p385
    %s387 = ssub.s32 %s28, %s40
    %s388 = ssub.s32 %s29, %s36
    %s389 = sor.u32 %s387, %s388
    %p390 = scmp.eq.s32.totalorder %s389, 0
    %s392 = sadd.s32 %s391, 1
    %s393 = scalar_select %p390, %s391, %s392
    %p396 = pneg %p390
    %p397 = scmp.eq.s32.totalorder %s21, 1
    %p398 = por %p396, %p397
    %p399 = scmp.ne.s32.totalorder %s391, %s394
    %p400 = scmp.eq.s32.totalorder %s21, 0
    %p401 = por %p399, %p400
    %p402 = scmp.ne.s32.totalorder %s391, %s394
    %p403 = scmp.eq.s32.totalorder %s26, 1
    %p404 = por %p402, %p403
    %p405 = scmp.ne.s32.totalorder %s394, %s395
    %p406 = scmp.eq.s32.totalorder %s26, 0
    %p407 = por %p405, %p406
    %p408 = scmp.ne.s32.totalorder %s394, %s395
    %p409 = scmp.eq.s32.totalorder %s27, 1
    %p410 = por %p408, %p409
    %p412 = scmp.ne.s32.totalorder %s395, %s411
    %p413 = scmp.eq.s32.totalorder %s27, 0
    %p414 = por %p412, %p413
    %p415 = scmp.le.s32.totalorder 1, %s21
    %p416 = scmp.lt.s32.totalorder %s21, 3
    %p417 = pnand %p415, %p416
    %p418 = pneg %p417
    // Predicated region
    $region9: #{kbblock_forward.7} parent=5 // pred_check
      _
    $region10: #{kbblock_forward.7} parent=5 // pred_check_branch
      %420 = sbr.rel (%p417) target = $region12
    $region11: #{kbblock_forward.7} parent=5 // pred_region
      %s421 = ssub.s32 %s21, 1
      // Predicated region
      $region13: #{kbblock_forward.7} parent=11 // pred_check
        %p422 = pneg %p190
      $region14: #{kbblock_forward.7} parent=11 // pred_check_branch
        %424 = sbr.rel (%p422) target = $region16
      $region15: #{kbblock_forward.7} parent=11 // pred_region
        _
      $region16: #{kbblock_forward.7} parent=11 // pred_fallthru
        _
      // Predicated region
      $region17: #{kbblock_forward.7} parent=11 // pred_check
        %p425 = pneg %p211
      $region18: #{kbblock_forward.7} parent=11 // pred_check_branch
        %427 = sbr.rel (%p425) target = $region20
      $region19: #{kbblock_forward.7} parent=11 // pred_region
        _
      $region20: #{kbblock_forward.7} parent=11 // pred_fallthru
        _
      // Predicated region
      $region21: #{kbblock_forward.7} parent=11 // pred_check
        %p428 = pneg %p232
      $region22: #{kbblock_forward.7} parent=11 // pred_check_branch
        %430 = sbr.rel (%p428) target = $region24
      $region23: #{kbblock_forward.7} parent=11 // pred_region
        _
      $region24: #{kbblock_forward.7} parent=11 // pred_fallthru
        _
      // Predicated region
      $region25: #{kbblock_forward.7} parent=11 // pred_check
        %p431 = pneg %p253
      $region26: #{kbblock_forward.7} parent=11 // pred_check_branch
        %433 = sbr.rel (%p431) target = $region28
      $region27: #{kbblock_forward.7} parent=11 // pred_region
        _
      $region28: #{kbblock_forward.7} parent=11 // pred_fallthru
        _
      // Predicated region
      $region29: #{kbblock_forward.7} parent=11 // pred_check
        %p434 = pneg %p274
      $region30: #{kbblock_forward.7} parent=11 // pred_check_branch
        %436 = sbr.rel (%p434) target = $region32
      $region31: #{kbblock_forward.7} parent=11 // pred_region
        _
      $region32: #{kbblock_forward.7} parent=11 // pred_fallthru
        _
      // Predicated region
      $region33: #{kbblock_forward.7} parent=11 // pred_check
        %p437 = pneg %p295
      $region34: #{kbblock_forward.7} parent=11 // pred_check_branch
        %439 = sbr.rel (%p437) target = $region36
      $region35: #{kbblock_forward.7} parent=11 // pred_region
        _
      $region36: #{kbblock_forward.7} parent=11 // pred_fallthru
        _
      // Predicated region
      $region37: #{kbblock_forward.7} parent=11 // pred_check
        %p440 = pneg %p316
      $region38: #{kbblock_forward.7} parent=11 // pred_check_branch
        %442 = sbr.rel (%p440) target = $region40
      $region39: #{kbblock_forward.7} parent=11 // pred_region
        _
      $region40: #{kbblock_forward.7} parent=11 // pred_fallthru
        _
      // Predicated region
      $region41: #{kbblock_forward.7} parent=11 // pred_check
        %p443 = pneg %p337
      $region42: #{kbblock_forward.7} parent=11 // pred_check_branch
        %445 = sbr.rel (%p443) target = $region44
      $region43: #{kbblock_forward.7} parent=11 // pred_region
        _
      $region44: #{kbblock_forward.7} parent=11 // pred_fallthru
        _
      // Predicated region
      $region45: #{kbblock_forward.7} parent=11 // pred_check
        %p446 = pneg %p358
      $region46: #{kbblock_forward.7} parent=11 // pred_check_branch
        %448 = sbr.rel (%p446) target = $region48
      $region47: #{kbblock_forward.7} parent=11 // pred_region
        _
      $region48: #{kbblock_forward.7} parent=11 // pred_fallthru
        _
      // Predicated region
      $region49: #{kbblock_forward.7} parent=11 // pred_check
        %p449 = pneg %p379
      $region50: #{kbblock_forward.7} parent=11 // pred_check_branch
        %451 = sbr.rel (%p449) target = $region52
      $region51: #{kbblock_forward.7} parent=11 // pred_region
        _
      $region52: #{kbblock_forward.7} parent=11 // pred_fallthru
        _
    $region12: #{kbblock_forward.7} parent=5 // pred_fallthru
      _
    %p452 = scmp.lt.s32.totalorder %s21, 2
    // Predicated region
    $region53: #{kbblock_forward.7} parent=5 // pred_check
      %p453 = pneg %p452
    $region54: #{kbblock_forward.7} parent=5 // pred_check_branch
      %455 = sbr.rel (%p453) target = $region56
    $region55: #{kbblock_forward.7} parent=5 // pred_region
      // Predicated region
      $region57: #{kbblock_forward.7} parent=55 // pred_check
        %p456 = pneg %p55
      $region58: #{kbblock_forward.7} parent=55 // pred_check_branch
        %458 = sbr.rel (%p456) target = $region60
      $region59: #{kbblock_forward.7} parent=55 // pred_region
        %s459 = smul.u32 2, %s29
        %p460 = scmp.lt.s32.totalorder %s28, 1
        %s461 = scalar_select %p460, %s28, 1
        %p462 = scmp.lt.s32.totalorder %s459, 1
        %s463 = scalar_select %p462, %s459, 1
        %s464 = smul.addr %s461, 2
        %s465 = sadd.s32 %s463, %s464
        %s466 = smul.addr %s465, 8
        %s467 = scalar_lea.vmem %s0, %s466
        %s468 = smul.u32 2, %s29
      $region60: #{kbblock_forward.7} parent=55 // pred_fallthru
        _
      // Predicated region
      $region61: #{kbblock_forward.7} parent=55 // pred_check
        %p469 = pneg %p83
      $region62: #{kbblock_forward.7} parent=55 // pred_check_branch
        %471 = sbr.rel (%p469) target = $region64
      $region63: #{kbblock_forward.7} parent=55 // pred_region
        %s472 = smul.u32 2, %s29
        %p473 = scmp.lt.s32.totalorder %s28, 1
        %s474 = scalar_select %p473, %s28, 1
        %p475 = scmp.lt.s32.totalorder %s472, 1
        %s476 = scalar_select %p475, %s472, 1
        %s477 = smul.addr %s474, 2
        %s478 = sadd.s32 %s476, %s477
        %s479 = smul.addr %s478, 8
        %s480 = scalar_lea.vmem %s1, %s479
        %s481 = smul.u32 2, %s29
      $region64: #{kbblock_forward.7} parent=55 // pred_fallthru
        _
      // Predicated region
      $region65: #{kbblock_forward.7} parent=55 // pred_check
        %p482 = pneg %p109
      $region66: #{kbblock_forward.7} parent=55 // pred_check_branch
        %484 = sbr.rel (%p482) target = $region68
      $region67: #{kbblock_forward.7} parent=55 // pred_region
        %p485 = scmp.lt.s32.totalorder %s28, 1
        %s486 = scalar_select %p485, %s28, 1
        %s487 = smul.addr %s486, 8
        %s488 = scalar_lea.vmem %s2, %s487
      $region68: #{kbblock_forward.7} parent=55 // pred_fallthru
        _
      // Predicated region
      $region69: #{kbblock_forward.7} parent=55 // pred_check
        %p489 = pneg %p135
      $region70: #{kbblock_forward.7} parent=55 // pred_check_branch
        %491 = sbr.rel (%p489) target = $region72
      $region71: #{kbblock_forward.7} parent=55 // pred_region
        %p492 = scmp.lt.s32.totalorder %s28, 1
        %s493 = scalar_select %p492, %s28, 1
        %s494 = smul.addr %s493, 8
        %s495 = scalar_lea.vmem %s3, %s494
      $region72: #{kbblock_forward.7} parent=55 // pred_fallthru
        _
      // Predicated region
      $region73: #{kbblock_forward.7} parent=55 // pred_check
        %p496 = pneg %p163
      $region74: #{kbblock_forward.7} parent=55 // pred_check_branch
        %498 = sbr.rel (%p496) target = $region76
      $region75: #{kbblock_forward.7} parent=55 // pred_region
        %s499 = smul.u32 2, %s29
        %p500 = scmp.lt.s32.totalorder %s28, 1
        %s501 = scalar_select %p500, %s28, 1
        %p502 = scmp.lt.s32.totalorder %s499, 1
        %s503 = scalar_select %p502, %s499, 1
        %s504 = smul.addr %s501, 2
        %s505 = sadd.s32 %s503, %s504
        %s506 = smul.addr %s505, 8
        %s507 = scalar_lea.vmem %s4, %s506
        %s508 = smul.u32 2, %s29
      $region76: #{kbblock_forward.7} parent=55 // pred_fallthru
        _
    $region56: #{kbblock_forward.7} parent=5 // pred_fallthru
      _
    %p509 = scmp.le.s32.totalorder 1, %s21
    %p510 = scmp.lt.s32.totalorder %s21, 3
    %p511 = pnand %p509, %p510
    %p512 = pneg %p511
    // Predicated region
    $region77: #{kbblock_forward.7} parent=5 // pred_check
      _
    $region78: #{kbblock_forward.7} parent=5 // pred_check_branch
      %514 = sbr.rel (%p511) target = $region80
    $region79: #{kbblock_forward.7} parent=5 // pred_region
      %s515 = ssub.s32 %s21, 1
      %s516 = smul.u32 2, %s31
      %p517 = scmp.lt.s32.totalorder %s30, 1
      %s518 = scalar_select %p517, %s30, 1
      %p519 = scmp.lt.s32.totalorder %s516, 1
      %s520 = scalar_select %p519, %s516, 1
      %s521 = smul.addr %s518, 2
      %s522 = sadd.s32 %s520, %s521
      %s523 = smul.addr %s522, 8
      %s524 = scalar_lea.vmem %s0, %s523
      %p525 = pneg %p61
      %p526 = pneg %p58
      %s527 = smul.u32 2, %s31
      %p528 = scmp.lt.s32.totalorder %s30, 1
      %s529 = scalar_select %p528, %s30, 1
      %p530 = scmp.lt.s32.totalorder %s527, 1
      %s531 = scalar_select %p530, %s527, 1
      %s532 = smul.addr %s529, 2
      %s533 = sadd.s32 %s531, %s532
      %s534 = smul.addr %s533, 8
      %s535 = scalar_lea.vmem %s1, %s534
      %p536 = pneg %p89
      %p537 = pneg %p86
      %p538 = scmp.lt.s32.totalorder %s30, 1
      %s539 = scalar_select %p538, %s30, 1
      %s540 = smul.addr %s539, 8
      %s541 = scalar_lea.vmem %s2, %s540
      %p542 = pneg %p115
      %p543 = pneg %p112
      %p544 = scmp.lt.s32.totalorder %s30, 1
      %s545 = scalar_select %p544, %s30, 1
      %s546 = smul.addr %s545, 8
      %s547 = scalar_lea.vmem %s3, %s546
      %p548 = pneg %p141
      %p549 = pneg %p138
      %s550 = smul.u32 2, %s31
      %p551 = scmp.lt.s32.totalorder %s30, 1
      %s552 = scalar_select %p551, %s30, 1
      %p553 = scmp.lt.s32.totalorder %s550, 1
      %s554 = scalar_select %p553, %s550, 1
      %s555 = smul.addr %s552, 2
      %s556 = sadd.s32 %s554, %s555
      %s557 = smul.addr %s556, 8
      %s558 = scalar_lea.vmem %s4, %s557
      %p559 = pneg %p169
      %p560 = pneg %p166
      %p561 = pneg %p190
      %p562 = pneg %p187
      %p563 = pneg %p211
      %p564 = pneg %p208
      %p565 = pneg %p232
      %p566 = pneg %p229
      %p567 = pneg %p253
      %p568 = pneg %p250
      %p569 = pneg %p274
      %p570 = pneg %p271
      %p571 = pneg %p295
      %p572 = pneg %p292
      %p573 = pneg %p316
      %p574 = pneg %p313
      %p575 = pneg %p337
      %p576 = pneg %p334
      %p577 = pneg %p358
      %p578 = pneg %p355
      %p579 = pneg %p379
      %p580 = pneg %p376
      %p581 = pneg %p407
      %p582 = pneg %p404
      %s583 = smul.u32 2, %s31
      %p584 = scmp.lt.s32.totalorder %s30, 1
      %s585 = scalar_select %p584, %s30, 1
      %p586 = scmp.lt.s32.totalorder %s583, 1
      %s587 = scalar_select %p586, %s583, 1
      %s588 = smul.addr %s585, 2
      %s589 = sadd.s32 %s587, %s588
      %s590 = smul.addr %s589, 8
      %s591 = scalar_lea.vmem %s15, %s590
      %s592 = smul.u32 2, %s31
      %p593 = scmp.lt.s32.totalorder %s30, 1
      %s594 = scalar_select %p593, %s30, 1
      %p595 = scmp.lt.s32.totalorder %s592, 1
      %s596 = scalar_select %p595, %s592, 1
      %s597 = smul.addr %s594, 2
      %s598 = sadd.s32 %s596, %s597
      %s599 = smul.addr %s598, 8
      %s600 = scalar_lea.vmem %s0, %s599
      %s601 = smul.u32 2, %s31
      %s602 = smul.u32 2, %s31
      %p603 = scmp.lt.s32.totalorder %s30, 1
      %s604 = scalar_select %p603, %s30, 1
      %p605 = scmp.lt.s32.totalorder %s602, 1
      %s606 = scalar_select %p605, %s602, 1
      %s607 = smul.addr %s604, 2
      %s608 = sadd.s32 %s606, %s607
      %s609 = smul.addr %s608, 8
      %s610 = scalar_lea.vmem %s1, %s609
      %s611 = smul.u32 2, %s31
      %p612 = scmp.lt.s32.totalorder %s30, 1
      %s613 = scalar_select %p612, %s30, 1
      %s614 = smul.addr %s613, 8
      %s615 = scalar_lea.vmem %s2, %s614
      %p616 = scmp.lt.s32.totalorder %s30, 1
      %s617 = scalar_select %p616, %s30, 1
      %s618 = smul.addr %s617, 8
      %s619 = scalar_lea.vmem %s3, %s618
      %s620 = smul.u32 2, %s31
      %p621 = scmp.lt.s32.totalorder %s30, 1
      %s622 = scalar_select %p621, %s30, 1
      %p623 = scmp.lt.s32.totalorder %s620, 1
      %s624 = scalar_select %p623, %s620, 1
      %s625 = smul.addr %s622, 2
      %s626 = sadd.s32 %s624, %s625
      %s627 = smul.addr %s626, 8
      %s628 = scalar_lea.vmem %s4, %s627
      %s629 = smul.u32 2, %s31
      %s630 = smul.u32 2, %s31
      %p631 = scmp.lt.s32.totalorder %s30, 1
      %s632 = scalar_select %p631, %s30, 1
      %p633 = scmp.lt.s32.totalorder %s630, 1
      %s634 = scalar_select %p633, %s630, 1
      %s635 = smul.addr %s632, 2
      %s636 = sadd.s32 %s634, %s635
      %s637 = smul.addr %s636, 8
      %s638 = scalar_lea.vmem %s15, %s637
      %s639 = smul.u32 2, %s31
      %v640 = vld [vmem:[%s600] sm:$0xff]
      %v641 = vld [vmem:[%s600 + $0x8] sm:$0xff]
      %v642 = vld [vmem:[%s610] sm:$0xff]
      %v643 = vld [vmem:[%s610 + $0x8] sm:$0xff]
      %v644 = vmul.f32 %v640, %v642
      %v645 = vmul.f32 %v641, %v643
      %v646 = vld [vmem:[%s615] sm:$0xff]
      %648 = vset.pattern.permute.xlu0 0
      %649 = vperm.xlu0 %648, %v646
      %v650 = vpop.permute.xlu0 %649
      %v652 = vmul.f32 %v644, %v650
      %v653 = vmul.f32 %v645, %v650
      %v654 = vld [vmem:[%s619] sm:$0xff]
      %656 = vset.pattern.permute.xlu0 0
      %657 = vperm.xlu0 %656, %v654
      %v658 = vpop.permute.xlu0 %657
      %v660 = vmul.f32 %v652, %v658
      %v661 = vmul.f32 %v653, %v658
      %v662 = vld [vmem:[%s628] sm:$0xff]
      %v663 = vld [vmem:[%s628 + $0x8] sm:$0xff]
      %v664 = vld [vmem:[%s5] sm:$0xff]
      %v665 = vld [vmem:[%s6] sm:$0xff]
      %667 = vset.pattern.permute.xlu0 0
      %668 = vperm.xlu0 %667, %v665
      %v669 = vpop.permute.xlu0 %668
      %vm671 = vcmask 64512
      %v673 = vsel %vm671, %v664, 0
      %675 = vmatpush.msra.mxu0 0.0
      %676 = vmatpush.msra.mxu0 0.0
      %677 = vmatpush.msra.mxu0 0.0
      %678 = vmatpush.msra.mxu0 0.0
      %679 = vmatpush.msra.mxu0 0.0
      %680 = vmatpush.msra.mxu0 0.0
      %681 = vmatpush.msra.mxu0 0.0
      %682 = vmatpush.msra.mxu0 0.0
      %683 = vmatpush.msra.mxu0 0.0
      %684 = vmatpush.msra.mxu0 0.0
      %685 = vmatpush.msra.mxu0 0.0
      %686 = vmatpush.msra.mxu0 0.0
      %687 = vmatpush.msra.mxu0 0.0
      %688 = vmatpush.msra.mxu0 0.0
      %689 = vmatpush.msra.mxu0 0.0
      %690 = vmatpush.msra.mxu0 %v660
      %691 = vmatmul.f32.gmra.mxu0 %v673
      %v692 = vpop.f32.mrf.mxu0
      %v693 = vadd.f32 %v669, %v692
      %694 = vdwg.mxu0
      %695 = vmatpush.msra.mxu0 0.0
      %696 = vmatpush.msra.mxu0 0.0
      %697 = vmatpush.msra.mxu0 0.0
      %698 = vmatpush.msra.mxu0 0.0
      %699 = vmatpush.msra.mxu0 0.0
      %700 = vmatpush.msra.mxu0 0.0
      %701 = vmatpush.msra.mxu0 0.0
      %702 = vmatpush.msra.mxu0 0.0
      %703 = vmatpush.msra.mxu0 0.0
      %704 = vmatpush.msra.mxu0 0.0
      %705 = vmatpush.msra.mxu0 0.0
      %706 = vmatpush.msra.mxu0 0.0
      %707 = vmatpush.msra.mxu0 0.0
      %708 = vmatpush.msra.mxu0 0.0
      %709 = vmatpush.msra.mxu0 0.0
      %710 = vmatpush.msra.mxu0 %v661
      %711 = vmatmul.f32.gmra.mxu0 %v673
      %v712 = vpop.f32.mrf.mxu0
      %v713 = vadd.f32 %v669, %v712
      %714 = vdwg.mxu0
      %v715 = vld [vmem:[%s7] sm:$0xff]
      %717 = vset.pattern.permute.xlu0 0
      %718 = vperm.xlu0 %717, %v715
      %v719 = vpop.permute.xlu0 %718
      %v721 = vmul.f32 %v693, %v719
      %v722 = vmul.f32 %v713, %v719
      %v723 = vadd.f32 %v662, %v721
      %v724 = vadd.f32 %v663, %v722
      %v725 = vrot.slane %v723, 4
      %v726 = vadd.f32 %v723, %v725
      %v727 = vrot.slane %v726, 2
      %v728 = vadd.f32 %v726, %v727
      %v729 = vrot.slane %v728, 1
      %v730 = vadd.f32 %v728, %v729
      %v731 = vrot.slane %v724, 4
      %v732 = vadd.f32 %v724, %v731
      %v733 = vrot.slane %v732, 2
      %v734 = vadd.f32 %v732, %v733
      %v735 = vrot.slane %v734, 1
      %v736 = vadd.f32 %v734, %v735
      %v737 = vrcp.pop 8.0
      %v738 = vmul.f32 8.0, %v737
      %v739 = vsub.f32 1.0, %v738
      %v740 = vmul.f32 %v737, %v739
      %v741 = vadd.f32 %v737, %v740
      %vm742 = vweird.f32 %v737
      %v743 = vsel %vm742, %v737, %v741
      %v744 = vmul.f32 %v730, %v743
      %v745 = vmul.f32 %v736, %v743
      %v746 = vsub.f32 %v723, %v744
      %v747 = vsub.f32 %v724, %v745
      %v748 = vmul.f32 %v746, %v746
      %v749 = vmul.f32 %v747, %v747
      %v750 = vrot.slane %v748, 4
      %v751 = vadd.f32 %v748, %v750
      %v752 = vrot.slane %v751, 2
      %v753 = vadd.f32 %v751, %v752
      %v754 = vrot.slane %v753, 1
      %v755 = vadd.f32 %v753, %v754
      %v756 = vrot.slane %v749, 4
      %v757 = vadd.f32 %v749, %v756
      %v758 = vrot.slane %v757, 2
      %v759 = vadd.f32 %v757, %v758
      %v760 = vrot.slane %v759, 1
      %v761 = vadd.f32 %v759, %v760
      %v762 = vmul.f32 %v755, %v743
      %v763 = vmul.f32 %v761, %v743
      %v764 = vadd.f32 %v762, 1e-06
      %v765 = vadd.f32 %v763, 1e-06
      %v766 = vrsqrt.pop %v764
      %v767 = vmul.f32 %v766, %v764
      %v768 = vmul.f32 %v767, %v766
      %v769 = vmul.f32 0.5, %v768
      %v770 = vsub.f32 1.5, %v769
      %v771 = vmul.f32 %v766, %v770
      %vm772 = vweird.f32 %v764
      %vm773 = vweird.f32 %v766
      %vm774 = vmor %vm772, %vm773
      %v775 = vsel %vm774, %v766, %v771
      %v776 = vrsqrt.pop %v765
      %v777 = vmul.f32 %v776, %v765
      %v778 = vmul.f32 %v777, %v776
      %v779 = vmul.f32 0.5, %v778
      %v780 = vsub.f32 1.5, %v779
      %v781 = vmul.f32 %v776, %v780
      %vm782 = vweird.f32 %v765
      %vm783 = vweird.f32 %v776
      %vm784 = vmor %vm782, %vm783
      %v785 = vsel %vm784, %v776, %v781
      %v786 = vmul.f32 %v746, %v775
      %v787 = vmul.f32 %v747, %v785
      %v788 = vld [vmem:[%s8] sm:$0xff]
      %790 = vset.pattern.permute.xlu0 0
      %791 = vperm.xlu0 %790, %v788
      %v792 = vpop.permute.xlu0 %791
      %v794 = vmul.f32 %v786, %v792
      %v795 = vmul.f32 %v787, %v792
      %v796 = vld [vmem:[%s9] sm:$0xff]
      %798 = vset.pattern.permute.xlu0 0
      %799 = vperm.xlu0 %798, %v796
      %v800 = vpop.permute.xlu0 %799
      %v802 = vadd.f32 %v794, %v800
      %v803 = vadd.f32 %v795, %v800
      %v804 = vld [vmem:[%s10] sm:$0xff]
      %v805 = vld [vmem:[%s10 + $0x8] sm:$0xff]
      %v806 = vld [vmem:[%s11] sm:$0xff]
      %v807 = vld [vmem:[%s11 + $0x8] sm:$0xff]
      %809 = vset.pattern.permute.xlu0 0
      %810 = vperm.xlu0 %809, %v806
      %v811 = vpop.permute.xlu0 %810
      %814 = vset.pattern.permute.xlu0 0
      %815 = vperm.xlu0 %814, %v807
      %v816 = vpop.permute.xlu0 %815
      %v819 = vsel %vm671, %v804, 0
      %v822 = vsel %vm671, %v805, 0
      %824 = vmatpush.msra.mxu0 0.0
      %825 = vmatpush.msra.mxu0 0.0
      %826 = vmatpush.msra.mxu0 0.0
      %827 = vmatpush.msra.mxu0 0.0
      %828 = vmatpush.msra.mxu0 0.0
      %829 = vmatpush.msra.mxu0 0.0
      %830 = vmatpush.msra.mxu0 0.0
      %831 = vmatpush.msra.mxu0 0.0
      %832 = vmatpush.msra.mxu0 0.0
      %833 = vmatpush.msra.mxu0 0.0
      %834 = vmatpush.msra.mxu0 0.0
      %835 = vmatpush.msra.mxu0 0.0
      %836 = vmatpush.msra.mxu0 0.0
      %837 = vmatpush.msra.mxu0 0.0
      %838 = vmatpush.msra.mxu0 0.0
      %839 = vmatpush.msra.mxu0 %v802
      %840 = vmatmul.f32.gmra.mxu0 %v819
      %v841 = vpop.f32.mrf.mxu0
      %v842 = vadd.f32 %v811, %v841
      %843 = vmatmul.f32.gmra.mxu0 %v822
      %v844 = vpop.f32.mrf.mxu0
      %v845 = vadd.f32 %v816, %v844
      %846 = vdwg.mxu0
      %847 = vmatpush.msra.mxu0 0.0
      %848 = vmatpush.msra.mxu0 0.0
      %849 = vmatpush.msra.mxu0 0.0
      %850 = vmatpush.msra.mxu0 0.0
      %851 = vmatpush.msra.mxu0 0.0
      %852 = vmatpush.msra.mxu0 0.0
      %853 = vmatpush.msra.mxu0 0.0
      %854 = vmatpush.msra.mxu0 0.0
      %855 = vmatpush.msra.mxu0 0.0
      %856 = vmatpush.msra.mxu0 0.0
      %857 = vmatpush.msra.mxu0 0.0
      %858 = vmatpush.msra.mxu0 0.0
      %859 = vmatpush.msra.mxu0 0.0
      %860 = vmatpush.msra.mxu0 0.0
      %861 = vmatpush.msra.mxu0 0.0
      %862 = vmatpush.msra.mxu0 %v803
      %863 = vmatmul.f32.gmra.mxu0 %v819
      %v864 = vpop.f32.mrf.mxu0
      %v865 = vadd.f32 %v811, %v864
      %866 = vmatmul.f32.gmra.mxu0 %v822
      %v867 = vpop.f32.mrf.mxu0
      %v868 = vadd.f32 %v816, %v867
      %869 = vdwg.mxu0
      %v870 = vmul.f32 %v842, %v845
      %v871 = vmul.f32 %v865, %v868
      %v872 = vld [vmem:[%s12] sm:$0xff]
      %v873 = vld [vmem:[%s13] sm:$0xff]
      %875 = vset.pattern.permute.xlu0 0
      %876 = vperm.xlu0 %875, %v873
      %v877 = vpop.permute.xlu0 %876
      %v880 = vsel %vm671, %v872, 0
      %882 = vmatpush.msra.mxu0 0.0
      %883 = vmatpush.msra.mxu0 0.0
      %884 = vmatpush.msra.mxu0 0.0
      %885 = vmatpush.msra.mxu0 0.0
      %886 = vmatpush.msra.mxu0 0.0
      %887 = vmatpush.msra.mxu0 0.0
      %888 = vmatpush.msra.mxu0 0.0
      %889 = vmatpush.msra.mxu0 0.0
      %890 = vmatpush.msra.mxu0 0.0
      %891 = vmatpush.msra.mxu0 0.0
      %892 = vmatpush.msra.mxu0 0.0
      %893 = vmatpush.msra.mxu0 0.0
      %894 = vmatpush.msra.mxu0 0.0
      %895 = vmatpush.msra.mxu0 0.0
      %896 = vmatpush.msra.mxu0 0.0
      %897 = vmatpush.msra.mxu0 %v870
      %898 = vmatmul.f32.gmra.mxu0 %v880
      %v899 = vpop.f32.mrf.mxu0
      %v900 = vadd.f32 %v877, %v899
      %901 = vdwg.mxu0
      %902 = vmatpush.msra.mxu0 0.0
      %903 = vmatpush.msra.mxu0 0.0
      %904 = vmatpush.msra.mxu0 0.0
      %905 = vmatpush.msra.mxu0 0.0
      %906 = vmatpush.msra.mxu0 0.0
      %907 = vmatpush.msra.mxu0 0.0
      %908 = vmatpush.msra.mxu0 0.0
      %909 = vmatpush.msra.mxu0 0.0
      %910 = vmatpush.msra.mxu0 0.0
      %911 = vmatpush.msra.mxu0 0.0
      %912 = vmatpush.msra.mxu0 0.0
      %913 = vmatpush.msra.mxu0 0.0
      %914 = vmatpush.msra.mxu0 0.0
      %915 = vmatpush.msra.mxu0 0.0
      %916 = vmatpush.msra.mxu0 0.0
      %917 = vmatpush.msra.mxu0 %v871
      %918 = vmatmul.f32.gmra.mxu0 %v880
      %v919 = vpop.f32.mrf.mxu0
      %v920 = vadd.f32 %v877, %v919
      %921 = vdwg.mxu0
      %v922 = vld [vmem:[%s14] sm:$0xff]
      %924 = vset.pattern.permute.xlu0 0
      %925 = vperm.xlu0 %924, %v922
      %v926 = vpop.permute.xlu0 %925
      %v928 = vmul.f32 %v900, %v926
      %v929 = vmul.f32 %v920, %v926
      %v930 = vadd.f32 %v723, %v928
      %v931 = vadd.f32 %v724, %v929
      %932 = vst [vmem:[%s638] sm:$0xff] %v930
      %933 = vst [vmem:[%s638 + $0x8] sm:$0xff] %v931
      %s934 = smul.u32 2, %s31
      %p935 = scmp.lt.s32.totalorder %s30, 1
      %s936 = scalar_select %p935, %s30, 1
      %p937 = scmp.lt.s32.totalorder %s934, 1
      %s938 = scalar_select %p937, %s934, 1
      %s939 = smul.addr %s936, 2
      %s940 = sadd.s32 %s938, %s939
      %s941 = smul.addr %s940, 8
      %s942 = scalar_lea.vmem %s15, %s941
      // Predicated region
      $region81: #{kbblock_forward.7} parent=79 // pred_check
        %p943 = pneg %p404
      $region82: #{kbblock_forward.7} parent=79 // pred_check_branch
        %945 = sbr.rel (%p943) target = $region84
      $region83: #{kbblock_forward.7} parent=79 // pred_region
        %s946 = smul.u32 2, %s31
      $region84: #{kbblock_forward.7} parent=79 // pred_fallthru
        _
    $region80: #{kbblock_forward.7} parent=5 // pred_fallthru
      _
    %p947 = scmp.le.s32.totalorder 2, %s21
    // Predicated region
    $region85: #{kbblock_forward.7} parent=5 // pred_check
      %p948 = pneg %p947
    $region86: #{kbblock_forward.7} parent=5 // pred_check_branch
      %950 = sbr.rel (%p948) target = $region88
    $region87: #{kbblock_forward.7} parent=5 // pred_region
      %s951 = ssub.s32 %s21, 2
      // Predicated region
      $region89: #{kbblock_forward.7} parent=87 // pred_check
        %p952 = pneg %p410
      $region90: #{kbblock_forward.7} parent=87 // pred_check_branch
        %954 = sbr.rel (%p952) target = $region92
      $region91: #{kbblock_forward.7} parent=87 // pred_region
        %s955 = smul.u32 2, %s33
        %p956 = scmp.lt.s32.totalorder %s32, 1
        %s957 = scalar_select %p956, %s32, 1
        %p958 = scmp.lt.s32.totalorder %s955, 1
        %s959 = scalar_select %p958, %s955, 1
        %s960 = smul.addr %s957, 2
        %s961 = sadd.s32 %s959, %s960
        %s962 = smul.addr %s961, 8
        %s963 = scalar_lea.vmem %s15, %s962
      $region92: #{kbblock_forward.7} parent=87 // pred_fallthru
        _
    $region88: #{kbblock_forward.7} parent=5 // pred_fallthru
      _
  $region6: #{kbblock_forward.7} parent=0 // loop_footer
    %s25 = sadd.s32 1, %s21
  $region7: #{kbblock_forward.7} parent=0 // loop_footer_branch
    %20 = sbr.rel target = $region3
  $region8: #{kbblock_forward.7} parent=0 // loop_exit
    _

</llo_original>
